<compile_context>
chip_gen: v7x
topology: tpu7x:2x2x1
jax: 0.10.0
libtpu: 0.0.40
codegen_flags: <defaults>
</compile_context>

<pallas_src>
import functools

import jax
import jax.numpy as jnp
import numpy as np
from jax.experimental import pallas as pl
from jax.experimental.pallas import tpu as pltpu


_PATH_NAMES = ("p1", "p2", "p3", "p6", "p7", "p10")


def _fe_kernel(x_ref, *refs, window_size, block_b):
    """refs = 36 path weight/bias refs + 2 combine refs + 1 output ref."""
    W = window_size
    Bt = block_b

    out_ref = refs[-1]
    wr = refs[:-1]
    pw = {n: wr[6 * i:6 * (i + 1)] for i, n in enumerate(_PATH_NAMES)}
    cw_ref, cb_ref = wr[36], wr[37]

    x = x_ref[...]                                   # (Bt, 16*W) f32

    def mlp(h, name):
        w1, b1, w2, b2, w3, b3 = pw[name]
        h = jnp.maximum(
            jnp.dot(h, w1[...], preferred_element_type=jnp.float32) + b1[...], 0.0)
        h = jnp.maximum(
            jnp.dot(h, w2[...], preferred_element_type=jnp.float32) + b2[...], 0.0)
        h = jnp.maximum(
            jnp.dot(h, w3[...], preferred_element_type=jnp.float32) + b3[...], 0.0)
        return h

    def seg(i):
        return x[:, i * W:(i + 1) * W]

    N_e = seg(0)
    u_rp = seg(7)
    u_vgt = seg(8)
    u_egrv = seg(9)
    T_egrsys_out = seg(10)
    T_intclr_out = seg(11)
    W_a = seg(12)
    W_egr = seg(13)
    InCylO2 = seg(14)
    T_tur_in = seg(15)
    # u_main_soi .. u_post1_qty are contiguous columns [W : 7W)
    u_fuel = x[:, W:7 * W]                           # (Bt, 6*W)

    # ---- path1 on its 5 inputs with shared weights -> one batched-M chain ----
    xa = jnp.concatenate([N_e, u_egrv, u_vgt, u_rp, T_egrsys_out], axis=0)  # (5Bt, W)
    ya = mlp(xa, "p1")                                                      # (5Bt, W)
    out1 = ya[0 * Bt:1 * Bt]
    out2 = ya[1 * Bt:2 * Bt]
    out3 = ya[2 * Bt:3 * Bt]
    out9 = ya[3 * Bt:4 * Bt]
    out10 = ya[4 * Bt:5 * Bt]

    # ---- path3 / path6 ----
    out4 = mlp(jnp.concatenate([out2, W_egr, out3], axis=1), "p3")          # (Bt, 3W)
    out12 = mlp(u_fuel, "p6")                                               # (Bt, 6W)

    # ---- path2 on its 2 inputs with shared weights ----
    xb = jnp.concatenate(
        [jnp.concatenate([W_a, out3], axis=1),
         jnp.concatenate([T_intclr_out, out10], axis=1)], axis=0)           # (2Bt, 2W)
    yb = mlp(xb, "p2")                                                      # (2Bt, 2W)
    out6 = yb[:Bt]
    out11 = yb[Bt:]

    # ---- path7 / path10 ----
    out8 = mlp(jnp.concatenate([out1, out4, out6, InCylO2], axis=1), "p7")      # (Bt, 7W)
    out13 = mlp(jnp.concatenate([out9, T_tur_in, out11, out12], axis=1), "p10")  # (Bt, 10W)

    # ---- combine: Linear(24*W, output_dim*W)  (lane-dense store) ----
    oc = jnp.concatenate([out8, u_rp, out13, u_fuel], axis=1)               # (Bt, 24W)
    out_ref[...] = (jnp.dot(oc, cw_ref[...], preferred_element_type=jnp.float32)
                    + cb_ref[...])


def _round_up(n, m):
    return ((n + m - 1) // m) * m


def feature_extractor_causal(x, params, window_size, output_dim, block_b=128):
    """x: (B, 16*window_size) float32.  Returns (B, output_dim*window_size)."""
    B, F = x.shape
    W = window_size
    assert F == 16 * W, "input must contain 16 window_size-wide segments"
    assert params["comb_w"].shape[1] == 24 * W, "combine expects causal_dim == 24"

    # ---- layout plumbing (no compute): (out,in) -> (in,out), biases -> (1,C) ----
    weights = []
    for n in _PATH_NAMES:
        for l in ("1", "2", "3"):
            weights.append(jnp.asarray(params[f"{n}_w{l}"], jnp.float32).T)
            weights.append(jnp.asarray(params[f"{n}_b{l}"], jnp.float32).reshape(1, -1))
    weights.append(jnp.asarray(params["comb_w"], jnp.float32).T)            # (24W, D*W)
    weights.append(jnp.asarray(params["comb_b"], jnp.float32).reshape(1, -1))

    # ---- batch blocking: Bt rows per grid step, B padded to a multiple of Bt ----
    Bt = min(block_b, _round_up(B, 8))
    B_pad = _round_up(B, Bt)
    xp = x.astype(jnp.float32)
    if B_pad != B:
        xp = jnp.pad(xp, ((0, B_pad - B), (0, 0)))

    out_w = output_dim * W
    kernel = functools.partial(_fe_kernel, window_size=W, block_b=Bt)

    w_specs = [pl.BlockSpec(w.shape, lambda b: (0, 0)) for w in weights]

    out = pl.pallas_call(
        kernel,
        out_shape=jax.ShapeDtypeStruct((B_pad, out_w), jnp.float32),
        grid_spec=pltpu.PrefetchScalarGridSpec(
            num_scalar_prefetch=0,
            grid=(B_pad // Bt,),
            in_specs=[pl.BlockSpec((Bt, F), lambda b: (b, 0))] + w_specs,
            out_specs=pl.BlockSpec((Bt, out_w), lambda b: (b, 0)),
        ),
        compiler_params=pltpu.CompilerParams(
            dimension_semantics=("parallel",)),
    )(xp, *weights)
    return out[:B]


def init_params(key, window_size, causal_dim, output_dim):
    """Deterministic PyTorch-style (uniform +-1/sqrt(fan_in)) init, torch layouts."""
    W = window_size
    specs = {}

    def add_path(name, in_dim):
        specs[f"{name}_w1"] = ((100, in_dim), in_dim)
        specs[f"{name}_b1"] = ((100,), in_dim)
        specs[f"{name}_w2"] = ((50, 100), 100)
        specs[f"{name}_b2"] = ((50,), 100)
        specs[f"{name}_w3"] = ((in_dim, 50), 50)
        specs[f"{name}_b3"] = ((in_dim,), 50)

    add_path("p1", W)
    add_path("p2", 2 * W)
    add_path("p3", 3 * W)
    add_path("p6", 6 * W)
    add_path("p7", 7 * W)
    add_path("p10", 10 * W)
    specs["comb_w"] = ((output_dim * W, causal_dim * W), causal_dim * W)
    specs["comb_b"] = ((output_dim * W,), causal_dim * W)

    keys = jax.random.split(key, len(specs))
    params = {}
    for k, (name, (shape, fan_in)) in zip(keys, specs.items()):
        bound = 1.0 / np.sqrt(fan_in)
        params[name] = jax.random.uniform(k, shape, jnp.float32, -bound, bound)
    return params


def reference(x, params, window_size):
    """Pure-JAX mirror of FeatureExtractorCausal.forward (torch layouts)."""
    W = window_size

    def path(h, name):
        h = jnp.maximum(h @ params[f"{name}_w1"].T + params[f"{name}_b1"], 0.0)
        h = jnp.maximum(h @ params[f"{name}_w2"].T + params[f"{name}_b2"], 0.0)
        h = jnp.maximum(h @ params[f"{name}_w3"].T + params[f"{name}_b3"], 0.0)
        return h

    s = lambda i: x[:, i * W:(i + 1) * W]
    N_e, u_main_soi, u_main_qty = s(0), s(1), s(2)
    u_pilot2_soi, u_pilot2_qty, u_post1_soi, u_post1_qty = s(3), s(4), s(5), s(6)
    u_rp, u_vgt, u_egrv, T_egrsys_out = s(7), s(8), s(9), s(10)
    T_intclr_out, W_a, W_egr, InCylO2, T_tur_in = s(11), s(12), s(13), s(14), s(15)

    out1 = path(N_e, "p1")
    out2 = path(u_egrv, "p1")
    out3 = path(u_vgt, "p1")
    out4 = path(jnp.concatenate([out2, W_egr, out3], axis=1), "p3")
    out6 = path(jnp.concatenate([W_a, out3], axis=1), "p2")
    out8 = path(jnp.concatenate([out1, out4, out6, InCylO2], axis=1), "p7")
    out9 = path(u_rp, "p1")
    out10 = path(T_egrsys_out, "p1")
    out11 = path(jnp.concatenate([T_intclr_out, out10], axis=1), "p2")
    out12 = path(jnp.concatenate([u_main_soi, u_main_qty, u_pilot2_soi,
                                  u_pilot2_qty, u_post1_soi, u_post1_qty], axis=1), "p6")
    out13 = path(jnp.concatenate([out9, T_tur_in, out11, out12], axis=1), "p10")
    oc = jnp.concatenate([out8, u_rp, out13, u_main_soi, u_main_qty, u_pilot2_soi,
                          u_pilot2_qty, u_post1_soi, u_post1_qty], axis=1)
    return oc @ params["comb_w"].T + params["comb_b"]


if __name__ == "__main__":
    # causal_dim must be 24: the combine layer consumes the 24*W-wide concat.
    B, WINDOW, CAUSAL_DIM, OUT_DIM = 2, 16, 24, 8
    key = jax.random.PRNGKey(0)
    kx, kp = jax.random.split(key)
    x = jax.random.normal(kx, (B, 16 * WINDOW), jnp.float32)
    params = init_params(kp, WINDOW, CAUSAL_DIM, OUT_DIM)

    out = feature_extractor_causal(x, params, WINDOW, OUT_DIM)
    out = jax.block_until_ready(out)

    ref = reference(x, params, WINDOW)
    np.testing.assert_allclose(np.asarray(out), np.asarray(ref),
                               rtol=1e-4, atol=1e-4)
    print("KERNEL_OK")
</pallas_src>

<mosaic_0001>
module attributes {stable_mosaic.version = 11 : i64} {
  func.func @_fe_kernel(%arg0: i32, %arg1: memref<8x256xf32, #tpu.memory_space<vmem>>, %arg2: memref<16x100xf32, #tpu.memory_space<vmem>>, %arg3: memref<1x100xf32, #tpu.memory_space<vmem>>, %arg4: memref<100x50xf32, #tpu.memory_space<vmem>>, %arg5: memref<1x50xf32, #tpu.memory_space<vmem>>, %arg6: memref<50x16xf32, #tpu.memory_space<vmem>>, %arg7: memref<1x16xf32, #tpu.memory_space<vmem>>, %arg8: memref<32x100xf32, #tpu.memory_space<vmem>>, %arg9: memref<1x100xf32, #tpu.memory_space<vmem>>, %arg10: memref<100x50xf32, #tpu.memory_space<vmem>>, %arg11: memref<1x50xf32, #tpu.memory_space<vmem>>, %arg12: memref<50x32xf32, #tpu.memory_space<vmem>>, %arg13: memref<1x32xf32, #tpu.memory_space<vmem>>, %arg14: memref<48x100xf32, #tpu.memory_space<vmem>>, %arg15: memref<1x100xf32, #tpu.memory_space<vmem>>, %arg16: memref<100x50xf32, #tpu.memory_space<vmem>>, %arg17: memref<1x50xf32, #tpu.memory_space<vmem>>, %arg18: memref<50x48xf32, #tpu.memory_space<vmem>>, %arg19: memref<1x48xf32, #tpu.memory_space<vmem>>, %arg20: memref<96x100xf32, #tpu.memory_space<vmem>>, %arg21: memref<1x100xf32, #tpu.memory_space<vmem>>, %arg22: memref<100x50xf32, #tpu.memory_space<vmem>>, %arg23: memref<1x50xf32, #tpu.memory_space<vmem>>, %arg24: memref<50x96xf32, #tpu.memory_space<vmem>>, %arg25: memref<1x96xf32, #tpu.memory_space<vmem>>, %arg26: memref<112x100xf32, #tpu.memory_space<vmem>>, %arg27: memref<1x100xf32, #tpu.memory_space<vmem>>, %arg28: memref<100x50xf32, #tpu.memory_space<vmem>>, %arg29: memref<1x50xf32, #tpu.memory_space<vmem>>, %arg30: memref<50x112xf32, #tpu.memory_space<vmem>>, %arg31: memref<1x112xf32, #tpu.memory_space<vmem>>, %arg32: memref<160x100xf32, #tpu.memory_space<vmem>>, %arg33: memref<1x100xf32, #tpu.memory_space<vmem>>, %arg34: memref<100x50xf32, #tpu.memory_space<vmem>>, %arg35: memref<1x50xf32, #tpu.memory_space<vmem>>, %arg36: memref<50x160xf32, #tpu.memory_space<vmem>>, %arg37: memref<1x160xf32, #tpu.memory_space<vmem>>, %arg38: memref<384x128xf32, #tpu.memory_space<vmem>>, %arg39: memref<1x128xf32, #tpu.memory_space<vmem>>, %arg40: memref<8x128xf32, #tpu.memory_space<vmem>>) attributes {dimension_semantics = [#tpu.dimension_semantics<parallel>], iteration_bounds = array<i64: 1>, scalar_prefetch = 0 : i64, scratch_operands = 0 : i64, tpu.core_type = #tpu.core_type<tc>, window_params = [{transform_indices = @transform_0, window_bounds = array<i64: 8, 256>}, {pipeline_mode = #tpu.pipeline_mode<synchronous>, transform_indices = @transform_1, window_bounds = array<i64: 16, 100>}, {pipeline_mode = #tpu.pipeline_mode<synchronous>, transform_indices = @transform_2, window_bounds = array<i64: 1, 100>}, {pipeline_mode = #tpu.pipeline_mode<synchronous>, transform_indices = @transform_3, window_bounds = array<i64: 100, 50>}, {pipeline_mode = #tpu.pipeline_mode<synchronous>, transform_indices = @transform_4, window_bounds = array<i64: 1, 50>}, {pipeline_mode = #tpu.pipeline_mode<synchronous>, transform_indices = @transform_5, window_bounds = array<i64: 50, 16>}, {pipeline_mode = #tpu.pipeline_mode<synchronous>, transform_indices = @transform_6, window_bounds = array<i64: 1, 16>}, {pipeline_mode = #tpu.pipeline_mode<synchronous>, transform_indices = @transform_7, window_bounds = array<i64: 32, 100>}, {pipeline_mode = #tpu.pipeline_mode<synchronous>, transform_indices = @transform_8, window_bounds = array<i64: 1, 100>}, {pipeline_mode = #tpu.pipeline_mode<synchronous>, transform_indices = @transform_9, window_bounds = array<i64: 100, 50>}, {pipeline_mode = #tpu.pipeline_mode<synchronous>, transform_indices = @transform_10, window_bounds = array<i64: 1, 50>}, {pipeline_mode = #tpu.pipeline_mode<synchronous>, transform_indices = @transform_11, window_bounds = array<i64: 50, 32>}, {pipeline_mode = #tpu.pipeline_mode<synchronous>, transform_indices = @transform_12, window_bounds = array<i64: 1, 32>}, {pipeline_mode = #tpu.pipeline_mode<synchronous>, transform_indices = @transform_13, window_bounds = array<i64: 48, 100>}, {pipeline_mode = #tpu.pipeline_mode<synchronous>, transform_indices = @transform_14, window_bounds = array<i64: 1, 100>}, {pipeline_mode = #tpu.pipeline_mode<synchronous>, transform_indices = @transform_15, window_bounds = array<i64: 100, 50>}, {pipeline_mode = #tpu.pipeline_mode<synchronous>, transform_indices = @transform_16, window_bounds = array<i64: 1, 50>}, {pipeline_mode = #tpu.pipeline_mode<synchronous>, transform_indices = @transform_17, window_bounds = array<i64: 50, 48>}, {pipeline_mode = #tpu.pipeline_mode<synchronous>, transform_indices = @transform_18, window_bounds = array<i64: 1, 48>}, {pipeline_mode = #tpu.pipeline_mode<synchronous>, transform_indices = @transform_19, window_bounds = array<i64: 96, 100>}, {pipeline_mode = #tpu.pipeline_mode<synchronous>, transform_indices = @transform_20, window_bounds = array<i64: 1, 100>}, {pipeline_mode = #tpu.pipeline_mode<synchronous>, transform_indices = @transform_21, window_bounds = array<i64: 100, 50>}, {pipeline_mode = #tpu.pipeline_mode<synchronous>, transform_indices = @transform_22, window_bounds = array<i64: 1, 50>}, {pipeline_mode = #tpu.pipeline_mode<synchronous>, transform_indices = @transform_23, window_bounds = array<i64: 50, 96>}, {pipeline_mode = #tpu.pipeline_mode<synchronous>, transform_indices = @transform_24, window_bounds = array<i64: 1, 96>}, {pipeline_mode = #tpu.pipeline_mode<synchronous>, transform_indices = @transform_25, window_bounds = array<i64: 112, 100>}, {pipeline_mode = #tpu.pipeline_mode<synchronous>, transform_indices = @transform_26, window_bounds = array<i64: 1, 100>}, {pipeline_mode = #tpu.pipeline_mode<synchronous>, transform_indices = @transform_27, window_bounds = array<i64: 100, 50>}, {pipeline_mode = #tpu.pipeline_mode<synchronous>, transform_indices = @transform_28, window_bounds = array<i64: 1, 50>}, {pipeline_mode = #tpu.pipeline_mode<synchronous>, transform_indices = @transform_29, window_bounds = array<i64: 50, 112>}, {pipeline_mode = #tpu.pipeline_mode<synchronous>, transform_indices = @transform_30, window_bounds = array<i64: 1, 112>}, {pipeline_mode = #tpu.pipeline_mode<synchronous>, transform_indices = @transform_31, window_bounds = array<i64: 160, 100>}, {pipeline_mode = #tpu.pipeline_mode<synchronous>, transform_indices = @transform_32, window_bounds = array<i64: 1, 100>}, {pipeline_mode = #tpu.pipeline_mode<synchronous>, transform_indices = @transform_33, window_bounds = array<i64: 100, 50>}, {pipeline_mode = #tpu.pipeline_mode<synchronous>, transform_indices = @transform_34, window_bounds = array<i64: 1, 50>}, {pipeline_mode = #tpu.pipeline_mode<synchronous>, transform_indices = @transform_35, window_bounds = array<i64: 50, 160>}, {pipeline_mode = #tpu.pipeline_mode<synchronous>, transform_indices = @transform_36, window_bounds = array<i64: 1, 160>}, {pipeline_mode = #tpu.pipeline_mode<synchronous>, transform_indices = @transform_37, window_bounds = array<i64: 384, 128>}, {pipeline_mode = #tpu.pipeline_mode<synchronous>, transform_indices = @transform_38, window_bounds = array<i64: 1, 128>}, {transform_indices = @transform_39, window_bounds = array<i64: 8, 128>}]} {
    %c0 = arith.constant 0 : index
    %c0_0 = arith.constant 0 : index
    %0 = vector.load %arg1[%c0, %c0_0] : memref<8x256xf32, #tpu.memory_space<vmem>>, vector<8x256xf32>
    %1 = vector.extract_strided_slice %0 {offsets = [0, 0], sizes = [8, 16], strides = [1, 1]} : vector<8x256xf32> to vector<8x16xf32>
    %2 = vector.extract_strided_slice %0 {offsets = [0, 112], sizes = [8, 16], strides = [1, 1]} : vector<8x256xf32> to vector<8x16xf32>
    %3 = vector.extract_strided_slice %0 {offsets = [0, 128], sizes = [8, 16], strides = [1, 1]} : vector<8x256xf32> to vector<8x16xf32>
    %4 = vector.extract_strided_slice %0 {offsets = [0, 144], sizes = [8, 16], strides = [1, 1]} : vector<8x256xf32> to vector<8x16xf32>
    %5 = vector.extract_strided_slice %0 {offsets = [0, 160], sizes = [8, 16], strides = [1, 1]} : vector<8x256xf32> to vector<8x16xf32>
    %6 = vector.extract_strided_slice %0 {offsets = [0, 176], sizes = [8, 16], strides = [1, 1]} : vector<8x256xf32> to vector<8x16xf32>
    %7 = vector.extract_strided_slice %0 {offsets = [0, 192], sizes = [8, 16], strides = [1, 1]} : vector<8x256xf32> to vector<8x16xf32>
    %8 = vector.extract_strided_slice %0 {offsets = [0, 208], sizes = [8, 16], strides = [1, 1]} : vector<8x256xf32> to vector<8x16xf32>
    %9 = vector.extract_strided_slice %0 {offsets = [0, 224], sizes = [8, 16], strides = [1, 1]} : vector<8x256xf32> to vector<8x16xf32>
    %10 = vector.extract_strided_slice %0 {offsets = [0, 240], sizes = [8, 16], strides = [1, 1]} : vector<8x256xf32> to vector<8x16xf32>
    %11 = vector.extract_strided_slice %0 {offsets = [0, 16], sizes = [8, 96], strides = [1, 1]} : vector<8x256xf32> to vector<8x96xf32>
    %12 = tpu.concatenate %1, %4, %3, %2, %5 in 0 : vector<8x16xf32>, vector<8x16xf32>, vector<8x16xf32>, vector<8x16xf32>, vector<8x16xf32> -> vector<40x16xf32>
    %c0_1 = arith.constant 0 : index
    %c0_2 = arith.constant 0 : index
    %13 = vector.load %arg2[%c0_1, %c0_2] : memref<16x100xf32, #tpu.memory_space<vmem>>, vector<16x100xf32>
    %cst = arith.constant dense<0.000000e+00> : vector<40x100xf32>
    %14 = tpu.matmul %12, %13, %cst {dimension_numbers = #tpu.dot_dimension_numbers<[1], [0], [0], [1], [0, 0, 1, 1], [], []>} : vector<40x16xf32>, vector<16x100xf32>, vector<40x100xf32> -> vector<40x100xf32>
    %c0_3 = arith.constant 0 : index
    %c0_4 = arith.constant 0 : index
    %15 = vector.load %arg3[%c0_3, %c0_4] : memref<1x100xf32, #tpu.memory_space<vmem>>, vector<1x100xf32>
    %16 = vector.broadcast %15 : vector<1x100xf32> to vector<40x100xf32>
    %17 = arith.addf %14, %16 : vector<40x100xf32>
    %cst_5 = arith.constant 0.000000e+00 : f32
    %18 = vector.broadcast %cst_5 : f32 to vector<40x100xf32>
    %19 = arith.maximumf %17, %18 : vector<40x100xf32>
    %c0_6 = arith.constant 0 : index
    %c0_7 = arith.constant 0 : index
    %20 = vector.load %arg4[%c0_6, %c0_7] : memref<100x50xf32, #tpu.memory_space<vmem>>, vector<100x50xf32>
    %cst_8 = arith.constant dense<0.000000e+00> : vector<40x50xf32>
    %21 = tpu.matmul %19, %20, %cst_8 {dimension_numbers = #tpu.dot_dimension_numbers<[1], [0], [0], [1], [0, 0, 1, 1], [], []>} : vector<40x100xf32>, vector<100x50xf32>, vector<40x50xf32> -> vector<40x50xf32>
    %c0_9 = arith.constant 0 : index
    %c0_10 = arith.constant 0 : index
    %22 = vector.load %arg5[%c0_9, %c0_10] : memref<1x50xf32, #tpu.memory_space<vmem>>, vector<1x50xf32>
    %23 = vector.broadcast %22 : vector<1x50xf32> to vector<40x50xf32>
    %24 = arith.addf %21, %23 : vector<40x50xf32>
    %cst_11 = arith.constant 0.000000e+00 : f32
    %25 = vector.broadcast %cst_11 : f32 to vector<40x50xf32>
    %26 = arith.maximumf %24, %25 : vector<40x50xf32>
    %c0_12 = arith.constant 0 : index
    %c0_13 = arith.constant 0 : index
    %27 = vector.load %arg6[%c0_12, %c0_13] : memref<50x16xf32, #tpu.memory_space<vmem>>, vector<50x16xf32>
    %cst_14 = arith.constant dense<0.000000e+00> : vector<40x16xf32>
    %28 = tpu.matmul %26, %27, %cst_14 {dimension_numbers = #tpu.dot_dimension_numbers<[1], [0], [0], [1], [0, 0, 1, 1], [], []>} : vector<40x50xf32>, vector<50x16xf32>, vector<40x16xf32> -> vector<40x16xf32>
    %c0_15 = arith.constant 0 : index
    %c0_16 = arith.constant 0 : index
    %29 = vector.load %arg7[%c0_15, %c0_16] : memref<1x16xf32, #tpu.memory_space<vmem>>, vector<1x16xf32>
    %30 = vector.broadcast %29 : vector<1x16xf32> to vector<40x16xf32>
    %31 = arith.addf %28, %30 : vector<40x16xf32>
    %cst_17 = arith.constant 0.000000e+00 : f32
    %32 = vector.broadcast %cst_17 : f32 to vector<40x16xf32>
    %33 = arith.maximumf %31, %32 : vector<40x16xf32>
    %34 = vector.extract_strided_slice %33 {offsets = [0, 0], sizes = [8, 16], strides = [1, 1]} : vector<40x16xf32> to vector<8x16xf32>
    %35 = vector.extract_strided_slice %33 {offsets = [8, 0], sizes = [8, 16], strides = [1, 1]} : vector<40x16xf32> to vector<8x16xf32>
    %36 = vector.extract_strided_slice %33 {offsets = [16, 0], sizes = [8, 16], strides = [1, 1]} : vector<40x16xf32> to vector<8x16xf32>
    %37 = vector.extract_strided_slice %33 {offsets = [24, 0], sizes = [8, 16], strides = [1, 1]} : vector<40x16xf32> to vector<8x16xf32>
    %38 = vector.extract_strided_slice %33 {offsets = [32, 0], sizes = [8, 16], strides = [1, 1]} : vector<40x16xf32> to vector<8x16xf32>
    %39 = tpu.concatenate %35, %8, %36 in 1 : vector<8x16xf32>, vector<8x16xf32>, vector<8x16xf32> -> vector<8x48xf32>
    %c0_18 = arith.constant 0 : index
    %c0_19 = arith.constant 0 : index
    %40 = vector.load %arg14[%c0_18, %c0_19] : memref<48x100xf32, #tpu.memory_space<vmem>>, vector<48x100xf32>
    %cst_20 = arith.constant dense<0.000000e+00> : vector<8x100xf32>
    %41 = tpu.matmul %39, %40, %cst_20 {dimension_numbers = #tpu.dot_dimension_numbers<[1], [0], [0], [1], [0, 0, 1, 1], [], []>} : vector<8x48xf32>, vector<48x100xf32>, vector<8x100xf32> -> vector<8x100xf32>
    %c0_21 = arith.constant 0 : index
    %c0_22 = arith.constant 0 : index
    %42 = vector.load %arg15[%c0_21, %c0_22] : memref<1x100xf32, #tpu.memory_space<vmem>>, vector<1x100xf32>
    %43 = vector.broadcast %42 : vector<1x100xf32> to vector<8x100xf32>
    %44 = arith.addf %41, %43 : vector<8x100xf32>
    %cst_23 = arith.constant 0.000000e+00 : f32
    %45 = vector.broadcast %cst_23 : f32 to vector<8x100xf32>
    %46 = arith.maximumf %44, %45 : vector<8x100xf32>
    %c0_24 = arith.constant 0 : index
    %c0_25 = arith.constant 0 : index
    %47 = vector.load %arg16[%c0_24, %c0_25] : memref<100x50xf32, #tpu.memory_space<vmem>>, vector<100x50xf32>
    %cst_26 = arith.constant dense<0.000000e+00> : vector<8x50xf32>
    %48 = tpu.matmul %46, %47, %cst_26 {dimension_numbers = #tpu.dot_dimension_numbers<[1], [0], [0], [1], [0, 0, 1, 1], [], []>} : vector<8x100xf32>, vector<100x50xf32>, vector<8x50xf32> -> vector<8x50xf32>
    %c0_27 = arith.constant 0 : index
    %c0_28 = arith.constant 0 : index
    %49 = vector.load %arg17[%c0_27, %c0_28] : memref<1x50xf32, #tpu.memory_space<vmem>>, vector<1x50xf32>
    %50 = vector.broadcast %49 : vector<1x50xf32> to vector<8x50xf32>
    %51 = arith.addf %48, %50 : vector<8x50xf32>
    %cst_29 = arith.constant 0.000000e+00 : f32
    %52 = vector.broadcast %cst_29 : f32 to vector<8x50xf32>
    %53 = arith.maximumf %51, %52 : vector<8x50xf32>
    %c0_30 = arith.constant 0 : index
    %c0_31 = arith.constant 0 : index
    %54 = vector.load %arg18[%c0_30, %c0_31] : memref<50x48xf32, #tpu.memory_space<vmem>>, vector<50x48xf32>
    %cst_32 = arith.constant dense<0.000000e+00> : vector<8x48xf32>
    %55 = tpu.matmul %53, %54, %cst_32 {dimension_numbers = #tpu.dot_dimension_numbers<[1], [0], [0], [1], [0, 0, 1, 1], [], []>} : vector<8x50xf32>, vector<50x48xf32>, vector<8x48xf32> -> vector<8x48xf32>
    %c0_33 = arith.constant 0 : index
    %c0_34 = arith.constant 0 : index
    %56 = vector.load %arg19[%c0_33, %c0_34] : memref<1x48xf32, #tpu.memory_space<vmem>>, vector<1x48xf32>
    %57 = vector.broadcast %56 : vector<1x48xf32> to vector<8x48xf32>
    %58 = arith.addf %55, %57 : vector<8x48xf32>
    %cst_35 = arith.constant 0.000000e+00 : f32
    %59 = vector.broadcast %cst_35 : f32 to vector<8x48xf32>
    %60 = arith.maximumf %58, %59 : vector<8x48xf32>
    %c0_36 = arith.constant 0 : index
    %c0_37 = arith.constant 0 : index
    %61 = vector.load %arg20[%c0_36, %c0_37] : memref<96x100xf32, #tpu.memory_space<vmem>>, vector<96x100xf32>
    %cst_38 = arith.constant dense<0.000000e+00> : vector<8x100xf32>
    %62 = tpu.matmul %11, %61, %cst_38 {dimension_numbers = #tpu.dot_dimension_numbers<[1], [0], [0], [1], [0, 0, 1, 1], [], []>} : vector<8x96xf32>, vector<96x100xf32>, vector<8x100xf32> -> vector<8x100xf32>
    %c0_39 = arith.constant 0 : index
    %c0_40 = arith.constant 0 : index
    %63 = vector.load %arg21[%c0_39, %c0_40] : memref<1x100xf32, #tpu.memory_space<vmem>>, vector<1x100xf32>
    %64 = vector.broadcast %63 : vector<1x100xf32> to vector<8x100xf32>
    %65 = arith.addf %62, %64 : vector<8x100xf32>
    %cst_41 = arith.constant 0.000000e+00 : f32
    %66 = vector.broadcast %cst_41 : f32 to vector<8x100xf32>
    %67 = arith.maximumf %65, %66 : vector<8x100xf32>
    %c0_42 = arith.constant 0 : index
    %c0_43 = arith.constant 0 : index
    %68 = vector.load %arg22[%c0_42, %c0_43] : memref<100x50xf32, #tpu.memory_space<vmem>>, vector<100x50xf32>
    %cst_44 = arith.constant dense<0.000000e+00> : vector<8x50xf32>
    %69 = tpu.matmul %67, %68, %cst_44 {dimension_numbers = #tpu.dot_dimension_numbers<[1], [0], [0], [1], [0, 0, 1, 1], [], []>} : vector<8x100xf32>, vector<100x50xf32>, vector<8x50xf32> -> vector<8x50xf32>
    %c0_45 = arith.constant 0 : index
    %c0_46 = arith.constant 0 : index
    %70 = vector.load %arg23[%c0_45, %c0_46] : memref<1x50xf32, #tpu.memory_space<vmem>>, vector<1x50xf32>
    %71 = vector.broadcast %70 : vector<1x50xf32> to vector<8x50xf32>
    %72 = arith.addf %69, %71 : vector<8x50xf32>
    %cst_47 = arith.constant 0.000000e+00 : f32
    %73 = vector.broadcast %cst_47 : f32 to vector<8x50xf32>
    %74 = arith.maximumf %72, %73 : vector<8x50xf32>
    %c0_48 = arith.constant 0 : index
    %c0_49 = arith.constant 0 : index
    %75 = vector.load %arg24[%c0_48, %c0_49] : memref<50x96xf32, #tpu.memory_space<vmem>>, vector<50x96xf32>
    %cst_50 = arith.constant dense<0.000000e+00> : vector<8x96xf32>
    %76 = tpu.matmul %74, %75, %cst_50 {dimension_numbers = #tpu.dot_dimension_numbers<[1], [0], [0], [1], [0, 0, 1, 1], [], []>} : vector<8x50xf32>, vector<50x96xf32>, vector<8x96xf32> -> vector<8x96xf32>
    %c0_51 = arith.constant 0 : index
    %c0_52 = arith.constant 0 : index
    %77 = vector.load %arg25[%c0_51, %c0_52] : memref<1x96xf32, #tpu.memory_space<vmem>>, vector<1x96xf32>
    %78 = vector.broadcast %77 : vector<1x96xf32> to vector<8x96xf32>
    %79 = arith.addf %76, %78 : vector<8x96xf32>
    %cst_53 = arith.constant 0.000000e+00 : f32
    %80 = vector.broadcast %cst_53 : f32 to vector<8x96xf32>
    %81 = arith.maximumf %79, %80 : vector<8x96xf32>
    %82 = tpu.concatenate %7, %36 in 1 : vector<8x16xf32>, vector<8x16xf32> -> vector<8x32xf32>
    %83 = tpu.concatenate %6, %38 in 1 : vector<8x16xf32>, vector<8x16xf32> -> vector<8x32xf32>
    %84 = tpu.concatenate %82, %83 in 0 : vector<8x32xf32>, vector<8x32xf32> -> vector<16x32xf32>
    %c0_54 = arith.constant 0 : index
    %c0_55 = arith.constant 0 : index
    %85 = vector.load %arg8[%c0_54, %c0_55] : memref<32x100xf32, #tpu.memory_space<vmem>>, vector<32x100xf32>
    %cst_56 = arith.constant dense<0.000000e+00> : vector<16x100xf32>
    %86 = tpu.matmul %84, %85, %cst_56 {dimension_numbers = #tpu.dot_dimension_numbers<[1], [0], [0], [1], [0, 0, 1, 1], [], []>} : vector<16x32xf32>, vector<32x100xf32>, vector<16x100xf32> -> vector<16x100xf32>
    %c0_57 = arith.constant 0 : index
    %c0_58 = arith.constant 0 : index
    %87 = vector.load %arg9[%c0_57, %c0_58] : memref<1x100xf32, #tpu.memory_space<vmem>>, vector<1x100xf32>
    %88 = vector.broadcast %87 : vector<1x100xf32> to vector<16x100xf32>
    %89 = arith.addf %86, %88 : vector<16x100xf32>
    %cst_59 = arith.constant 0.000000e+00 : f32
    %90 = vector.broadcast %cst_59 : f32 to vector<16x100xf32>
    %91 = arith.maximumf %89, %90 : vector<16x100xf32>
    %c0_60 = arith.constant 0 : index
    %c0_61 = arith.constant 0 : index
    %92 = vector.load %arg10[%c0_60, %c0_61] : memref<100x50xf32, #tpu.memory_space<vmem>>, vector<100x50xf32>
    %cst_62 = arith.constant dense<0.000000e+00> : vector<16x50xf32>
    %93 = tpu.matmul %91, %92, %cst_62 {dimension_numbers = #tpu.dot_dimension_numbers<[1], [0], [0], [1], [0, 0, 1, 1], [], []>} : vector<16x100xf32>, vector<100x50xf32>, vector<16x50xf32> -> vector<16x50xf32>
    %c0_63 = arith.constant 0 : index
    %c0_64 = arith.constant 0 : index
    %94 = vector.load %arg11[%c0_63, %c0_64] : memref<1x50xf32, #tpu.memory_space<vmem>>, vector<1x50xf32>
    %95 = vector.broadcast %94 : vector<1x50xf32> to vector<16x50xf32>
    %96 = arith.addf %93, %95 : vector<16x50xf32>
    %cst_65 = arith.constant 0.000000e+00 : f32
    %97 = vector.broadcast %cst_65 : f32 to vector<16x50xf32>
    %98 = arith.maximumf %96, %97 : vector<16x50xf32>
    %c0_66 = arith.constant 0 : index
    %c0_67 = arith.constant 0 : index
    %99 = vector.load %arg12[%c0_66, %c0_67] : memref<50x32xf32, #tpu.memory_space<vmem>>, vector<50x32xf32>
    %cst_68 = arith.constant dense<0.000000e+00> : vector<16x32xf32>
    %100 = tpu.matmul %98, %99, %cst_68 {dimension_numbers = #tpu.dot_dimension_numbers<[1], [0], [0], [1], [0, 0, 1, 1], [], []>} : vector<16x50xf32>, vector<50x32xf32>, vector<16x32xf32> -> vector<16x32xf32>
    %c0_69 = arith.constant 0 : index
    %c0_70 = arith.constant 0 : index
    %101 = vector.load %arg13[%c0_69, %c0_70] : memref<1x32xf32, #tpu.memory_space<vmem>>, vector<1x32xf32>
    %102 = vector.broadcast %101 : vector<1x32xf32> to vector<16x32xf32>
    %103 = arith.addf %100, %102 : vector<16x32xf32>
    %cst_71 = arith.constant 0.000000e+00 : f32
    %104 = vector.broadcast %cst_71 : f32 to vector<16x32xf32>
    %105 = arith.maximumf %103, %104 : vector<16x32xf32>
    %106 = vector.extract_strided_slice %105 {offsets = [0, 0], sizes = [8, 32], strides = [1, 1]} : vector<16x32xf32> to vector<8x32xf32>
    %107 = vector.extract_strided_slice %105 {offsets = [8, 0], sizes = [8, 32], strides = [1, 1]} : vector<16x32xf32> to vector<8x32xf32>
    %108 = tpu.concatenate %34, %60, %106, %9 in 1 : vector<8x16xf32>, vector<8x48xf32>, vector<8x32xf32>, vector<8x16xf32> -> vector<8x112xf32>
    %c0_72 = arith.constant 0 : index
    %c0_73 = arith.constant 0 : index
    %109 = vector.load %arg26[%c0_72, %c0_73] : memref<112x100xf32, #tpu.memory_space<vmem>>, vector<112x100xf32>
    %cst_74 = arith.constant dense<0.000000e+00> : vector<8x100xf32>
    %110 = tpu.matmul %108, %109, %cst_74 {dimension_numbers = #tpu.dot_dimension_numbers<[1], [0], [0], [1], [0, 0, 1, 1], [], []>} : vector<8x112xf32>, vector<112x100xf32>, vector<8x100xf32> -> vector<8x100xf32>
    %c0_75 = arith.constant 0 : index
    %c0_76 = arith.constant 0 : index
    %111 = vector.load %arg27[%c0_75, %c0_76] : memref<1x100xf32, #tpu.memory_space<vmem>>, vector<1x100xf32>
    %112 = vector.broadcast %111 : vector<1x100xf32> to vector<8x100xf32>
    %113 = arith.addf %110, %112 : vector<8x100xf32>
    %cst_77 = arith.constant 0.000000e+00 : f32
    %114 = vector.broadcast %cst_77 : f32 to vector<8x100xf32>
    %115 = arith.maximumf %113, %114 : vector<8x100xf32>
    %c0_78 = arith.constant 0 : index
    %c0_79 = arith.constant 0 : index
    %116 = vector.load %arg28[%c0_78, %c0_79] : memref<100x50xf32, #tpu.memory_space<vmem>>, vector<100x50xf32>
    %cst_80 = arith.constant dense<0.000000e+00> : vector<8x50xf32>
    %117 = tpu.matmul %115, %116, %cst_80 {dimension_numbers = #tpu.dot_dimension_numbers<[1], [0], [0], [1], [0, 0, 1, 1], [], []>} : vector<8x100xf32>, vector<100x50xf32>, vector<8x50xf32> -> vector<8x50xf32>
    %c0_81 = arith.constant 0 : index
    %c0_82 = arith.constant 0 : index
    %118 = vector.load %arg29[%c0_81, %c0_82] : memref<1x50xf32, #tpu.memory_space<vmem>>, vector<1x50xf32>
    %119 = vector.broadcast %118 : vector<1x50xf32> to vector<8x50xf32>
    %120 = arith.addf %117, %119 : vector<8x50xf32>
    %cst_83 = arith.constant 0.000000e+00 : f32
    %121 = vector.broadcast %cst_83 : f32 to vector<8x50xf32>
    %122 = arith.maximumf %120, %121 : vector<8x50xf32>
    %c0_84 = arith.constant 0 : index
    %c0_85 = arith.constant 0 : index
    %123 = vector.load %arg30[%c0_84, %c0_85] : memref<50x112xf32, #tpu.memory_space<vmem>>, vector<50x112xf32>
    %cst_86 = arith.constant dense<0.000000e+00> : vector<8x112xf32>
    %124 = tpu.matmul %122, %123, %cst_86 {dimension_numbers = #tpu.dot_dimension_numbers<[1], [0], [0], [1], [0, 0, 1, 1], [], []>} : vector<8x50xf32>, vector<50x112xf32>, vector<8x112xf32> -> vector<8x112xf32>
    %c0_87 = arith.constant 0 : index
    %c0_88 = arith.constant 0 : index
    %125 = vector.load %arg31[%c0_87, %c0_88] : memref<1x112xf32, #tpu.memory_space<vmem>>, vector<1x112xf32>
    %126 = vector.broadcast %125 : vector<1x112xf32> to vector<8x112xf32>
    %127 = arith.addf %124, %126 : vector<8x112xf32>
    %cst_89 = arith.constant 0.000000e+00 : f32
    %128 = vector.broadcast %cst_89 : f32 to vector<8x112xf32>
    %129 = arith.maximumf %127, %128 : vector<8x112xf32>
    %130 = tpu.concatenate %37, %10, %107, %81 in 1 : vector<8x16xf32>, vector<8x16xf32>, vector<8x32xf32>, vector<8x96xf32> -> vector<8x160xf32>
    %c0_90 = arith.constant 0 : index
    %c0_91 = arith.constant 0 : index
    %131 = vector.load %arg32[%c0_90, %c0_91] : memref<160x100xf32, #tpu.memory_space<vmem>>, vector<160x100xf32>
    %cst_92 = arith.constant dense<0.000000e+00> : vector<8x100xf32>
    %132 = tpu.matmul %130, %131, %cst_92 {dimension_numbers = #tpu.dot_dimension_numbers<[1], [0], [0], [1], [0, 0, 1, 1], [], []>} : vector<8x160xf32>, vector<160x100xf32>, vector<8x100xf32> -> vector<8x100xf32>
    %c0_93 = arith.constant 0 : index
    %c0_94 = arith.constant 0 : index
    %133 = vector.load %arg33[%c0_93, %c0_94] : memref<1x100xf32, #tpu.memory_space<vmem>>, vector<1x100xf32>
    %134 = vector.broadcast %133 : vector<1x100xf32> to vector<8x100xf32>
    %135 = arith.addf %132, %134 : vector<8x100xf32>
    %cst_95 = arith.constant 0.000000e+00 : f32
    %136 = vector.broadcast %cst_95 : f32 to vector<8x100xf32>
    %137 = arith.maximumf %135, %136 : vector<8x100xf32>
    %c0_96 = arith.constant 0 : index
    %c0_97 = arith.constant 0 : index
    %138 = vector.load %arg34[%c0_96, %c0_97] : memref<100x50xf32, #tpu.memory_space<vmem>>, vector<100x50xf32>
    %cst_98 = arith.constant dense<0.000000e+00> : vector<8x50xf32>
    %139 = tpu.matmul %137, %138, %cst_98 {dimension_numbers = #tpu.dot_dimension_numbers<[1], [0], [0], [1], [0, 0, 1, 1], [], []>} : vector<8x100xf32>, vector<100x50xf32>, vector<8x50xf32> -> vector<8x50xf32>
    %c0_99 = arith.constant 0 : index
    %c0_100 = arith.constant 0 : index
    %140 = vector.load %arg35[%c0_99, %c0_100] : memref<1x50xf32, #tpu.memory_space<vmem>>, vector<1x50xf32>
    %141 = vector.broadcast %140 : vector<1x50xf32> to vector<8x50xf32>
    %142 = arith.addf %139, %141 : vector<8x50xf32>
    %cst_101 = arith.constant 0.000000e+00 : f32
    %143 = vector.broadcast %cst_101 : f32 to vector<8x50xf32>
    %144 = arith.maximumf %142, %143 : vector<8x50xf32>
    %c0_102 = arith.constant 0 : index
    %c0_103 = arith.constant 0 : index
    %145 = vector.load %arg36[%c0_102, %c0_103] : memref<50x160xf32, #tpu.memory_space<vmem>>, vector<50x160xf32>
    %cst_104 = arith.constant dense<0.000000e+00> : vector<8x160xf32>
    %146 = tpu.matmul %144, %145, %cst_104 {dimension_numbers = #tpu.dot_dimension_numbers<[1], [0], [0], [1], [0, 0, 1, 1], [], []>} : vector<8x50xf32>, vector<50x160xf32>, vector<8x160xf32> -> vector<8x160xf32>
    %c0_105 = arith.constant 0 : index
    %c0_106 = arith.constant 0 : index
    %147 = vector.load %arg37[%c0_105, %c0_106] : memref<1x160xf32, #tpu.memory_space<vmem>>, vector<1x160xf32>
    %148 = vector.broadcast %147 : vector<1x160xf32> to vector<8x160xf32>
    %149 = arith.addf %146, %148 : vector<8x160xf32>
    %cst_107 = arith.constant 0.000000e+00 : f32
    %150 = vector.broadcast %cst_107 : f32 to vector<8x160xf32>
    %151 = arith.maximumf %149, %150 : vector<8x160xf32>
    %152 = tpu.concatenate %129, %2, %151, %11 in 1 : vector<8x112xf32>, vector<8x16xf32>, vector<8x160xf32>, vector<8x96xf32> -> vector<8x384xf32>
    %c0_108 = arith.constant 0 : index
    %c0_109 = arith.constant 0 : index
    %153 = vector.load %arg38[%c0_108, %c0_109] : memref<384x128xf32, #tpu.memory_space<vmem>>, vector<384x128xf32>
    %cst_110 = arith.constant dense<0.000000e+00> : vector<8x128xf32>
    %154 = tpu.matmul %152, %153, %cst_110 {dimension_numbers = #tpu.dot_dimension_numbers<[1], [0], [0], [1], [0, 0, 1, 1], [], []>} : vector<8x384xf32>, vector<384x128xf32>, vector<8x128xf32> -> vector<8x128xf32>
    %c0_111 = arith.constant 0 : index
    %c0_112 = arith.constant 0 : index
    %155 = vector.load %arg39[%c0_111, %c0_112] : memref<1x128xf32, #tpu.memory_space<vmem>>, vector<1x128xf32>
    %156 = vector.broadcast %155 : vector<1x128xf32> to vector<8x128xf32>
    %157 = arith.addf %154, %156 : vector<8x128xf32>
    %c0_113 = arith.constant 0 : index
    %c0_114 = arith.constant 0 : index
    %158 = vector.load %arg40[%c0_113, %c0_114] : memref<8x128xf32, #tpu.memory_space<vmem>>, vector<8x128xf32>
    tpu.vector_store %arg40[%c0_113, %c0_114], %157 {strides = array<i32>} : memref<8x128xf32, #tpu.memory_space<vmem>>, vector<8x128xf32>,
    return
  }
  func.func @transform_0(%arg0: i32) -> (i32, i32) {
    %c0_i32 = arith.constant 0 : i32
    %c0_i32_0 = arith.constant 0 : i32
    return %arg0, %c0_i32 : i32, i32
  }
  func.func @transform_1(%arg0: i32) -> (i32, i32) {
    %c0_i32 = arith.constant 0 : i32
    %c0_i32_0 = arith.constant 0 : i32
    %c0_i32_1 = arith.constant 0 : i32
    return %c0_i32, %c0_i32_0 : i32, i32
  }
  func.func @transform_2(%arg0: i32) -> (i32, i32) {
    %c0_i32 = arith.constant 0 : i32
    %c0_i32_0 = arith.constant 0 : i32
    %c0_i32_1 = arith.constant 0 : i32
    return %c0_i32, %c0_i32_0 : i32, i32
  }
  func.func @transform_3(%arg0: i32) -> (i32, i32) {
    %c0_i32 = arith.constant 0 : i32
    %c0_i32_0 = arith.constant 0 : i32
    %c0_i32_1 = arith.constant 0 : i32
    return %c0_i32, %c0_i32_0 : i32, i32
  }
  func.func @transform_4(%arg0: i32) -> (i32, i32) {
    %c0_i32 = arith.constant 0 : i32
    %c0_i32_0 = arith.constant 0 : i32
    %c0_i32_1 = arith.constant 0 : i32
    return %c0_i32, %c0_i32_0 : i32, i32
  }
  func.func @transform_5(%arg0: i32) -> (i32, i32) {
    %c0_i32 = arith.constant 0 : i32
    %c0_i32_0 = arith.constant 0 : i32
    %c0_i32_1 = arith.constant 0 : i32
    return %c0_i32, %c0_i32_0 : i32, i32
  }
  func.func @transform_6(%arg0: i32) -> (i32, i32) {
    %c0_i32 = arith.constant 0 : i32
    %c0_i32_0 = arith.constant 0 : i32
    %c0_i32_1 = arith.constant 0 : i32
    return %c0_i32, %c0_i32_0 : i32, i32
  }
  func.func @transform_7(%arg0: i32) -> (i32, i32) {
    %c0_i32 = arith.constant 0 : i32
    %c0_i32_0 = arith.constant 0 : i32
    %c0_i32_1 = arith.constant 0 : i32
    return %c0_i32, %c0_i32_0 : i32, i32
  }
  func.func @transform_8(%arg0: i32) -> (i32, i32) {
    %c0_i32 = arith.constant 0 : i32
    %c0_i32_0 = arith.constant 0 : i32
    %c0_i32_1 = arith.constant 0 : i32
    return %c0_i32, %c0_i32_0 : i32, i32
  }
  func.func @transform_9(%arg0: i32) -> (i32, i32) {
    %c0_i32 = arith.constant 0 : i32
    %c0_i32_0 = arith.constant 0 : i32
    %c0_i32_1 = arith.constant 0 : i32
    return %c0_i32, %c0_i32_0 : i32, i32
  }
  func.func @transform_10(%arg0: i32) -> (i32, i32) {
    %c0_i32 = arith.constant 0 : i32
    %c0_i32_0 = arith.constant 0 : i32
    %c0_i32_1 = arith.constant 0 : i32
    return %c0_i32, %c0_i32_0 : i32, i32
  }
  func.func @transform_11(%arg0: i32) -> (i32, i32) {
    %c0_i32 = arith.constant 0 : i32
    %c0_i32_0 = arith.constant 0 : i32
    %c0_i32_1 = arith.constant 0 : i32
    return %c0_i32, %c0_i32_0 : i32, i32
  }
  func.func @transform_12(%arg0: i32) -> (i32, i32) {
    %c0_i32 = arith.constant 0 : i32
    %c0_i32_0 = arith.constant 0 : i32
    %c0_i32_1 = arith.constant 0 : i32
    return %c0_i32, %c0_i32_0 : i32, i32
  }
  func.func @transform_13(%arg0: i32) -> (i32, i32) {
    %c0_i32 = arith.constant 0 : i32
    %c0_i32_0 = arith.constant 0 : i32
    %c0_i32_1 = arith.constant 0 : i32
    return %c0_i32, %c0_i32_0 : i32, i32
  }
  func.func @transform_14(%arg0: i32) -> (i32, i32) {
    %c0_i32 = arith.constant 0 : i32
    %c0_i32_0 = arith.constant 0 : i32
    %c0_i32_1 = arith.constant 0 : i32
    return %c0_i32, %c0_i32_0 : i32, i32
  }
  func.func @transform_15(%arg0: i32) -> (i32, i32) {
    %c0_i32 = arith.constant 0 : i32
    %c0_i32_0 = arith.constant 0 : i32
    %c0_i32_1 = arith.constant 0 : i32
    return %c0_i32, %c0_i32_0 : i32, i32
  }
  func.func @transform_16(%arg0: i32) -> (i32, i32) {
    %c0_i32 = arith.constant 0 : i32
    %c0_i32_0 = arith.constant 0 : i32
    %c0_i32_1 = arith.constant 0 : i32
    return %c0_i32, %c0_i32_0 : i32, i32
  }
  func.func @transform_17(%arg0: i32) -> (i32, i32) {
    %c0_i32 = arith.constant 0 : i32
    %c0_i32_0 = arith.constant 0 : i32
    %c0_i32_1 = arith.constant 0 : i32
    return %c0_i32, %c0_i32_0 : i32, i32
  }
  func.func @transform_18(%arg0: i32) -> (i32, i32) {
    %c0_i32 = arith.constant 0 : i32
    %c0_i32_0 = arith.constant 0 : i32
    %c0_i32_1 = arith.constant 0 : i32
    return %c0_i32, %c0_i32_0 : i32, i32
  }
  func.func @transform_19(%arg0: i32) -> (i32, i32) {
    %c0_i32 = arith.constant 0 : i32
    %c0_i32_0 = arith.constant 0 : i32
    %c0_i32_1 = arith.constant 0 : i32
    return %c0_i32, %c0_i32_0 : i32, i32
  }
  func.func @transform_20(%arg0: i32) -> (i32, i32) {
    %c0_i32 = arith.constant 0 : i32
    %c0_i32_0 = arith.constant 0 : i32
    %c0_i32_1 = arith.constant 0 : i32
    return %c0_i32, %c0_i32_0 : i32, i32
  }
  func.func @transform_21(%arg0: i32) -> (i32, i32) {
    %c0_i32 = arith.constant 0 : i32
    %c0_i32_0 = arith.constant 0 : i32
    %c0_i32_1 = arith.constant 0 : i32
    return %c0_i32, %c0_i32_0 : i32, i32
  }
  func.func @transform_22(%arg0: i32) -> (i32, i32) {
    %c0_i32 = arith.constant 0 : i32
    %c0_i32_0 = arith.constant 0 : i32
    %c0_i32_1 = arith.constant 0 : i32
    return %c0_i32, %c0_i32_0 : i32, i32
  }
  func.func @transform_23(%arg0: i32) -> (i32, i32) {
    %c0_i32 = arith.constant 0 : i32
    %c0_i32_0 = arith.constant 0 : i32
    %c0_i32_1 = arith.constant 0 : i32
    return %c0_i32, %c0_i32_0 : i32, i32
  }
  func.func @transform_24(%arg0: i32) -> (i32, i32) {
    %c0_i32 = arith.constant 0 : i32
    %c0_i32_0 = arith.constant 0 : i32
    %c0_i32_1 = arith.constant 0 : i32
    return %c0_i32, %c0_i32_0 : i32, i32
  }
  func.func @transform_25(%arg0: i32) -> (i32, i32) {
    %c0_i32 = arith.constant 0 : i32
    %c0_i32_0 = arith.constant 0 : i32
    %c0_i32_1 = arith.constant 0 : i32
    return %c0_i32, %c0_i32_0 : i32, i32
  }
  func.func @transform_26(%arg0: i32) -> (i32, i32) {
    %c0_i32 = arith.constant 0 : i32
    %c0_i32_0 = arith.constant 0 : i32
    %c0_i32_1 = arith.constant 0 : i32
    return %c0_i32, %c0_i32_0 : i32, i32
  }
  func.func @transform_27(%arg0: i32) -> (i32, i32) {
    %c0_i32 = arith.constant 0 : i32
    %c0_i32_0 = arith.constant 0 : i32
    %c0_i32_1 = arith.constant 0 : i32
    return %c0_i32, %c0_i32_0 : i32, i32
  }
  func.func @transform_28(%arg0: i32) -> (i32, i32) {
    %c0_i32 = arith.constant 0 : i32
    %c0_i32_0 = arith.constant 0 : i32
    %c0_i32_1 = arith.constant 0 : i32
    return %c0_i32, %c0_i32_0 : i32, i32
  }
  func.func @transform_29(%arg0: i32) -> (i32, i32) {
    %c0_i32 = arith.constant 0 : i32
    %c0_i32_0 = arith.constant 0 : i32
    %c0_i32_1 = arith.constant 0 : i32
    return %c0_i32, %c0_i32_0 : i32, i32
  }
  func.func @transform_30(%arg0: i32) -> (i32, i32) {
    %c0_i32 = arith.constant 0 : i32
    %c0_i32_0 = arith.constant 0 : i32
    %c0_i32_1 = arith.constant 0 : i32
    return %c0_i32, %c0_i32_0 : i32, i32
  }
  func.func @transform_31(%arg0: i32) -> (i32, i32) {
    %c0_i32 = arith.constant 0 : i32
    %c0_i32_0 = arith.constant 0 : i32
    %c0_i32_1 = arith.constant 0 : i32
    return %c0_i32, %c0_i32_0 : i32, i32
  }
  func.func @transform_32(%arg0: i32) -> (i32, i32) {
    %c0_i32 = arith.constant 0 : i32
    %c0_i32_0 = arith.constant 0 : i32
    %c0_i32_1 = arith.constant 0 : i32
    return %c0_i32, %c0_i32_0 : i32, i32
  }
  func.func @transform_33(%arg0: i32) -> (i32, i32) {
    %c0_i32 = arith.constant 0 : i32
    %c0_i32_0 = arith.constant 0 : i32
    %c0_i32_1 = arith.constant 0 : i32
    return %c0_i32, %c0_i32_0 : i32, i32
  }
  func.func @transform_34(%arg0: i32) -> (i32, i32) {
    %c0_i32 = arith.constant 0 : i32
    %c0_i32_0 = arith.constant 0 : i32
    %c0_i32_1 = arith.constant 0 : i32
    return %c0_i32, %c0_i32_0 : i32, i32
  }
  func.func @transform_35(%arg0: i32) -> (i32, i32) {
    %c0_i32 = arith.constant 0 : i32
    %c0_i32_0 = arith.constant 0 : i32
    %c0_i32_1 = arith.constant 0 : i32
    return %c0_i32, %c0_i32_0 : i32, i32
  }
  func.func @transform_36(%arg0: i32) -> (i32, i32) {
    %c0_i32 = arith.constant 0 : i32
    %c0_i32_0 = arith.constant 0 : i32
    %c0_i32_1 = arith.constant 0 : i32
    return %c0_i32, %c0_i32_0 : i32, i32
  }
  func.func @transform_37(%arg0: i32) -> (i32, i32) {
    %c0_i32 = arith.constant 0 : i32
    %c0_i32_0 = arith.constant 0 : i32
    %c0_i32_1 = arith.constant 0 : i32
    return %c0_i32, %c0_i32_0 : i32, i32
  }
  func.func @transform_38(%arg0: i32) -> (i32, i32) {
    %c0_i32 = arith.constant 0 : i32
    %c0_i32_0 = arith.constant 0 : i32
    %c0_i32_1 = arith.constant 0 : i32
    return %c0_i32, %c0_i32_0 : i32, i32
  }
  func.func @transform_39(%arg0: i32) -> (i32, i32) {
    %c0_i32 = arith.constant 0 : i32
    %c0_i32_0 = arith.constant 0 : i32
    return %arg0, %c0_i32 : i32, i32
  }
}

</mosaic_0001>

<llo_original>
// kernel: tpu_custom_call.1
$region0: #{tpu_custom_call.1}
  #allocation0 [shape = 'u32[]', space=smem, size = 0x4, offset = 0x4, fixed_abs, tag = 'smem constant byte address 0x4 - core index']
  #allocation1 [shape = 'u32[144,128]{1,0:T(1,128)}', space=vmem, size = 0x12000, scoped, tag = 'internal scratch']
  %s0 = inlined_call_operand.smem [shape: u32[40], index: -1, kind: input, shape index: {}]
  %s1 = sld [smem:[%s0]]
  %s2 = scalar_lea.smem %s0, 1
  %s3 = sld [smem:[%s2]]
  %s4 = scalar_lea.smem %s0, 2
  %s5 = sld [smem:[%s4]]
  %s6 = scalar_lea.smem %s0, 3
  %s7 = sld [smem:[%s6]]
  %s8 = scalar_lea.smem %s0, 4
  %s9 = sld [smem:[%s8]]
  %s10 = scalar_lea.smem %s0, 5
  %s11 = sld [smem:[%s10]]
  %s12 = scalar_lea.smem %s0, 6
  %s13 = sld [smem:[%s12]]
  %s14 = scalar_lea.smem %s0, 7
  %s15 = sld [smem:[%s14]]
  %s16 = scalar_lea.smem %s0, 8
  %s17 = sld [smem:[%s16]]
  %s18 = scalar_lea.smem %s0, 9
  %s19 = sld [smem:[%s18]]
  %s20 = scalar_lea.smem %s0, 10
  %s21 = sld [smem:[%s20]]
  %s22 = scalar_lea.smem %s0, 11
  %s23 = sld [smem:[%s22]]
  %s24 = scalar_lea.smem %s0, 12
  %s25 = sld [smem:[%s24]]
  %s26 = scalar_lea.smem %s0, 13
  %s27 = sld [smem:[%s26]]
  %s28 = scalar_lea.smem %s0, 14
  %s29 = sld [smem:[%s28]]
  %s30 = scalar_lea.smem %s0, 15
  %s31 = sld [smem:[%s30]]
  %s32 = scalar_lea.smem %s0, 16
  %s33 = sld [smem:[%s32]]
  %s34 = scalar_lea.smem %s0, 17
  %s35 = sld [smem:[%s34]]
  %s36 = scalar_lea.smem %s0, 18
  %s37 = sld [smem:[%s36]]
  %s38 = scalar_lea.smem %s0, 19
  %s39 = sld [smem:[%s38]]
  %s40 = scalar_lea.smem %s0, 20
  %s41 = sld [smem:[%s40]]
  %s42 = scalar_lea.smem %s0, 21
  %s43 = sld [smem:[%s42]]
  %s44 = scalar_lea.smem %s0, 22
  %s45 = sld [smem:[%s44]]
  %s46 = scalar_lea.smem %s0, 23
  %s47 = sld [smem:[%s46]]
  %s48 = scalar_lea.smem %s0, 24
  %s49 = sld [smem:[%s48]]
  %s50 = scalar_lea.smem %s0, 25
  %s51 = sld [smem:[%s50]]
  %s52 = scalar_lea.smem %s0, 26
  %s53 = sld [smem:[%s52]]
  %s54 = scalar_lea.smem %s0, 27
  %s55 = sld [smem:[%s54]]
  %s56 = scalar_lea.smem %s0, 28
  %s57 = sld [smem:[%s56]]
  %s58 = scalar_lea.smem %s0, 29
  %s59 = sld [smem:[%s58]]
  %s60 = scalar_lea.smem %s0, 30
  %s61 = sld [smem:[%s60]]
  %s62 = scalar_lea.smem %s0, 31
  %s63 = sld [smem:[%s62]]
  %s64 = scalar_lea.smem %s0, 32
  %s65 = sld [smem:[%s64]]
  %s66 = scalar_lea.smem %s0, 33
  %s67 = sld [smem:[%s66]]
  %s68 = scalar_lea.smem %s0, 34
  %s69 = sld [smem:[%s68]]
  %s70 = scalar_lea.smem %s0, 35
  %s71 = sld [smem:[%s70]]
  %s72 = scalar_lea.smem %s0, 36
  %s73 = sld [smem:[%s72]]
  %s74 = scalar_lea.smem %s0, 37
  %s75 = sld [smem:[%s74]]
  %s76 = scalar_lea.smem %s0, 38
  %s77 = sld [smem:[%s76]]
  %s78 = scalar_lea.smem %s0, 39
  %s79 = sld [smem:[%s78]]
  %s80 = sld [smem:[#allocation0]]
  $region186: #{tpu_custom_call.1} parent=0
    _
  %s82 = ssub.s32 1, %s80
  %s83 = scalar_select 0, %s82, %s80
  $region1: #{tpu_custom_call.1} parent=0
    #allocation2 [shape = 'u8[8192]{0}', space=vmem, size = 0x2000, scoped, tag = 'input window, operand 0, single buffered']
    #allocation3 [shape = 's32[1]{0}', space=sflag, size = 0x4, scoped, tag = 'scoped memory for tpu_custom_call.1']
    #allocation4 [shape = 's32[1]{0}', space=sflag, size = 0x4, scoped, tag = 'scoped memory for tpu_custom_call.1']
    #allocation5 [shape = 'u8[8192]{0}', space=vmem, size = 0x2000, scoped, tag = 'input window, operand 1, single buffered']
    #allocation6 [shape = 's32[1]{0}', space=sflag, size = 0x4, scoped, tag = 'scoped memory for tpu_custom_call.1']
    #allocation7 [shape = 'u8[512]{0}', space=vmem, size = 0x400, scoped, tag = 'input window, operand 2, single buffered']
    #allocation8 [shape = 'u8[512]{0}', space=vmem, size = 0x400, scoped, tag = 'input window, operand 4, single buffered']
    #allocation9 [shape = 's32[1]{0}', space=sflag, size = 0x4, scoped, tag = 'scoped memory for tpu_custom_call.1']
    #allocation10 [shape = 'u8[512]{0}', space=vmem, size = 0x400, scoped, tag = 'input window, operand 6, single buffered']
    #allocation11 [shape = 'u8[4096]{0}', space=vmem, size = 0x1000, scoped, tag = 'output window, operand 0, single buffered']
    %84 = vsyncpa [#allocation3], 0
    %85 = vsyncpa [#allocation6], 0
    %86 = vsyncpa [#allocation9], 0
    %87 = vsyncpa [#allocation4], 0
    // Predicated region
    $region2: #{tpu_custom_call.1} parent=1 // pred_check
      _
    $region3: #{tpu_custom_call.1} parent=1 // pred_check_branch
      %89 = sbr.rel (0) target = $region5
    $region4: #{tpu_custom_call.1} parent=1 // pred_region
      %s91 = ssub.s32 256, 256
      %92 = vsyncadd [#allocation3], %s91
      %s94 = sshll.u32 [#allocation2], 4
      %s95 = int_to_ptr.vmem [resolvable:$true] %s94
      %97 = dma.hbm_to_vmem [thread:$0]  %s1, 256, %s95, [#allocation3]
    $region5: #{tpu_custom_call.1} parent=1 // pred_fallthru
      _
    // Predicated region
    $region6: #{tpu_custom_call.1} parent=1 // pred_check
      _
    $region7: #{tpu_custom_call.1} parent=1 // pred_check_branch
      %99 = sbr.rel (0) target = $region9
    $region8: #{tpu_custom_call.1} parent=1 // pred_region
      %s101 = ssub.s32 256, 256
      %102 = vsyncadd [#allocation6], %s101
      %s103 = sshll.u32 [#allocation5], 4
      %s104 = int_to_ptr.vmem [resolvable:$true] %s103
      %109 = dma.hbm_to_vmem [thread:$0]  %s3, 256, %s104, [#allocation6], 128, 128, 8
    $region9: #{tpu_custom_call.1} parent=1 // pred_fallthru
      _
    // Predicated region
    $region10: #{tpu_custom_call.1} parent=1 // pred_check
      _
    $region11: #{tpu_custom_call.1} parent=1 // pred_check_branch
      %111 = sbr.rel (0) target = $region13
    $region12: #{tpu_custom_call.1} parent=1 // pred_region
      %s113 = ssub.s32 16, 16
      %114 = vsyncadd [#allocation6], %s113
      %s116 = sshll.u32 [#allocation7], 4
      %s117 = int_to_ptr.vmem [resolvable:$true] %s116
      %119 = dma.hbm_to_vmem [thread:$0]  %s5, 16, %s117, [#allocation6]
    $region13: #{tpu_custom_call.1} parent=1 // pred_fallthru
      _
    // Predicated region
    $region14: #{tpu_custom_call.1} parent=1 // pred_check
      _
    $region15: #{tpu_custom_call.1} parent=1 // pred_check_branch
      %121 = sbr.rel (0) target = $region17
    $region16: #{tpu_custom_call.1} parent=1 // pred_region
      _
    $region17: #{tpu_custom_call.1} parent=1 // pred_fallthru
      _
    // Predicated region
    $region18: #{tpu_custom_call.1} parent=1 // pred_check
      _
    $region19: #{tpu_custom_call.1} parent=1 // pred_check_branch
      %123 = sbr.rel (0) target = $region21
    $region20: #{tpu_custom_call.1} parent=1 // pred_region
      %s125 = ssub.s32 16, 16
      %126 = vsyncadd [#allocation9], %s125
      %s128 = sshll.u32 [#allocation8], 4
      %s129 = int_to_ptr.vmem [resolvable:$true] %s128
      %131 = dma.hbm_to_vmem [thread:$0]  %s9, 16, %s129, [#allocation9]
    $region21: #{tpu_custom_call.1} parent=1 // pred_fallthru
      _
    // Predicated region
    $region22: #{tpu_custom_call.1} parent=1 // pred_check
      _
    $region23: #{tpu_custom_call.1} parent=1 // pred_check_branch
      %133 = sbr.rel (0) target = $region25
    $region24: #{tpu_custom_call.1} parent=1 // pred_region
      _
    $region25: #{tpu_custom_call.1} parent=1 // pred_fallthru
      _
    // Predicated region
    $region26: #{tpu_custom_call.1} parent=1 // pred_check
      _
    $region27: #{tpu_custom_call.1} parent=1 // pred_check_branch
      %135 = sbr.rel (0) target = $region29
    $region28: #{tpu_custom_call.1} parent=1 // pred_region
      %s137 = ssub.s32 16, 16
      %138 = vsyncadd [#allocation9], %s137
      %s140 = sshll.u32 [#allocation10], 4
      %s141 = int_to_ptr.vmem [resolvable:$true] %s140
      %143 = dma.hbm_to_vmem [thread:$0]  %s13, 16, %s141, [#allocation9]
    $region29: #{tpu_custom_call.1} parent=1 // pred_fallthru
      _
    // Predicated region
    $region30: #{tpu_custom_call.1} parent=1 // pred_check
      _
    $region31: #{tpu_custom_call.1} parent=1 // pred_check_branch
      %145 = sbr.rel (0) target = $region33
    $region32: #{tpu_custom_call.1} parent=1 // pred_region
      _
    $region33: #{tpu_custom_call.1} parent=1 // pred_fallthru
      _
    // Predicated region
    $region34: #{tpu_custom_call.1} parent=1 // pred_check
      _
    $region35: #{tpu_custom_call.1} parent=1 // pred_check_branch
      %147 = sbr.rel (0) target = $region37
    $region36: #{tpu_custom_call.1} parent=1 // pred_region
      _
    $region37: #{tpu_custom_call.1} parent=1 // pred_fallthru
      _
    // Predicated region
    $region38: #{tpu_custom_call.1} parent=1 // pred_check
      _
    $region39: #{tpu_custom_call.1} parent=1 // pred_check_branch
      %149 = sbr.rel (0) target = $region41
    $region40: #{tpu_custom_call.1} parent=1 // pred_region
      _
    $region41: #{tpu_custom_call.1} parent=1 // pred_fallthru
      _
    // Predicated region
    $region42: #{tpu_custom_call.1} parent=1 // pred_check
      _
    $region43: #{tpu_custom_call.1} parent=1 // pred_check_branch
      %151 = sbr.rel (0) target = $region45
    $region44: #{tpu_custom_call.1} parent=1 // pred_region
      _
    $region45: #{tpu_custom_call.1} parent=1 // pred_fallthru
      _
    // Predicated region
    $region46: #{tpu_custom_call.1} parent=1 // pred_check
      _
    $region47: #{tpu_custom_call.1} parent=1 // pred_check_branch
      %153 = sbr.rel (0) target = $region49
    $region48: #{tpu_custom_call.1} parent=1 // pred_region
      _
    $region49: #{tpu_custom_call.1} parent=1 // pred_fallthru
      _
    // Predicated region
    $region50: #{tpu_custom_call.1} parent=1 // pred_check
      _
    $region51: #{tpu_custom_call.1} parent=1 // pred_check_branch
      %155 = sbr.rel (0) target = $region53
    $region52: #{tpu_custom_call.1} parent=1 // pred_region
      _
    $region53: #{tpu_custom_call.1} parent=1 // pred_fallthru
      _
    // Predicated region
    $region54: #{tpu_custom_call.1} parent=1 // pred_check
      _
    $region55: #{tpu_custom_call.1} parent=1 // pred_check_branch
      %157 = sbr.rel (0) target = $region57
    $region56: #{tpu_custom_call.1} parent=1 // pred_region
      _
    $region57: #{tpu_custom_call.1} parent=1 // pred_fallthru
      _
    // Predicated region
    $region58: #{tpu_custom_call.1} parent=1 // pred_check
      _
    $region59: #{tpu_custom_call.1} parent=1 // pred_check_branch
      %159 = sbr.rel (0) target = $region61
    $region60: #{tpu_custom_call.1} parent=1 // pred_region
      _
    $region61: #{tpu_custom_call.1} parent=1 // pred_fallthru
      _
    // Predicated region
    $region62: #{tpu_custom_call.1} parent=1 // pred_check
      _
    $region63: #{tpu_custom_call.1} parent=1 // pred_check_branch
      %161 = sbr.rel (0) target = $region65
    $region64: #{tpu_custom_call.1} parent=1 // pred_region
      _
    $region65: #{tpu_custom_call.1} parent=1 // pred_fallthru
      _
    // Predicated region
    $region66: #{tpu_custom_call.1} parent=1 // pred_check
      _
    $region67: #{tpu_custom_call.1} parent=1 // pred_check_branch
      %163 = sbr.rel (0) target = $region69
    $region68: #{tpu_custom_call.1} parent=1 // pred_region
      _
    $region69: #{tpu_custom_call.1} parent=1 // pred_fallthru
      _
    // Predicated region
    $region70: #{tpu_custom_call.1} parent=1 // pred_check
      _
    $region71: #{tpu_custom_call.1} parent=1 // pred_check_branch
      %165 = sbr.rel (0) target = $region73
    $region72: #{tpu_custom_call.1} parent=1 // pred_region
      _
    $region73: #{tpu_custom_call.1} parent=1 // pred_fallthru
      _
    // Predicated region
    $region74: #{tpu_custom_call.1} parent=1 // pred_check
      _
    $region75: #{tpu_custom_call.1} parent=1 // pred_check_branch
      %167 = sbr.rel (0) target = $region77
    $region76: #{tpu_custom_call.1} parent=1 // pred_region
      _
    $region77: #{tpu_custom_call.1} parent=1 // pred_fallthru
      _
    // Predicated region
    $region78: #{tpu_custom_call.1} parent=1 // pred_check
      _
    $region79: #{tpu_custom_call.1} parent=1 // pred_check_branch
      %169 = sbr.rel (0) target = $region81
    $region80: #{tpu_custom_call.1} parent=1 // pred_region
      _
    $region81: #{tpu_custom_call.1} parent=1 // pred_fallthru
      _
    // Predicated region
    $region82: #{tpu_custom_call.1} parent=1 // pred_check
      _
    $region83: #{tpu_custom_call.1} parent=1 // pred_check_branch
      %171 = sbr.rel (0) target = $region85
    $region84: #{tpu_custom_call.1} parent=1 // pred_region
      _
    $region85: #{tpu_custom_call.1} parent=1 // pred_fallthru
      _
    // Predicated region
    $region86: #{tpu_custom_call.1} parent=1 // pred_check
      _
    $region87: #{tpu_custom_call.1} parent=1 // pred_check_branch
      %173 = sbr.rel (0) target = $region89
    $region88: #{tpu_custom_call.1} parent=1 // pred_region
      _
    $region89: #{tpu_custom_call.1} parent=1 // pred_fallthru
      _
    // Predicated region
    $region90: #{tpu_custom_call.1} parent=1 // pred_check
      _
    $region91: #{tpu_custom_call.1} parent=1 // pred_check_branch
      %175 = sbr.rel (0) target = $region93
    $region92: #{tpu_custom_call.1} parent=1 // pred_region
      _
    $region93: #{tpu_custom_call.1} parent=1 // pred_fallthru
      _
    // Predicated region
    $region94: #{tpu_custom_call.1} parent=1 // pred_check
      _
    $region95: #{tpu_custom_call.1} parent=1 // pred_check_branch
      %177 = sbr.rel (0) target = $region97
    $region96: #{tpu_custom_call.1} parent=1 // pred_region
      _
    $region97: #{tpu_custom_call.1} parent=1 // pred_fallthru
      _
    // Predicated region
    $region98: #{tpu_custom_call.1} parent=1 // pred_check
      _
    $region99: #{tpu_custom_call.1} parent=1 // pred_check_branch
      %179 = sbr.rel (0) target = $region101
    $region100: #{tpu_custom_call.1} parent=1 // pred_region
      _
    $region101: #{tpu_custom_call.1} parent=1 // pred_fallthru
      _
    // Predicated region
    $region102: #{tpu_custom_call.1} parent=1 // pred_check
      _
    $region103: #{tpu_custom_call.1} parent=1 // pred_check_branch
      %181 = sbr.rel (0) target = $region105
    $region104: #{tpu_custom_call.1} parent=1 // pred_region
      _
    $region105: #{tpu_custom_call.1} parent=1 // pred_fallthru
      _
    // Predicated region
    $region106: #{tpu_custom_call.1} parent=1 // pred_check
      _
    $region107: #{tpu_custom_call.1} parent=1 // pred_check_branch
      %183 = sbr.rel (0) target = $region109
    $region108: #{tpu_custom_call.1} parent=1 // pred_region
      _
    $region109: #{tpu_custom_call.1} parent=1 // pred_fallthru
      _
    // Predicated region
    $region110: #{tpu_custom_call.1} parent=1 // pred_check
      _
    $region111: #{tpu_custom_call.1} parent=1 // pred_check_branch
      %185 = sbr.rel (0) target = $region113
    $region112: #{tpu_custom_call.1} parent=1 // pred_region
      _
    $region113: #{tpu_custom_call.1} parent=1 // pred_fallthru
      _
    // Predicated region
    $region114: #{tpu_custom_call.1} parent=1 // pred_check
      _
    $region115: #{tpu_custom_call.1} parent=1 // pred_check_branch
      %187 = sbr.rel (0) target = $region117
    $region116: #{tpu_custom_call.1} parent=1 // pred_region
      _
    $region117: #{tpu_custom_call.1} parent=1 // pred_fallthru
      _
    // Predicated region
    $region118: #{tpu_custom_call.1} parent=1 // pred_check
      _
    $region119: #{tpu_custom_call.1} parent=1 // pred_check_branch
      %189 = sbr.rel (0) target = $region121
    $region120: #{tpu_custom_call.1} parent=1 // pred_region
      _
    $region121: #{tpu_custom_call.1} parent=1 // pred_fallthru
      _
    // Predicated region
    $region122: #{tpu_custom_call.1} parent=1 // pred_check
      _
    $region123: #{tpu_custom_call.1} parent=1 // pred_check_branch
      %191 = sbr.rel (0) target = $region125
    $region124: #{tpu_custom_call.1} parent=1 // pred_region
      _
    $region125: #{tpu_custom_call.1} parent=1 // pred_fallthru
      _
    // Predicated region
    $region126: #{tpu_custom_call.1} parent=1 // pred_check
      _
    $region127: #{tpu_custom_call.1} parent=1 // pred_check_branch
      %193 = sbr.rel (0) target = $region129
    $region128: #{tpu_custom_call.1} parent=1 // pred_region
      _
    $region129: #{tpu_custom_call.1} parent=1 // pred_fallthru
      _
    // Predicated region
    $region130: #{tpu_custom_call.1} parent=1 // pred_check
      _
    $region131: #{tpu_custom_call.1} parent=1 // pred_check_branch
      %195 = sbr.rel (0) target = $region133
    $region132: #{tpu_custom_call.1} parent=1 // pred_region
      _
    $region133: #{tpu_custom_call.1} parent=1 // pred_fallthru
      _
    // Predicated region
    $region134: #{tpu_custom_call.1} parent=1 // pred_check
      _
    $region135: #{tpu_custom_call.1} parent=1 // pred_check_branch
      %197 = sbr.rel (0) target = $region137
    $region136: #{tpu_custom_call.1} parent=1 // pred_region
      _
    $region137: #{tpu_custom_call.1} parent=1 // pred_fallthru
      _
    // Predicated region
    $region138: #{tpu_custom_call.1} parent=1 // pred_check
      _
    $region139: #{tpu_custom_call.1} parent=1 // pred_check_branch
      %199 = sbr.rel (0) target = $region141
    $region140: #{tpu_custom_call.1} parent=1 // pred_region
      _
    $region141: #{tpu_custom_call.1} parent=1 // pred_fallthru
      _
    // Predicated region
    $region142: #{tpu_custom_call.1} parent=1 // pred_check
      _
    $region143: #{tpu_custom_call.1} parent=1 // pred_check_branch
      %201 = sbr.rel (0) target = $region145
    $region144: #{tpu_custom_call.1} parent=1 // pred_region
      _
    $region145: #{tpu_custom_call.1} parent=1 // pred_fallthru
      _
    // Predicated region
    $region146: #{tpu_custom_call.1} parent=1 // pred_check
      _
    $region147: #{tpu_custom_call.1} parent=1 // pred_check_branch
      %203 = sbr.rel (0) target = $region149
    $region148: #{tpu_custom_call.1} parent=1 // pred_region
      _
    $region149: #{tpu_custom_call.1} parent=1 // pred_fallthru
      _
    // Predicated region
    $region150: #{tpu_custom_call.1} parent=1 // pred_check
      _
    $region151: #{tpu_custom_call.1} parent=1 // pred_check_branch
      %205 = sbr.rel (0) target = $region153
    $region152: #{tpu_custom_call.1} parent=1 // pred_region
      _
    $region153: #{tpu_custom_call.1} parent=1 // pred_fallthru
      _
    // Predicated region
    $region154: #{tpu_custom_call.1} parent=1 // pred_check
      _
    $region155: #{tpu_custom_call.1} parent=1 // pred_check_branch
      %207 = sbr.rel (0) target = $region157
    $region156: #{tpu_custom_call.1} parent=1 // pred_region
      _
    $region157: #{tpu_custom_call.1} parent=1 // pred_fallthru
      _
    // Predicated region
    $region158: #{tpu_custom_call.1} parent=1 // pred_check
      _
    $region159: #{tpu_custom_call.1} parent=1 // pred_check_branch
      %209 = sbr.rel (0) target = $region161
    $region160: #{tpu_custom_call.1} parent=1 // pred_region
      %210 = dma.done [#allocation3], 256
    $region161: #{tpu_custom_call.1} parent=1 // pred_fallthru
      _
    // Predicated region
    $region162: #{tpu_custom_call.1} parent=1 // pred_check
      _
    $region163: #{tpu_custom_call.1} parent=1 // pred_check_branch
      %212 = sbr.rel (0) target = $region165
    $region164: #{tpu_custom_call.1} parent=1 // pred_region
      %213 = dma.done [#allocation6], 256
    $region165: #{tpu_custom_call.1} parent=1 // pred_fallthru
      _
    // Predicated region
    $region166: #{tpu_custom_call.1} parent=1 // pred_check
      _
    $region167: #{tpu_custom_call.1} parent=1 // pred_check_branch
      %215 = sbr.rel (0) target = $region169
    $region168: #{tpu_custom_call.1} parent=1 // pred_region
      %216 = dma.done [#allocation6], 16
    $region169: #{tpu_custom_call.1} parent=1 // pred_fallthru
      _
    // Predicated region
    $region170: #{tpu_custom_call.1} parent=1 // pred_check
      _
    $region171: #{tpu_custom_call.1} parent=1 // pred_check_branch
      %218 = sbr.rel (0) target = $region173
    $region172: #{tpu_custom_call.1} parent=1 // pred_region
      %219 = dma.done [#allocation9], 16
    $region173: #{tpu_custom_call.1} parent=1 // pred_fallthru
      _
    // Predicated region
    $region174: #{tpu_custom_call.1} parent=1 // pred_check
      _
    $region175: #{tpu_custom_call.1} parent=1 // pred_check_branch
      %221 = sbr.rel (0) target = $region177
    $region176: #{tpu_custom_call.1} parent=1 // pred_region
      %222 = dma.done [#allocation9], 16
    $region177: #{tpu_custom_call.1} parent=1 // pred_fallthru
      _
    %v223 = vld [vmem:[#allocation2] sm:$0xff]
    %v224 = vld [vmem:[#allocation2 + $0x8] sm:$0xff]
    %226 = vrot.lane.b32.xlu0 %v224, 112
    %v227 = vpop.permute.xlu0 %226
    %229 = vrot.lane.b32.xlu0 %v223, 16
    %v230 = vpop.permute.xlu0 %229
    %231 = vrot.lane.b32.xlu0 %v224, 96
    %v232 = vpop.permute.xlu0 %231
    %v233 = vld [vmem:[#allocation5] sm:$0xff]
    %v234 = vld [vmem:[#allocation5 + $0x8] sm:$0xff]
    %v235 = vld [vmem:[#allocation7] sm:$0x1]
    %v237 = vlaneseq
    %v238 = vshrl.u32 %v237, 7
    %v239 = vsub.s32 0, %v238
    %v240 = vrot.slane %v235, %v239
    %vm242 = vcmask 130048
    %v243 = vsel %vm242, %v223, 0
    %v245 = vsel %vm242, %v227, 0
    %v247 = vsel %vm242, %v224, 0
    %v249 = vsel %vm242, %v230, 0
    %v251 = vsel %vm242, %v232, 0
    %253 = vmatprep.subr.mxu0 0.0
    %254 = vmatpush1.msra.mxu0 %v233
    %255 = vmatprep.subr.mxu0 0.0
    %256 = vmatpush1.msra.mxu0 %v234
    %257 = vmatprep.subr.mxu0 0.0
    %258 = vmatpush1.msra.mxu0 0.0
    %259 = vmatprep.subr.mxu0 0.0
    %260 = vmatpush1.msra.mxu0 0.0
    %261 = vmatprep.subr.mxu0 0.0
    %262 = vmatpush1.msra.mxu0 0.0
    %263 = vmatprep.subr.mxu0 0.0
    %264 = vmatpush1.msra.mxu0 0.0
    %265 = vmatprep.subr.mxu0 0.0
    %266 = vmatpush1.msra.mxu0 0.0
    %267 = vmatprep.subr.mxu0 0.0
    %268 = vmatpush1.msra.mxu0 0.0
    %269 = vmatprep.subr.mxu0 0.0
    %270 = vmatpush1.msra.mxu0 0.0
    %271 = vmatprep.subr.mxu0 0.0
    %272 = vmatpush1.msra.mxu0 0.0
    %273 = vmatprep.subr.mxu0 0.0
    %274 = vmatpush1.msra.mxu0 0.0
    %275 = vmatprep.subr.mxu0 0.0
    %276 = vmatpush1.msra.mxu0 0.0
    %277 = vmatprep.subr.mxu0 0.0
    %278 = vmatpush1.msra.mxu0 0.0
    %279 = vmatprep.subr.mxu0 0.0
    %280 = vmatpush1.msra.mxu0 0.0
    %281 = vmatprep.subr.mxu0 0.0
    %282 = vmatpush1.msra.mxu0 0.0
    %283 = vmatprep.subr.mxu0 0.0
    %284 = vmatpush1.msra.mxu0 0.0
    %285 = vmatprep.subr.mxu0 0.0
    %286 = vmatpush1.msra.mxu0 0.0
    %287 = vmatprep.subr.mxu0 0.0
    %288 = vmatpush1.msra.mxu0 0.0
    %289 = vmatprep.subr.mxu0 0.0
    %290 = vmatpush1.msra.mxu0 0.0
    %291 = vmatprep.subr.mxu0 0.0
    %292 = vmatpush1.msra.mxu0 0.0
    %293 = vmatprep.subr.mxu0 0.0
    %294 = vmatpush1.msra.mxu0 0.0
    %295 = vmatprep.subr.mxu0 0.0
    %296 = vmatpush1.msra.mxu0 0.0
    %297 = vmatprep.subr.mxu0 0.0
    %298 = vmatpush1.msra.mxu0 0.0
    %299 = vmatprep.subr.mxu0 0.0
    %300 = vmatpush1.msra.mxu0 0.0
    %301 = vmatprep.subr.mxu0 0.0
    %302 = vmatpush1.msra.mxu0 0.0
    %303 = vmatprep.subr.mxu0 0.0
    %304 = vmatpush1.msra.mxu0 0.0
    %305 = vmatprep.subr.mxu0 0.0
    %306 = vmatpush1.msra.mxu0 0.0
    %307 = vmatprep.subr.mxu0 0.0
    %308 = vmatpush1.msra.mxu0 0.0
    %309 = vmatprep.subr.mxu0 0.0
    %310 = vmatpush1.msra.mxu0 0.0
    %311 = vmatprep.subr.mxu0 0.0
    %312 = vmatpush1.msra.mxu0 0.0
    %313 = vmatprep.subr.mxu0 0.0
    %314 = vmatpush1.msra.mxu0 0.0
    %315 = vmatprep.subr.mxu0 0.0
    %316 = vmatpush1.msra.mxu0 0.0
    %317 = vmatprep.mubr.f32.mxu0 0.0
    %318 = vmatmul.mubr.f32.gmra.mrb[0].mxu0 %v243
    %v319 = vpop.f32.mrb[0].mxu0
    %v320 = vadd.f32 %v240, %v319
    %v321 = vpop.f32.mrb[0].mxu0
    %322 = vmatprep.mubr.f32.mxu0 0.0
    %323 = vmatmul.mubr.f32.gmra.mrb[0].mxu0 %v245
    %v324 = vpop.f32.mrb[0].mxu0
    %v325 = vadd.f32 %v240, %v324
    %v326 = vpop.f32.mrb[0].mxu0
    %327 = vmatprep.mubr.f32.mxu0 0.0
    %328 = vmatmul.mubr.f32.gmra.mrb[0].mxu0 %v247
    %v329 = vpop.f32.mrb[0].mxu0
    %v330 = vadd.f32 %v240, %v329
    %v331 = vpop.f32.mrb[0].mxu0
    %332 = vmatprep.mubr.f32.mxu0 0.0
    %333 = vmatmul.mubr.f32.gmra.mrb[0].mxu0 %v249
    %v334 = vpop.f32.mrb[0].mxu0
    %v335 = vadd.f32 %v240, %v334
    %v336 = vpop.f32.mrb[0].mxu0
    %337 = vmatprep.mubr.f32.mxu0 0.0
    %338 = vmatmul.mubr.f32.gmra.mrb[0].mxu0 %v251
    %v339 = vpop.f32.mrb[0].mxu0
    %v340 = vadd.f32 %v240, %v339
    %v341 = vpop.f32.mrb[0].mxu0
    %342 = vdwg.mxu0
    %v343 = vmax.f32 %v320, 0.0
    %v344 = vmax.f32 %v325, 0.0
    %v345 = vmax.f32 %v330, 0.0
    %v346 = vmax.f32 %v335, 0.0
    %v347 = vmax.f32 %v340, 0.0
    %v348 = vld [vmem:[%s7] sm:$0xff]
    %v349 = vld [vmem:[%s7 + $0x8] sm:$0xff]
    %v350 = vld [vmem:[%s7 + $0x10] sm:$0xff]
    %v351 = vld [vmem:[%s7 + $0x18] sm:$0xff]
    %v352 = vld [vmem:[%s7 + $0x20] sm:$0xff]
    %v353 = vld [vmem:[%s7 + $0x28] sm:$0xff]
    %v354 = vld [vmem:[%s7 + $0x30] sm:$0xff]
    %v355 = vld [vmem:[%s7 + $0x38] sm:$0xff]
    %v356 = vld [vmem:[%s7 + $0x40] sm:$0xff]
    %v357 = vld [vmem:[%s7 + $0x48] sm:$0xff]
    %v358 = vld [vmem:[%s7 + $0x50] sm:$0xff]
    %v359 = vld [vmem:[%s7 + $0x58] sm:$0xff]
    %v360 = vld [vmem:[%s7 + $0x60] sm:$0xf]
    %v361 = vld [vmem:[#allocation8] sm:$0x1]
    %v363 = vlaneseq
    %v364 = vshrl.u32 %v363, 7
    %v365 = vsub.s32 0, %v364
    %v366 = vrot.slane %v361, %v365
    %vm368 = vcmask 818176
    %v370 = vsel %vm368, %v343, 0
    %v373 = vsel %vm368, %v344, 0
    %v376 = vsel %vm368, %v345, 0
    %v379 = vsel %vm368, %v346, 0
    %v382 = vsel %vm368, %v347, 0
    %vm384 = vcmask 1043456
    %v386 = vsel %vm384, %v360, 0
    %388 = vmatprep.subr.mxu0 0.0
    %389 = vmatpush1.msra.mxu0 %v348
    %390 = vmatprep.subr.mxu0 0.0
    %391 = vmatpush1.msra.mxu0 %v349
    %392 = vmatprep.subr.mxu0 0.0
    %393 = vmatpush1.msra.mxu0 %v350
    %394 = vmatprep.subr.mxu0 0.0
    %395 = vmatpush1.msra.mxu0 %v351
    %396 = vmatprep.subr.mxu0 0.0
    %397 = vmatpush1.msra.mxu0 %v352
    %398 = vmatprep.subr.mxu0 0.0
    %399 = vmatpush1.msra.mxu0 %v353
    %400 = vmatprep.subr.mxu0 0.0
    %401 = vmatpush1.msra.mxu0 %v354
    %402 = vmatprep.subr.mxu0 0.0
    %403 = vmatpush1.msra.mxu0 %v355
    %404 = vmatprep.subr.mxu0 0.0
    %405 = vmatpush1.msra.mxu0 %v356
    %406 = vmatprep.subr.mxu0 0.0
    %407 = vmatpush1.msra.mxu0 %v357
    %408 = vmatprep.subr.mxu0 0.0
    %409 = vmatpush1.msra.mxu0 %v358
    %410 = vmatprep.subr.mxu0 0.0
    %411 = vmatpush1.msra.mxu0 %v359
    %412 = vmatprep.subr.mxu0 0.0
    %413 = vmatpush1.msra.mxu0 %v386
    %414 = vmatprep.subr.mxu0 0.0
    %415 = vmatpush1.msra.mxu0 0.0
    %416 = vmatprep.subr.mxu0 0.0
    %417 = vmatpush1.msra.mxu0 0.0
    %418 = vmatprep.subr.mxu0 0.0
    %419 = vmatpush1.msra.mxu0 0.0
    %420 = vmatprep.subr.mxu0 0.0
    %421 = vmatpush1.msra.mxu0 0.0
    %422 = vmatprep.subr.mxu0 0.0
    %423 = vmatpush1.msra.mxu0 0.0
    %424 = vmatprep.subr.mxu0 0.0
    %425 = vmatpush1.msra.mxu0 0.0
    %426 = vmatprep.subr.mxu0 0.0
    %427 = vmatpush1.msra.mxu0 0.0
    %428 = vmatprep.subr.mxu0 0.0
    %429 = vmatpush1.msra.mxu0 0.0
    %430 = vmatprep.subr.mxu0 0.0
    %431 = vmatpush1.msra.mxu0 0.0
    %432 = vmatprep.subr.mxu0 0.0
    %433 = vmatpush1.msra.mxu0 0.0
    %434 = vmatprep.subr.mxu0 0.0
    %435 = vmatpush1.msra.mxu0 0.0
    %436 = vmatprep.subr.mxu0 0.0
    %437 = vmatpush1.msra.mxu0 0.0
    %438 = vmatprep.subr.mxu0 0.0
    %439 = vmatpush1.msra.mxu0 0.0
    %440 = vmatprep.subr.mxu0 0.0
    %441 = vmatpush1.msra.mxu0 0.0
    %442 = vmatprep.subr.mxu0 0.0
    %443 = vmatpush1.msra.mxu0 0.0
    %444 = vmatprep.subr.mxu0 0.0
    %445 = vmatpush1.msra.mxu0 0.0
    %446 = vmatprep.subr.mxu0 0.0
    %447 = vmatpush1.msra.mxu0 0.0
    %448 = vmatprep.subr.mxu0 0.0
    %449 = vmatpush1.msra.mxu0 0.0
    %450 = vmatprep.subr.mxu0 0.0
    %451 = vmatpush1.msra.mxu0 0.0
    %452 = vmatprep.mubr.f32.mxu0 0.0
    %453 = vmatmul.mubr.f32.gmra.mrb[0].mxu0 %v370
    %v454 = vpop.f32.mrb[0].mxu0
    %v455 = vadd.f32 %v366, %v454
    %v456 = vpop.f32.mrb[0].mxu0
    %457 = vmatprep.mubr.f32.mxu0 0.0
    %458 = vmatmul.mubr.f32.gmra.mrb[0].mxu0 %v373
    %v459 = vpop.f32.mrb[0].mxu0
    %v460 = vadd.f32 %v366, %v459
    %v461 = vpop.f32.mrb[0].mxu0
    %462 = vmatprep.mubr.f32.mxu0 0.0
    %463 = vmatmul.mubr.f32.gmra.mrb[0].mxu0 %v376
    %v464 = vpop.f32.mrb[0].mxu0
    %v465 = vadd.f32 %v366, %v464
    %v466 = vpop.f32.mrb[0].mxu0
    %467 = vmatprep.mubr.f32.mxu0 0.0
    %468 = vmatmul.mubr.f32.gmra.mrb[0].mxu0 %v379
    %v469 = vpop.f32.mrb[0].mxu0
    %v470 = vadd.f32 %v366, %v469
    %v471 = vpop.f32.mrb[0].mxu0
    %472 = vmatprep.mubr.f32.mxu0 0.0
    %473 = vmatmul.mubr.f32.gmra.mrb[0].mxu0 %v382
    %v474 = vpop.f32.mrb[0].mxu0
    %v475 = vadd.f32 %v366, %v474
    %v476 = vpop.f32.mrb[0].mxu0
    %477 = vdwg.mxu0
    %v478 = vmax.f32 %v455, 0.0
    %v479 = vmax.f32 %v460, 0.0
    %v480 = vmax.f32 %v465, 0.0
    %v481 = vmax.f32 %v470, 0.0
    %v482 = vmax.f32 %v475, 0.0
    %v483 = vld [vmem:[%s11] sm:$0xff]
    %v484 = vld [vmem:[%s11 + $0x8] sm:$0xff]
    %v485 = vld [vmem:[%s11 + $0x10] sm:$0xff]
    %v486 = vld [vmem:[%s11 + $0x18] sm:$0xff]
    %v487 = vld [vmem:[%s11 + $0x20] sm:$0xff]
    %v488 = vld [vmem:[%s11 + $0x28] sm:$0xff]
    %v489 = vld [vmem:[%s11 + $0x30] sm:$0x3]
    %v490 = vld [vmem:[#allocation10] sm:$0x1]
    %v492 = vlaneseq
    %v493 = vshrl.u32 %v492, 7
    %v494 = vsub.s32 0, %v493
    %v495 = vrot.slane %v490, %v494
    %vm497 = vcmask 408576
    %v499 = vsel %vm497, %v478, 0
    %v502 = vsel %vm497, %v479, 0
    %v505 = vsel %vm497, %v480, 0
    %v508 = vsel %vm497, %v481, 0
    %v511 = vsel %vm497, %v482, 0
    %vm513 = vcmask 1041408
    %v515 = vsel %vm513, %v489, 0
    %517 = vmatprep.subr.mxu0 0.0
    %518 = vmatpush1.msra.mxu0 %v483
    %519 = vmatprep.subr.mxu0 0.0
    %520 = vmatpush1.msra.mxu0 %v484
    %521 = vmatprep.subr.mxu0 0.0
    %522 = vmatpush1.msra.mxu0 %v485
    %523 = vmatprep.subr.mxu0 0.0
    %524 = vmatpush1.msra.mxu0 %v486
    %525 = vmatprep.subr.mxu0 0.0
    %526 = vmatpush1.msra.mxu0 %v487
    %527 = vmatprep.subr.mxu0 0.0
    %528 = vmatpush1.msra.mxu0 %v488
    %529 = vmatprep.subr.mxu0 0.0
    %530 = vmatpush1.msra.mxu0 %v515
    %531 = vmatprep.subr.mxu0 0.0
    %532 = vmatpush1.msra.mxu0 0.0
    %533 = vmatprep.subr.mxu0 0.0
    %534 = vmatpush1.msra.mxu0 0.0
    %535 = vmatprep.subr.mxu0 0.0
    %536 = vmatpush1.msra.mxu0 0.0
    %537 = vmatprep.subr.mxu0 0.0
    %538 = vmatpush1.msra.mxu0 0.0
    %539 = vmatprep.subr.mxu0 0.0
    %540 = vmatpush1.msra.mxu0 0.0
    %541 = vmatprep.subr.mxu0 0.0
    %542 = vmatpush1.msra.mxu0 0.0
    %543 = vmatprep.subr.mxu0 0.0
    %544 = vmatpush1.msra.mxu0 0.0
    %545 = vmatprep.subr.mxu0 0.0
    %546 = vmatpush1.msra.mxu0 0.0
    %547 = vmatprep.subr.mxu0 0.0
    %548 = vmatpush1.msra.mxu0 0.0
    %549 = vmatprep.subr.mxu0 0.0
    %550 = vmatpush1.msra.mxu0 0.0
    %551 = vmatprep.subr.mxu0 0.0
    %552 = vmatpush1.msra.mxu0 0.0
    %553 = vmatprep.subr.mxu0 0.0
    %554 = vmatpush1.msra.mxu0 0.0
    %555 = vmatprep.subr.mxu0 0.0
    %556 = vmatpush1.msra.mxu0 0.0
    %557 = vmatprep.subr.mxu0 0.0
    %558 = vmatpush1.msra.mxu0 0.0
    %559 = vmatprep.subr.mxu0 0.0
    %560 = vmatpush1.msra.mxu0 0.0
    %561 = vmatprep.subr.mxu0 0.0
    %562 = vmatpush1.msra.mxu0 0.0
    %563 = vmatprep.subr.mxu0 0.0
    %564 = vmatpush1.msra.mxu0 0.0
    %565 = vmatprep.subr.mxu0 0.0
    %566 = vmatpush1.msra.mxu0 0.0
    %567 = vmatprep.subr.mxu0 0.0
    %568 = vmatpush1.msra.mxu0 0.0
    %569 = vmatprep.subr.mxu0 0.0
    %570 = vmatpush1.msra.mxu0 0.0
    %571 = vmatprep.subr.mxu0 0.0
    %572 = vmatpush1.msra.mxu0 0.0
    %573 = vmatprep.subr.mxu0 0.0
    %574 = vmatpush1.msra.mxu0 0.0
    %575 = vmatprep.subr.mxu0 0.0
    %576 = vmatpush1.msra.mxu0 0.0
    %577 = vmatprep.subr.mxu0 0.0
    %578 = vmatpush1.msra.mxu0 0.0
    %579 = vmatprep.subr.mxu0 0.0
    %580 = vmatpush1.msra.mxu0 0.0
    %581 = vmatprep.mubr.f32.mxu0 0.0
    %582 = vmatmul.mubr.f32.gmra.mrb[0].mxu0 %v499
    %v583 = vpop.f32.mrb[0].mxu0
    %v584 = vadd.f32 %v495, %v583
    %v585 = vpop.f32.mrb[0].mxu0
    %586 = vmatprep.mubr.f32.mxu0 0.0
    %587 = vmatmul.mubr.f32.gmra.mrb[0].mxu0 %v502
    %v588 = vpop.f32.mrb[0].mxu0
    %v589 = vadd.f32 %v495, %v588
    %v590 = vpop.f32.mrb[0].mxu0
    %591 = vmatprep.mubr.f32.mxu0 0.0
    %592 = vmatmul.mubr.f32.gmra.mrb[0].mxu0 %v505
    %v593 = vpop.f32.mrb[0].mxu0
    %v594 = vadd.f32 %v495, %v593
    %v595 = vpop.f32.mrb[0].mxu0
    %596 = vmatprep.mubr.f32.mxu0 0.0
    %597 = vmatmul.mubr.f32.gmra.mrb[0].mxu0 %v508
    %v598 = vpop.f32.mrb[0].mxu0
    %v599 = vadd.f32 %v495, %v598
    %v600 = vpop.f32.mrb[0].mxu0
    %601 = vmatprep.mubr.f32.mxu0 0.0
    %602 = vmatmul.mubr.f32.gmra.mrb[0].mxu0 %v511
    %v603 = vpop.f32.mrb[0].mxu0
    %v604 = vadd.f32 %v495, %v603
    %v605 = vpop.f32.mrb[0].mxu0
    %606 = vdwg.mxu0
    %v607 = vmax.f32 %v584, 0.0
    %v608 = vmax.f32 %v589, 0.0
    %v609 = vmax.f32 %v594, 0.0
    %v610 = vmax.f32 %v599, 0.0
    %v611 = vmax.f32 %v604, 0.0
    %612 = vrot.lane.b32.xlu0 %v224, 64
    %v613 = vpop.permute.xlu0 %612
    %616 = vrot.lane.b32.xlu0 %v609, 32
    %v617 = vpop.permute.xlu0 %616
    %v619 = vsel %vm242, %v608, %v613
    %vm620 = vcmask 261120
    %v621 = vsel %vm620, %v619, %v617
    %v622 = vld [vmem:[%s27] sm:$0xff]
    %v623 = vld [vmem:[%s27 + $0x8] sm:$0xff]
    %v624 = vld [vmem:[%s27 + $0x10] sm:$0xff]
    %v625 = vld [vmem:[%s27 + $0x18] sm:$0xff]
    %v626 = vld [vmem:[%s27 + $0x20] sm:$0xff]
    %v627 = vld [vmem:[%s27 + $0x28] sm:$0xff]
    %v628 = vld [vmem:[%s29] sm:$0x1]
    %v630 = vlaneseq
    %v631 = vshrl.u32 %v630, 7
    %v632 = vsub.s32 0, %v631
    %v633 = vrot.slane %v628, %v632
    %vm635 = vcmask 392192
    %v637 = vsel %vm635, %v621, 0
    %639 = vmatprep.subr.mxu0 0.0
    %640 = vmatpush1.msra.mxu0 %v622
    %641 = vmatprep.subr.mxu0 0.0
    %642 = vmatpush1.msra.mxu0 %v623
    %643 = vmatprep.subr.mxu0 0.0
    %644 = vmatpush1.msra.mxu0 %v624
    %645 = vmatprep.subr.mxu0 0.0
    %646 = vmatpush1.msra.mxu0 %v625
    %647 = vmatprep.subr.mxu0 0.0
    %648 = vmatpush1.msra.mxu0 %v626
    %649 = vmatprep.subr.mxu0 0.0
    %650 = vmatpush1.msra.mxu0 %v627
    %651 = vmatprep.subr.mxu0 0.0
    %652 = vmatpush1.msra.mxu0 0.0
    %653 = vmatprep.subr.mxu0 0.0
    %654 = vmatpush1.msra.mxu0 0.0
    %655 = vmatprep.subr.mxu0 0.0
    %656 = vmatpush1.msra.mxu0 0.0
    %657 = vmatprep.subr.mxu0 0.0
    %658 = vmatpush1.msra.mxu0 0.0
    %659 = vmatprep.subr.mxu0 0.0
    %660 = vmatpush1.msra.mxu0 0.0
    %661 = vmatprep.subr.mxu0 0.0
    %662 = vmatpush1.msra.mxu0 0.0
    %663 = vmatprep.subr.mxu0 0.0
    %664 = vmatpush1.msra.mxu0 0.0
    %665 = vmatprep.subr.mxu0 0.0
    %666 = vmatpush1.msra.mxu0 0.0
    %667 = vmatprep.subr.mxu0 0.0
    %668 = vmatpush1.msra.mxu0 0.0
    %669 = vmatprep.subr.mxu0 0.0
    %670 = vmatpush1.msra.mxu0 0.0
    %671 = vmatprep.subr.mxu0 0.0
    %672 = vmatpush1.msra.mxu0 0.0
    %673 = vmatprep.subr.mxu0 0.0
    %674 = vmatpush1.msra.mxu0 0.0
    %675 = vmatprep.subr.mxu0 0.0
    %676 = vmatpush1.msra.mxu0 0.0
    %677 = vmatprep.subr.mxu0 0.0
    %678 = vmatpush1.msra.mxu0 0.0
    %679 = vmatprep.subr.mxu0 0.0
    %680 = vmatpush1.msra.mxu0 0.0
    %681 = vmatprep.subr.mxu0 0.0
    %682 = vmatpush1.msra.mxu0 0.0
    %683 = vmatprep.subr.mxu0 0.0
    %684 = vmatpush1.msra.mxu0 0.0
    %685 = vmatprep.subr.mxu0 0.0
    %686 = vmatpush1.msra.mxu0 0.0
    %687 = vmatprep.subr.mxu0 0.0
    %688 = vmatpush1.msra.mxu0 0.0
    %689 = vmatprep.subr.mxu0 0.0
    %690 = vmatpush1.msra.mxu0 0.0
    %691 = vmatprep.subr.mxu0 0.0
    %692 = vmatpush1.msra.mxu0 0.0
    %693 = vmatprep.subr.mxu0 0.0
    %694 = vmatpush1.msra.mxu0 0.0
    %695 = vmatprep.subr.mxu0 0.0
    %696 = vmatpush1.msra.mxu0 0.0
    %697 = vmatprep.subr.mxu0 0.0
    %698 = vmatpush1.msra.mxu0 0.0
    %699 = vmatprep.subr.mxu0 0.0
    %700 = vmatpush1.msra.mxu0 0.0
    %701 = vmatprep.subr.mxu0 0.0
    %702 = vmatpush1.msra.mxu0 0.0
    %703 = vmatprep.mubr.f32.mxu0 0.0
    %704 = vmatmul.mubr.f32.gmra.mrb[0].mxu0 %v637
    %v705 = vpop.f32.mrb[0].mxu0
    %v706 = vadd.f32 %v633, %v705
    %v707 = vpop.f32.mrb[0].mxu0
    %708 = vdwg.mxu0
    %v709 = vmax.f32 %v706, 0.0
    %v710 = vld [vmem:[%s31] sm:$0xff]
    %v711 = vld [vmem:[%s31 + $0x8] sm:$0xff]
    %v712 = vld [vmem:[%s31 + $0x10] sm:$0xff]
    %v713 = vld [vmem:[%s31 + $0x18] sm:$0xff]
    %v714 = vld [vmem:[%s31 + $0x20] sm:$0xff]
    %v715 = vld [vmem:[%s31 + $0x28] sm:$0xff]
    %v716 = vld [vmem:[%s31 + $0x30] sm:$0xff]
    %v717 = vld [vmem:[%s31 + $0x38] sm:$0xff]
    %v718 = vld [vmem:[%s31 + $0x40] sm:$0xff]
    %v719 = vld [vmem:[%s31 + $0x48] sm:$0xff]
    %v720 = vld [vmem:[%s31 + $0x50] sm:$0xff]
    %v721 = vld [vmem:[%s31 + $0x58] sm:$0xff]
    %v722 = vld [vmem:[%s31 + $0x60] sm:$0xf]
    %v723 = vld [vmem:[%s33] sm:$0x1]
    %v725 = vlaneseq
    %v726 = vshrl.u32 %v725, 7
    %v727 = vsub.s32 0, %v726
    %v728 = vrot.slane %v723, %v727
    %v731 = vsel %vm368, %v709, 0
    %v734 = vsel %vm384, %v722, 0
    %736 = vmatprep.subr.mxu0 0.0
    %737 = vmatpush1.msra.mxu0 %v710
    %738 = vmatprep.subr.mxu0 0.0
    %739 = vmatpush1.msra.mxu0 %v711
    %740 = vmatprep.subr.mxu0 0.0
    %741 = vmatpush1.msra.mxu0 %v712
    %742 = vmatprep.subr.mxu0 0.0
    %743 = vmatpush1.msra.mxu0 %v713
    %744 = vmatprep.subr.mxu0 0.0
    %745 = vmatpush1.msra.mxu0 %v714
    %746 = vmatprep.subr.mxu0 0.0
    %747 = vmatpush1.msra.mxu0 %v715
    %748 = vmatprep.subr.mxu0 0.0
    %749 = vmatpush1.msra.mxu0 %v716
    %750 = vmatprep.subr.mxu0 0.0
    %751 = vmatpush1.msra.mxu0 %v717
    %752 = vmatprep.subr.mxu0 0.0
    %753 = vmatpush1.msra.mxu0 %v718
    %754 = vmatprep.subr.mxu0 0.0
    %755 = vmatpush1.msra.mxu0 %v719
    %756 = vmatprep.subr.mxu0 0.0
    %757 = vmatpush1.msra.mxu0 %v720
    %758 = vmatprep.subr.mxu0 0.0
    %759 = vmatpush1.msra.mxu0 %v721
    %760 = vmatprep.subr.mxu0 0.0
    %761 = vmatpush1.msra.mxu0 %v734
    %762 = vmatprep.subr.mxu0 0.0
    %763 = vmatpush1.msra.mxu0 0.0
    %764 = vmatprep.subr.mxu0 0.0
    %765 = vmatpush1.msra.mxu0 0.0
    %766 = vmatprep.subr.mxu0 0.0
    %767 = vmatpush1.msra.mxu0 0.0
    %768 = vmatprep.subr.mxu0 0.0
    %769 = vmatpush1.msra.mxu0 0.0
    %770 = vmatprep.subr.mxu0 0.0
    %771 = vmatpush1.msra.mxu0 0.0
    %772 = vmatprep.subr.mxu0 0.0
    %773 = vmatpush1.msra.mxu0 0.0
    %774 = vmatprep.subr.mxu0 0.0
    %775 = vmatpush1.msra.mxu0 0.0
    %776 = vmatprep.subr.mxu0 0.0
    %777 = vmatpush1.msra.mxu0 0.0
    %778 = vmatprep.subr.mxu0 0.0
    %779 = vmatpush1.msra.mxu0 0.0
    %780 = vmatprep.subr.mxu0 0.0
    %781 = vmatpush1.msra.mxu0 0.0
    %782 = vmatprep.subr.mxu0 0.0
    %783 = vmatpush1.msra.mxu0 0.0
    %784 = vmatprep.subr.mxu0 0.0
    %785 = vmatpush1.msra.mxu0 0.0
    %786 = vmatprep.subr.mxu0 0.0
    %787 = vmatpush1.msra.mxu0 0.0
    %788 = vmatprep.subr.mxu0 0.0
    %789 = vmatpush1.msra.mxu0 0.0
    %790 = vmatprep.subr.mxu0 0.0
    %791 = vmatpush1.msra.mxu0 0.0
    %792 = vmatprep.subr.mxu0 0.0
    %793 = vmatpush1.msra.mxu0 0.0
    %794 = vmatprep.subr.mxu0 0.0
    %795 = vmatpush1.msra.mxu0 0.0
    %796 = vmatprep.subr.mxu0 0.0
    %797 = vmatpush1.msra.mxu0 0.0
    %798 = vmatprep.subr.mxu0 0.0
    %799 = vmatpush1.msra.mxu0 0.0
    %800 = vmatprep.mubr.f32.mxu0 0.0
    %801 = vmatmul.mubr.f32.gmra.mrb[0].mxu0 %v731
    %v802 = vpop.f32.mrb[0].mxu0
    %v803 = vadd.f32 %v728, %v802
    %v804 = vpop.f32.mrb[0].mxu0
    %805 = vdwg.mxu0
    %v806 = vmax.f32 %v803, 0.0
    %v807 = vld [vmem:[%s35] sm:$0xff]
    %v808 = vld [vmem:[%s35 + $0x8] sm:$0xff]
    %v809 = vld [vmem:[%s35 + $0x10] sm:$0xff]
    %v810 = vld [vmem:[%s35 + $0x18] sm:$0xff]
    %v811 = vld [vmem:[%s35 + $0x20] sm:$0xff]
    %v812 = vld [vmem:[%s35 + $0x28] sm:$0xff]
    %v813 = vld [vmem:[%s35 + $0x30] sm:$0x3]
    %v814 = vld [vmem:[%s37] sm:$0x1]
    %v816 = vlaneseq
    %v817 = vshrl.u32 %v816, 7
    %v818 = vsub.s32 0, %v817
    %v819 = vrot.slane %v814, %v818
    %v822 = vsel %vm497, %v806, 0
    %v825 = vsel %vm513, %v813, 0
    %827 = vmatprep.subr.mxu0 0.0
    %828 = vmatpush1.msra.mxu0 %v807
    %829 = vmatprep.subr.mxu0 0.0
    %830 = vmatpush1.msra.mxu0 %v808
    %831 = vmatprep.subr.mxu0 0.0
    %832 = vmatpush1.msra.mxu0 %v809
    %833 = vmatprep.subr.mxu0 0.0
    %834 = vmatpush1.msra.mxu0 %v810
    %835 = vmatprep.subr.mxu0 0.0
    %836 = vmatpush1.msra.mxu0 %v811
    %837 = vmatprep.subr.mxu0 0.0
    %838 = vmatpush1.msra.mxu0 %v812
    %839 = vmatprep.subr.mxu0 0.0
    %840 = vmatpush1.msra.mxu0 %v825
    %841 = vmatprep.subr.mxu0 0.0
    %842 = vmatpush1.msra.mxu0 0.0
    %843 = vmatprep.subr.mxu0 0.0
    %844 = vmatpush1.msra.mxu0 0.0
    %845 = vmatprep.subr.mxu0 0.0
    %846 = vmatpush1.msra.mxu0 0.0
    %847 = vmatprep.subr.mxu0 0.0
    %848 = vmatpush1.msra.mxu0 0.0
    %849 = vmatprep.subr.mxu0 0.0
    %850 = vmatpush1.msra.mxu0 0.0
    %851 = vmatprep.subr.mxu0 0.0
    %852 = vmatpush1.msra.mxu0 0.0
    %853 = vmatprep.subr.mxu0 0.0
    %854 = vmatpush1.msra.mxu0 0.0
    %855 = vmatprep.subr.mxu0 0.0
    %856 = vmatpush1.msra.mxu0 0.0
    %857 = vmatprep.subr.mxu0 0.0
    %858 = vmatpush1.msra.mxu0 0.0
    %859 = vmatprep.subr.mxu0 0.0
    %860 = vmatpush1.msra.mxu0 0.0
    %861 = vmatprep.subr.mxu0 0.0
    %862 = vmatpush1.msra.mxu0 0.0
    %863 = vmatprep.subr.mxu0 0.0
    %864 = vmatpush1.msra.mxu0 0.0
    %865 = vmatprep.subr.mxu0 0.0
    %866 = vmatpush1.msra.mxu0 0.0
    %867 = vmatprep.subr.mxu0 0.0
    %868 = vmatpush1.msra.mxu0 0.0
    %869 = vmatprep.subr.mxu0 0.0
    %870 = vmatpush1.msra.mxu0 0.0
    %871 = vmatprep.subr.mxu0 0.0
    %872 = vmatpush1.msra.mxu0 0.0
    %873 = vmatprep.subr.mxu0 0.0
    %874 = vmatpush1.msra.mxu0 0.0
    %875 = vmatprep.subr.mxu0 0.0
    %876 = vmatpush1.msra.mxu0 0.0
    %877 = vmatprep.subr.mxu0 0.0
    %878 = vmatpush1.msra.mxu0 0.0
    %879 = vmatprep.subr.mxu0 0.0
    %880 = vmatpush1.msra.mxu0 0.0
    %881 = vmatprep.subr.mxu0 0.0
    %882 = vmatpush1.msra.mxu0 0.0
    %883 = vmatprep.subr.mxu0 0.0
    %884 = vmatpush1.msra.mxu0 0.0
    %885 = vmatprep.subr.mxu0 0.0
    %886 = vmatpush1.msra.mxu0 0.0
    %887 = vmatprep.subr.mxu0 0.0
    %888 = vmatpush1.msra.mxu0 0.0
    %889 = vmatprep.subr.mxu0 0.0
    %890 = vmatpush1.msra.mxu0 0.0
    %891 = vmatprep.mubr.f32.mxu0 0.0
    %892 = vmatmul.mubr.f32.gmra.mrb[0].mxu0 %v822
    %v893 = vpop.f32.mrb[0].mxu0
    %v894 = vadd.f32 %v819, %v893
    %v895 = vpop.f32.mrb[0].mxu0
    %896 = vdwg.mxu0
    %v897 = vmax.f32 %v894, 0.0
    %v898 = vld [vmem:[%s39] sm:$0xff]
    %v899 = vld [vmem:[%s39 + $0x8] sm:$0xff]
    %v900 = vld [vmem:[%s39 + $0x10] sm:$0xff]
    %v901 = vld [vmem:[%s39 + $0x18] sm:$0xff]
    %v902 = vld [vmem:[%s39 + $0x20] sm:$0xff]
    %v903 = vld [vmem:[%s39 + $0x28] sm:$0xff]
    %v904 = vld [vmem:[%s39 + $0x30] sm:$0xff]
    %v905 = vld [vmem:[%s39 + $0x38] sm:$0xff]
    %v906 = vld [vmem:[%s39 + $0x40] sm:$0xff]
    %v907 = vld [vmem:[%s39 + $0x48] sm:$0xff]
    %v908 = vld [vmem:[%s39 + $0x50] sm:$0xff]
    %v909 = vld [vmem:[%s39 + $0x58] sm:$0xff]
    %v910 = vld [vmem:[%s41] sm:$0x1]
    %v912 = vlaneseq
    %v913 = vshrl.u32 %v912, 7
    %v914 = vsub.s32 0, %v913
    %v915 = vrot.slane %v910, %v914
    %917 = vrot.lane.b32.xlu0 %v223, 112
    %v918 = vpop.permute.xlu0 %917
    %vm919 = vcmask 785408
    %v920 = vsel %vm919, %v918, 0
    %922 = vmatprep.subr.mxu0 0.0
    %923 = vmatpush1.msra.mxu0 %v898
    %924 = vmatprep.subr.mxu0 0.0
    %925 = vmatpush1.msra.mxu0 %v899
    %926 = vmatprep.subr.mxu0 0.0
    %927 = vmatpush1.msra.mxu0 %v900
    %928 = vmatprep.subr.mxu0 0.0
    %929 = vmatpush1.msra.mxu0 %v901
    %930 = vmatprep.subr.mxu0 0.0
    %931 = vmatpush1.msra.mxu0 %v902
    %932 = vmatprep.subr.mxu0 0.0
    %933 = vmatpush1.msra.mxu0 %v903
    %934 = vmatprep.subr.mxu0 0.0
    %935 = vmatpush1.msra.mxu0 %v904
    %936 = vmatprep.subr.mxu0 0.0
    %937 = vmatpush1.msra.mxu0 %v905
    %938 = vmatprep.subr.mxu0 0.0
    %939 = vmatpush1.msra.mxu0 %v906
    %940 = vmatprep.subr.mxu0 0.0
    %941 = vmatpush1.msra.mxu0 %v907
    %942 = vmatprep.subr.mxu0 0.0
    %943 = vmatpush1.msra.mxu0 %v908
    %944 = vmatprep.subr.mxu0 0.0
    %945 = vmatpush1.msra.mxu0 %v909
    %946 = vmatprep.subr.mxu0 0.0
    %947 = vmatpush1.msra.mxu0 0.0
    %948 = vmatprep.subr.mxu0 0.0
    %949 = vmatpush1.msra.mxu0 0.0
    %950 = vmatprep.subr.mxu0 0.0
    %951 = vmatpush1.msra.mxu0 0.0
    %952 = vmatprep.subr.mxu0 0.0
    %953 = vmatpush1.msra.mxu0 0.0
    %954 = vmatprep.subr.mxu0 0.0
    %955 = vmatpush1.msra.mxu0 0.0
    %956 = vmatprep.subr.mxu0 0.0
    %957 = vmatpush1.msra.mxu0 0.0
    %958 = vmatprep.subr.mxu0 0.0
    %959 = vmatpush1.msra.mxu0 0.0
    %960 = vmatprep.subr.mxu0 0.0
    %961 = vmatpush1.msra.mxu0 0.0
    %962 = vmatprep.subr.mxu0 0.0
    %963 = vmatpush1.msra.mxu0 0.0
    %964 = vmatprep.subr.mxu0 0.0
    %965 = vmatpush1.msra.mxu0 0.0
    %966 = vmatprep.subr.mxu0 0.0
    %967 = vmatpush1.msra.mxu0 0.0
    %968 = vmatprep.subr.mxu0 0.0
    %969 = vmatpush1.msra.mxu0 0.0
    %970 = vmatprep.subr.mxu0 0.0
    %971 = vmatpush1.msra.mxu0 0.0
    %972 = vmatprep.subr.mxu0 0.0
    %973 = vmatpush1.msra.mxu0 0.0
    %974 = vmatprep.subr.mxu0 0.0
    %975 = vmatpush1.msra.mxu0 0.0
    %976 = vmatprep.subr.mxu0 0.0
    %977 = vmatpush1.msra.mxu0 0.0
    %978 = vmatprep.subr.mxu0 0.0
    %979 = vmatpush1.msra.mxu0 0.0
    %980 = vmatprep.subr.mxu0 0.0
    %981 = vmatpush1.msra.mxu0 0.0
    %982 = vmatprep.subr.mxu0 0.0
    %983 = vmatpush1.msra.mxu0 0.0
    %984 = vmatprep.subr.mxu0 0.0
    %985 = vmatpush1.msra.mxu0 0.0
    %986 = vmatprep.mubr.f32.mxu0 0.0
    %987 = vmatmul.mubr.f32.gmra.mrb[0].mxu0 %v920
    %v988 = vpop.f32.mrb[0].mxu0
    %v989 = vadd.f32 %v915, %v988
    %v990 = vpop.f32.mrb[0].mxu0
    %991 = vdwg.mxu0
    %v992 = vmax.f32 %v989, 0.0
    %v993 = vld [vmem:[%s43] sm:$0xff]
    %v994 = vld [vmem:[%s43 + $0x8] sm:$0xff]
    %v995 = vld [vmem:[%s43 + $0x10] sm:$0xff]
    %v996 = vld [vmem:[%s43 + $0x18] sm:$0xff]
    %v997 = vld [vmem:[%s43 + $0x20] sm:$0xff]
    %v998 = vld [vmem:[%s43 + $0x28] sm:$0xff]
    %v999 = vld [vmem:[%s43 + $0x30] sm:$0xff]
    %v1000 = vld [vmem:[%s43 + $0x38] sm:$0xff]
    %v1001 = vld [vmem:[%s43 + $0x40] sm:$0xff]
    %v1002 = vld [vmem:[%s43 + $0x48] sm:$0xff]
    %v1003 = vld [vmem:[%s43 + $0x50] sm:$0xff]
    %v1004 = vld [vmem:[%s43 + $0x58] sm:$0xff]
    %v1005 = vld [vmem:[%s43 + $0x60] sm:$0xf]
    %v1006 = vld [vmem:[%s45] sm:$0x1]
    %v1008 = vlaneseq
    %v1009 = vshrl.u32 %v1008, 7
    %v1010 = vsub.s32 0, %v1009
    %v1011 = vrot.slane %v1006, %v1010
    %v1014 = vsel %vm368, %v992, 0
    %v1017 = vsel %vm384, %v1005, 0
    %1019 = vmatprep.subr.mxu0 0.0
    %1020 = vmatpush1.msra.mxu0 %v993
    %1021 = vmatprep.subr.mxu0 0.0
    %1022 = vmatpush1.msra.mxu0 %v994
    %1023 = vmatprep.subr.mxu0 0.0
    %1024 = vmatpush1.msra.mxu0 %v995
    %1025 = vmatprep.subr.mxu0 0.0
    %1026 = vmatpush1.msra.mxu0 %v996
    %1027 = vmatprep.subr.mxu0 0.0
    %1028 = vmatpush1.msra.mxu0 %v997
    %1029 = vmatprep.subr.mxu0 0.0
    %1030 = vmatpush1.msra.mxu0 %v998
    %1031 = vmatprep.subr.mxu0 0.0
    %1032 = vmatpush1.msra.mxu0 %v999
    %1033 = vmatprep.subr.mxu0 0.0
    %1034 = vmatpush1.msra.mxu0 %v1000
    %1035 = vmatprep.subr.mxu0 0.0
    %1036 = vmatpush1.msra.mxu0 %v1001
    %1037 = vmatprep.subr.mxu0 0.0
    %1038 = vmatpush1.msra.mxu0 %v1002
    %1039 = vmatprep.subr.mxu0 0.0
    %1040 = vmatpush1.msra.mxu0 %v1003
    %1041 = vmatprep.subr.mxu0 0.0
    %1042 = vmatpush1.msra.mxu0 %v1004
    %1043 = vmatprep.subr.mxu0 0.0
    %1044 = vmatpush1.msra.mxu0 %v1017
    %1045 = vmatprep.subr.mxu0 0.0
    %1046 = vmatpush1.msra.mxu0 0.0
    %1047 = vmatprep.subr.mxu0 0.0
    %1048 = vmatpush1.msra.mxu0 0.0
    %1049 = vmatprep.subr.mxu0 0.0
    %1050 = vmatpush1.msra.mxu0 0.0
    %1051 = vmatprep.subr.mxu0 0.0
    %1052 = vmatpush1.msra.mxu0 0.0
    %1053 = vmatprep.subr.mxu0 0.0
    %1054 = vmatpush1.msra.mxu0 0.0
    %1055 = vmatprep.subr.mxu0 0.0
    %1056 = vmatpush1.msra.mxu0 0.0
    %1057 = vmatprep.subr.mxu0 0.0
    %1058 = vmatpush1.msra.mxu0 0.0
    %1059 = vmatprep.subr.mxu0 0.0
    %1060 = vmatpush1.msra.mxu0 0.0
    %1061 = vmatprep.subr.mxu0 0.0
    %1062 = vmatpush1.msra.mxu0 0.0
    %1063 = vmatprep.subr.mxu0 0.0
    %1064 = vmatpush1.msra.mxu0 0.0
    %1065 = vmatprep.subr.mxu0 0.0
    %1066 = vmatpush1.msra.mxu0 0.0
    %1067 = vmatprep.subr.mxu0 0.0
    %1068 = vmatpush1.msra.mxu0 0.0
    %1069 = vmatprep.subr.mxu0 0.0
    %1070 = vmatpush1.msra.mxu0 0.0
    %1071 = vmatprep.subr.mxu0 0.0
    %1072 = vmatpush1.msra.mxu0 0.0
    %1073 = vmatprep.subr.mxu0 0.0
    %1074 = vmatpush1.msra.mxu0 0.0
    %1075 = vmatprep.subr.mxu0 0.0
    %1076 = vmatpush1.msra.mxu0 0.0
    %1077 = vmatprep.subr.mxu0 0.0
    %1078 = vmatpush1.msra.mxu0 0.0
    %1079 = vmatprep.subr.mxu0 0.0
    %1080 = vmatpush1.msra.mxu0 0.0
    %1081 = vmatprep.subr.mxu0 0.0
    %1082 = vmatpush1.msra.mxu0 0.0
    %1083 = vmatprep.mubr.f32.mxu0 0.0
    %1084 = vmatmul.mubr.f32.gmra.mrb[0].mxu0 %v1014
    %v1085 = vpop.f32.mrb[0].mxu0
    %v1086 = vadd.f32 %v1011, %v1085
    %v1087 = vpop.f32.mrb[0].mxu0
    %1088 = vdwg.mxu0
    %v1089 = vmax.f32 %v1086, 0.0
    %v1090 = vld [vmem:[%s47] sm:$0xff]
    %v1091 = vld [vmem:[%s47 + $0x8] sm:$0xff]
    %v1092 = vld [vmem:[%s47 + $0x10] sm:$0xff]
    %v1093 = vld [vmem:[%s47 + $0x18] sm:$0xff]
    %v1094 = vld [vmem:[%s47 + $0x20] sm:$0xff]
    %v1095 = vld [vmem:[%s47 + $0x28] sm:$0xff]
    %v1096 = vld [vmem:[%s47 + $0x30] sm:$0x3]
    %v1097 = vld [vmem:[%s49] sm:$0x1]
    %v1099 = vlaneseq
    %v1100 = vshrl.u32 %v1099, 7
    %v1101 = vsub.s32 0, %v1100
    %v1102 = vrot.slane %v1097, %v1101
    %v1105 = vsel %vm497, %v1089, 0
    %v1108 = vsel %vm513, %v1096, 0
    %1110 = vmatprep.subr.mxu0 0.0
    %1111 = vmatpush1.msra.mxu0 %v1090
    %1112 = vmatprep.subr.mxu0 0.0
    %1113 = vmatpush1.msra.mxu0 %v1091
    %1114 = vmatprep.subr.mxu0 0.0
    %1115 = vmatpush1.msra.mxu0 %v1092
    %1116 = vmatprep.subr.mxu0 0.0
    %1117 = vmatpush1.msra.mxu0 %v1093
    %1118 = vmatprep.subr.mxu0 0.0
    %1119 = vmatpush1.msra.mxu0 %v1094
    %1120 = vmatprep.subr.mxu0 0.0
    %1121 = vmatpush1.msra.mxu0 %v1095
    %1122 = vmatprep.subr.mxu0 0.0
    %1123 = vmatpush1.msra.mxu0 %v1108
    %1124 = vmatprep.subr.mxu0 0.0
    %1125 = vmatpush1.msra.mxu0 0.0
    %1126 = vmatprep.subr.mxu0 0.0
    %1127 = vmatpush1.msra.mxu0 0.0
    %1128 = vmatprep.subr.mxu0 0.0
    %1129 = vmatpush1.msra.mxu0 0.0
    %1130 = vmatprep.subr.mxu0 0.0
    %1131 = vmatpush1.msra.mxu0 0.0
    %1132 = vmatprep.subr.mxu0 0.0
    %1133 = vmatpush1.msra.mxu0 0.0
    %1134 = vmatprep.subr.mxu0 0.0
    %1135 = vmatpush1.msra.mxu0 0.0
    %1136 = vmatprep.subr.mxu0 0.0
    %1137 = vmatpush1.msra.mxu0 0.0
    %1138 = vmatprep.subr.mxu0 0.0
    %1139 = vmatpush1.msra.mxu0 0.0
    %1140 = vmatprep.subr.mxu0 0.0
    %1141 = vmatpush1.msra.mxu0 0.0
    %1142 = vmatprep.subr.mxu0 0.0
    %1143 = vmatpush1.msra.mxu0 0.0
    %1144 = vmatprep.subr.mxu0 0.0
    %1145 = vmatpush1.msra.mxu0 0.0
    %1146 = vmatprep.subr.mxu0 0.0
    %1147 = vmatpush1.msra.mxu0 0.0
    %1148 = vmatprep.subr.mxu0 0.0
    %1149 = vmatpush1.msra.mxu0 0.0
    %1150 = vmatprep.subr.mxu0 0.0
    %1151 = vmatpush1.msra.mxu0 0.0
    %1152 = vmatprep.subr.mxu0 0.0
    %1153 = vmatpush1.msra.mxu0 0.0
    %1154 = vmatprep.subr.mxu0 0.0
    %1155 = vmatpush1.msra.mxu0 0.0
    %1156 = vmatprep.subr.mxu0 0.0
    %1157 = vmatpush1.msra.mxu0 0.0
    %1158 = vmatprep.subr.mxu0 0.0
    %1159 = vmatpush1.msra.mxu0 0.0
    %1160 = vmatprep.subr.mxu0 0.0
    %1161 = vmatpush1.msra.mxu0 0.0
    %1162 = vmatprep.subr.mxu0 0.0
    %1163 = vmatpush1.msra.mxu0 0.0
    %1164 = vmatprep.subr.mxu0 0.0
    %1165 = vmatpush1.msra.mxu0 0.0
    %1166 = vmatprep.subr.mxu0 0.0
    %1167 = vmatpush1.msra.mxu0 0.0
    %1168 = vmatprep.subr.mxu0 0.0
    %1169 = vmatpush1.msra.mxu0 0.0
    %1170 = vmatprep.subr.mxu0 0.0
    %1171 = vmatpush1.msra.mxu0 0.0
    %1172 = vmatprep.subr.mxu0 0.0
    %1173 = vmatpush1.msra.mxu0 0.0
    %1174 = vmatprep.mubr.f32.mxu0 0.0
    %1175 = vmatmul.mubr.f32.gmra.mrb[0].mxu0 %v1105
    %v1176 = vpop.f32.mrb[0].mxu0
    %v1177 = vadd.f32 %v1102, %v1176
    %v1178 = vpop.f32.mrb[0].mxu0
    %1179 = vdwg.mxu0
    %v1180 = vmax.f32 %v1177, 0.0
    %1181 = vrot.lane.b32.xlu0 %v609, 16
    %v1182 = vpop.permute.xlu0 %1181
    %v1184 = vsel %vm242, %v613, %v1182
    %1185 = vrot.lane.b32.xlu0 %v224, 80
    %v1186 = vpop.permute.xlu0 %1185
    %1189 = vrot.lane.b32.xlu0 %v611, 16
    %v1190 = vpop.permute.xlu0 %1189
    %v1192 = vsel %vm242, %v1186, %v1190
    %v1193 = vld [vmem:[%s15] sm:$0xff]
    %v1194 = vld [vmem:[%s15 + $0x8] sm:$0xff]
    %v1195 = vld [vmem:[%s15 + $0x10] sm:$0xff]
    %v1196 = vld [vmem:[%s15 + $0x18] sm:$0xff]
    %v1197 = vld [vmem:[%s17] sm:$0x1]
    %v1199 = vlaneseq
    %v1200 = vshrl.u32 %v1199, 7
    %v1201 = vsub.s32 0, %v1200
    %v1202 = vrot.slane %v1197, %v1201
    %v1205 = vsel %vm620, %v1184, 0
    %v1208 = vsel %vm620, %v1192, 0
    %1210 = vmatprep.subr.mxu0 0.0
    %1211 = vmatpush1.msra.mxu0 %v1193
    %1212 = vmatprep.subr.mxu0 0.0
    %1213 = vmatpush1.msra.mxu0 %v1194
    %1214 = vmatprep.subr.mxu0 0.0
    %1215 = vmatpush1.msra.mxu0 %v1195
    %1216 = vmatprep.subr.mxu0 0.0
    %1217 = vmatpush1.msra.mxu0 %v1196
    %1218 = vmatprep.subr.mxu0 0.0
    %1219 = vmatpush1.msra.mxu0 0.0
    %1220 = vmatprep.subr.mxu0 0.0
    %1221 = vmatpush1.msra.mxu0 0.0
    %1222 = vmatprep.subr.mxu0 0.0
    %1223 = vmatpush1.msra.mxu0 0.0
    %1224 = vmatprep.subr.mxu0 0.0
    %1225 = vmatpush1.msra.mxu0 0.0
    %1226 = vmatprep.subr.mxu0 0.0
    %1227 = vmatpush1.msra.mxu0 0.0
    %1228 = vmatprep.subr.mxu0 0.0
    %1229 = vmatpush1.msra.mxu0 0.0
    %1230 = vmatprep.subr.mxu0 0.0
    %1231 = vmatpush1.msra.mxu0 0.0
    %1232 = vmatprep.subr.mxu0 0.0
    %1233 = vmatpush1.msra.mxu0 0.0
    %1234 = vmatprep.subr.mxu0 0.0
    %1235 = vmatpush1.msra.mxu0 0.0
    %1236 = vmatprep.subr.mxu0 0.0
    %1237 = vmatpush1.msra.mxu0 0.0
    %1238 = vmatprep.subr.mxu0 0.0
    %1239 = vmatpush1.msra.mxu0 0.0
    %1240 = vmatprep.subr.mxu0 0.0
    %1241 = vmatpush1.msra.mxu0 0.0
    %1242 = vmatprep.subr.mxu0 0.0
    %1243 = vmatpush1.msra.mxu0 0.0
    %1244 = vmatprep.subr.mxu0 0.0
    %1245 = vmatpush1.msra.mxu0 0.0
    %1246 = vmatprep.subr.mxu0 0.0
    %1247 = vmatpush1.msra.mxu0 0.0
    %1248 = vmatprep.subr.mxu0 0.0
    %1249 = vmatpush1.msra.mxu0 0.0
    %1250 = vmatprep.subr.mxu0 0.0
    %1251 = vmatpush1.msra.mxu0 0.0
    %1252 = vmatprep.subr.mxu0 0.0
    %1253 = vmatpush1.msra.mxu0 0.0
    %1254 = vmatprep.subr.mxu0 0.0
    %1255 = vmatpush1.msra.mxu0 0.0
    %1256 = vmatprep.subr.mxu0 0.0
    %1257 = vmatpush1.msra.mxu0 0.0
    %1258 = vmatprep.subr.mxu0 0.0
    %1259 = vmatpush1.msra.mxu0 0.0
    %1260 = vmatprep.subr.mxu0 0.0
    %1261 = vmatpush1.msra.mxu0 0.0
    %1262 = vmatprep.subr.mxu0 0.0
    %1263 = vmatpush1.msra.mxu0 0.0
    %1264 = vmatprep.subr.mxu0 0.0
    %1265 = vmatpush1.msra.mxu0 0.0
    %1266 = vmatprep.subr.mxu0 0.0
    %1267 = vmatpush1.msra.mxu0 0.0
    %1268 = vmatprep.subr.mxu0 0.0
    %1269 = vmatpush1.msra.mxu0 0.0
    %1270 = vmatprep.subr.mxu0 0.0
    %1271 = vmatpush1.msra.mxu0 0.0
    %1272 = vmatprep.subr.mxu0 0.0
    %1273 = vmatpush1.msra.mxu0 0.0
    %1274 = vmatprep.mubr.f32.mxu0 0.0
    %1275 = vmatmul.mubr.f32.gmra.mrb[0].mxu0 %v1205
    %v1276 = vpop.f32.mrb[0].mxu0
    %v1277 = vadd.f32 %v1202, %v1276
    %v1278 = vpop.f32.mrb[0].mxu0
    %1279 = vmatprep.mubr.f32.mxu0 0.0
    %1280 = vmatmul.mubr.f32.gmra.mrb[0].mxu0 %v1208
    %v1281 = vpop.f32.mrb[0].mxu0
    %v1282 = vadd.f32 %v1202, %v1281
    %v1283 = vpop.f32.mrb[0].mxu0
    %1284 = vdwg.mxu0
    %v1285 = vmax.f32 %v1277, 0.0
    %v1286 = vmax.f32 %v1282, 0.0
    %v1287 = vld [vmem:[%s19] sm:$0xff]
    %v1288 = vld [vmem:[%s19 + $0x8] sm:$0xff]
    %v1289 = vld [vmem:[%s19 + $0x10] sm:$0xff]
    %v1290 = vld [vmem:[%s19 + $0x18] sm:$0xff]
    %v1291 = vld [vmem:[%s19 + $0x20] sm:$0xff]
    %v1292 = vld [vmem:[%s19 + $0x28] sm:$0xff]
    %v1293 = vld [vmem:[%s19 + $0x30] sm:$0xff]
    %v1294 = vld [vmem:[%s19 + $0x38] sm:$0xff]
    %v1295 = vld [vmem:[%s19 + $0x40] sm:$0xff]
    %v1296 = vld [vmem:[%s19 + $0x48] sm:$0xff]
    %v1297 = vld [vmem:[%s19 + $0x50] sm:$0xff]
    %v1298 = vld [vmem:[%s19 + $0x58] sm:$0xff]
    %v1299 = vld [vmem:[%s19 + $0x60] sm:$0xf]
    %v1300 = vld [vmem:[%s21] sm:$0x1]
    %v1302 = vlaneseq
    %v1303 = vshrl.u32 %v1302, 7
    %v1304 = vsub.s32 0, %v1303
    %v1305 = vrot.slane %v1300, %v1304
    %v1308 = vsel %vm368, %v1285, 0
    %v1311 = vsel %vm368, %v1286, 0
    %v1314 = vsel %vm384, %v1299, 0
    %1316 = vmatprep.subr.mxu0 0.0
    %1317 = vmatpush1.msra.mxu0 %v1287
    %1318 = vmatprep.subr.mxu0 0.0
    %1319 = vmatpush1.msra.mxu0 %v1288
    %1320 = vmatprep.subr.mxu0 0.0
    %1321 = vmatpush1.msra.mxu0 %v1289
    %1322 = vmatprep.subr.mxu0 0.0
    %1323 = vmatpush1.msra.mxu0 %v1290
    %1324 = vmatprep.subr.mxu0 0.0
    %1325 = vmatpush1.msra.mxu0 %v1291
    %1326 = vmatprep.subr.mxu0 0.0
    %1327 = vmatpush1.msra.mxu0 %v1292
    %1328 = vmatprep.subr.mxu0 0.0
    %1329 = vmatpush1.msra.mxu0 %v1293
    %1330 = vmatprep.subr.mxu0 0.0
    %1331 = vmatpush1.msra.mxu0 %v1294
    %1332 = vmatprep.subr.mxu0 0.0
    %1333 = vmatpush1.msra.mxu0 %v1295
    %1334 = vmatprep.subr.mxu0 0.0
    %1335 = vmatpush1.msra.mxu0 %v1296
    %1336 = vmatprep.subr.mxu0 0.0
    %1337 = vmatpush1.msra.mxu0 %v1297
    %1338 = vmatprep.subr.mxu0 0.0
    %1339 = vmatpush1.msra.mxu0 %v1298
    %1340 = vmatprep.subr.mxu0 0.0
    %1341 = vmatpush1.msra.mxu0 %v1314
    %1342 = vmatprep.subr.mxu0 0.0
    %1343 = vmatpush1.msra.mxu0 0.0
    %1344 = vmatprep.subr.mxu0 0.0
    %1345 = vmatpush1.msra.mxu0 0.0
    %1346 = vmatprep.subr.mxu0 0.0
    %1347 = vmatpush1.msra.mxu0 0.0
    %1348 = vmatprep.subr.mxu0 0.0
    %1349 = vmatpush1.msra.mxu0 0.0
    %1350 = vmatprep.subr.mxu0 0.0
    %1351 = vmatpush1.msra.mxu0 0.0
    %1352 = vmatprep.subr.mxu0 0.0
    %1353 = vmatpush1.msra.mxu0 0.0
    %1354 = vmatprep.subr.mxu0 0.0
    %1355 = vmatpush1.msra.mxu0 0.0
    %1356 = vmatprep.subr.mxu0 0.0
    %1357 = vmatpush1.msra.mxu0 0.0
    %1358 = vmatprep.subr.mxu0 0.0
    %1359 = vmatpush1.msra.mxu0 0.0
    %1360 = vmatprep.subr.mxu0 0.0
    %1361 = vmatpush1.msra.mxu0 0.0
    %1362 = vmatprep.subr.mxu0 0.0
    %1363 = vmatpush1.msra.mxu0 0.0
    %1364 = vmatprep.subr.mxu0 0.0
    %1365 = vmatpush1.msra.mxu0 0.0
    %1366 = vmatprep.subr.mxu0 0.0
    %1367 = vmatpush1.msra.mxu0 0.0
    %1368 = vmatprep.subr.mxu0 0.0
    %1369 = vmatpush1.msra.mxu0 0.0
    %1370 = vmatprep.subr.mxu0 0.0
    %1371 = vmatpush1.msra.mxu0 0.0
    %1372 = vmatprep.subr.mxu0 0.0
    %1373 = vmatpush1.msra.mxu0 0.0
    %1374 = vmatprep.subr.mxu0 0.0
    %1375 = vmatpush1.msra.mxu0 0.0
    %1376 = vmatprep.subr.mxu0 0.0
    %1377 = vmatpush1.msra.mxu0 0.0
    %1378 = vmatprep.subr.mxu0 0.0
    %1379 = vmatpush1.msra.mxu0 0.0
    %1380 = vmatprep.mubr.f32.mxu0 0.0
    %1381 = vmatmul.mubr.f32.gmra.mrb[0].mxu0 %v1308
    %v1382 = vpop.f32.mrb[0].mxu0
    %v1383 = vadd.f32 %v1305, %v1382
    %v1384 = vpop.f32.mrb[0].mxu0
    %1385 = vmatprep.mubr.f32.mxu0 0.0
    %1386 = vmatmul.mubr.f32.gmra.mrb[0].mxu0 %v1311
    %v1387 = vpop.f32.mrb[0].mxu0
    %v1388 = vadd.f32 %v1305, %v1387
    %v1389 = vpop.f32.mrb[0].mxu0
    %1390 = vdwg.mxu0
    %v1391 = vmax.f32 %v1383, 0.0
    %v1392 = vmax.f32 %v1388, 0.0
    %v1393 = vld [vmem:[%s23] sm:$0xff]
    %v1394 = vld [vmem:[%s23 + $0x8] sm:$0xff]
    %v1395 = vld [vmem:[%s23 + $0x10] sm:$0xff]
    %v1396 = vld [vmem:[%s23 + $0x18] sm:$0xff]
    %v1397 = vld [vmem:[%s23 + $0x20] sm:$0xff]
    %v1398 = vld [vmem:[%s23 + $0x28] sm:$0xff]
    %v1399 = vld [vmem:[%s23 + $0x30] sm:$0x3]
    %v1400 = vld [vmem:[%s25] sm:$0x1]
    %v1402 = vlaneseq
    %v1403 = vshrl.u32 %v1402, 7
    %v1404 = vsub.s32 0, %v1403
    %v1405 = vrot.slane %v1400, %v1404
    %v1408 = vsel %vm497, %v1391, 0
    %v1411 = vsel %vm497, %v1392, 0
    %v1414 = vsel %vm513, %v1399, 0
    %1416 = vmatprep.subr.mxu0 0.0
    %1417 = vmatpush1.msra.mxu0 %v1393
    %1418 = vmatprep.subr.mxu0 0.0
    %1419 = vmatpush1.msra.mxu0 %v1394
    %1420 = vmatprep.subr.mxu0 0.0
    %1421 = vmatpush1.msra.mxu0 %v1395
    %1422 = vmatprep.subr.mxu0 0.0
    %1423 = vmatpush1.msra.mxu0 %v1396
    %1424 = vmatprep.subr.mxu0 0.0
    %1425 = vmatpush1.msra.mxu0 %v1397
    %1426 = vmatprep.subr.mxu0 0.0
    %1427 = vmatpush1.msra.mxu0 %v1398
    %1428 = vmatprep.subr.mxu0 0.0
    %1429 = vmatpush1.msra.mxu0 %v1414
    %1430 = vmatprep.subr.mxu0 0.0
    %1431 = vmatpush1.msra.mxu0 0.0
    %1432 = vmatprep.subr.mxu0 0.0
    %1433 = vmatpush1.msra.mxu0 0.0
    %1434 = vmatprep.subr.mxu0 0.0
    %1435 = vmatpush1.msra.mxu0 0.0
    %1436 = vmatprep.subr.mxu0 0.0
    %1437 = vmatpush1.msra.mxu0 0.0
    %1438 = vmatprep.subr.mxu0 0.0
    %1439 = vmatpush1.msra.mxu0 0.0
    %1440 = vmatprep.subr.mxu0 0.0
    %1441 = vmatpush1.msra.mxu0 0.0
    %1442 = vmatprep.subr.mxu0 0.0
    %1443 = vmatpush1.msra.mxu0 0.0
    %1444 = vmatprep.subr.mxu0 0.0
    %1445 = vmatpush1.msra.mxu0 0.0
    %1446 = vmatprep.subr.mxu0 0.0
    %1447 = vmatpush1.msra.mxu0 0.0
    %1448 = vmatprep.subr.mxu0 0.0
    %1449 = vmatpush1.msra.mxu0 0.0
    %1450 = vmatprep.subr.mxu0 0.0
    %1451 = vmatpush1.msra.mxu0 0.0
    %1452 = vmatprep.subr.mxu0 0.0
    %1453 = vmatpush1.msra.mxu0 0.0
    %1454 = vmatprep.subr.mxu0 0.0
    %1455 = vmatpush1.msra.mxu0 0.0
    %1456 = vmatprep.subr.mxu0 0.0
    %1457 = vmatpush1.msra.mxu0 0.0
    %1458 = vmatprep.subr.mxu0 0.0
    %1459 = vmatpush1.msra.mxu0 0.0
    %1460 = vmatprep.subr.mxu0 0.0
    %1461 = vmatpush1.msra.mxu0 0.0
    %1462 = vmatprep.subr.mxu0 0.0
    %1463 = vmatpush1.msra.mxu0 0.0
    %1464 = vmatprep.subr.mxu0 0.0
    %1465 = vmatpush1.msra.mxu0 0.0
    %1466 = vmatprep.subr.mxu0 0.0
    %1467 = vmatpush1.msra.mxu0 0.0
    %1468 = vmatprep.subr.mxu0 0.0
    %1469 = vmatpush1.msra.mxu0 0.0
    %1470 = vmatprep.subr.mxu0 0.0
    %1471 = vmatpush1.msra.mxu0 0.0
    %1472 = vmatprep.subr.mxu0 0.0
    %1473 = vmatpush1.msra.mxu0 0.0
    %1474 = vmatprep.subr.mxu0 0.0
    %1475 = vmatpush1.msra.mxu0 0.0
    %1476 = vmatprep.subr.mxu0 0.0
    %1477 = vmatpush1.msra.mxu0 0.0
    %1478 = vmatprep.subr.mxu0 0.0
    %1479 = vmatpush1.msra.mxu0 0.0
    %1480 = vmatprep.mubr.f32.mxu0 0.0
    %1481 = vmatmul.mubr.f32.gmra.mrb[0].mxu0 %v1408
    %v1482 = vpop.f32.mrb[0].mxu0
    %v1483 = vadd.f32 %v1405, %v1482
    %v1484 = vpop.f32.mrb[0].mxu0
    %1485 = vmatprep.mubr.f32.mxu0 0.0
    %1486 = vmatmul.mubr.f32.gmra.mrb[0].mxu0 %v1411
    %v1487 = vpop.f32.mrb[0].mxu0
    %v1488 = vadd.f32 %v1405, %v1487
    %v1489 = vpop.f32.mrb[0].mxu0
    %1490 = vdwg.mxu0
    %v1491 = vmax.f32 %v1483, 0.0
    %v1492 = vmax.f32 %v1488, 0.0
    %1494 = vrot.lane.b32.xlu0 %v897, 16
    %v1495 = vpop.permute.xlu0 %1494
    %1498 = vrot.lane.b32.xlu0 %v1491, 64
    %v1499 = vpop.permute.xlu0 %1498
    %v1501 = vsel %vm242, %v607, %v1495
    %vm1502 = vcmask 523264
    %v1503 = vsel %vm1502, %v1501, %v1499
    %v1504 = vsel %vm919, %v1503, %v224
    %v1505 = vld [vmem:[%s51] sm:$0xff]
    %v1506 = vld [vmem:[%s51 + $0x8] sm:$0xff]
    %v1507 = vld [vmem:[%s51 + $0x10] sm:$0xff]
    %v1508 = vld [vmem:[%s51 + $0x18] sm:$0xff]
    %v1509 = vld [vmem:[%s51 + $0x20] sm:$0xff]
    %v1510 = vld [vmem:[%s51 + $0x28] sm:$0xff]
    %v1511 = vld [vmem:[%s51 + $0x30] sm:$0xff]
    %v1512 = vld [vmem:[%s51 + $0x38] sm:$0xff]
    %v1513 = vld [vmem:[%s51 + $0x40] sm:$0xff]
    %v1514 = vld [vmem:[%s51 + $0x48] sm:$0xff]
    %v1515 = vld [vmem:[%s51 + $0x50] sm:$0xff]
    %v1516 = vld [vmem:[%s51 + $0x58] sm:$0xff]
    %v1517 = vld [vmem:[%s51 + $0x60] sm:$0xff]
    %v1518 = vld [vmem:[%s51 + $0x68] sm:$0xff]
    %v1519 = vld [vmem:[%s53] sm:$0x1]
    %v1521 = vlaneseq
    %v1522 = vshrl.u32 %v1521, 7
    %v1523 = vsub.s32 0, %v1522
    %v1524 = vrot.slane %v1519, %v1523
    %vm1526 = vcmask 916480
    %v1528 = vsel %vm1526, %v1504, 0
    %1530 = vmatprep.subr.mxu0 0.0
    %1531 = vmatpush1.msra.mxu0 %v1505
    %1532 = vmatprep.subr.mxu0 0.0
    %1533 = vmatpush1.msra.mxu0 %v1506
    %1534 = vmatprep.subr.mxu0 0.0
    %1535 = vmatpush1.msra.mxu0 %v1507
    %1536 = vmatprep.subr.mxu0 0.0
    %1537 = vmatpush1.msra.mxu0 %v1508
    %1538 = vmatprep.subr.mxu0 0.0
    %1539 = vmatpush1.msra.mxu0 %v1509
    %1540 = vmatprep.subr.mxu0 0.0
    %1541 = vmatpush1.msra.mxu0 %v1510
    %1542 = vmatprep.subr.mxu0 0.0
    %1543 = vmatpush1.msra.mxu0 %v1511
    %1544 = vmatprep.subr.mxu0 0.0
    %1545 = vmatpush1.msra.mxu0 %v1512
    %1546 = vmatprep.subr.mxu0 0.0
    %1547 = vmatpush1.msra.mxu0 %v1513
    %1548 = vmatprep.subr.mxu0 0.0
    %1549 = vmatpush1.msra.mxu0 %v1514
    %1550 = vmatprep.subr.mxu0 0.0
    %1551 = vmatpush1.msra.mxu0 %v1515
    %1552 = vmatprep.subr.mxu0 0.0
    %1553 = vmatpush1.msra.mxu0 %v1516
    %1554 = vmatprep.subr.mxu0 0.0
    %1555 = vmatpush1.msra.mxu0 %v1517
    %1556 = vmatprep.subr.mxu0 0.0
    %1557 = vmatpush1.msra.mxu0 %v1518
    %1558 = vmatprep.subr.mxu0 0.0
    %1559 = vmatpush1.msra.mxu0 0.0
    %1560 = vmatprep.subr.mxu0 0.0
    %1561 = vmatpush1.msra.mxu0 0.0
    %1562 = vmatprep.subr.mxu0 0.0
    %1563 = vmatpush1.msra.mxu0 0.0
    %1564 = vmatprep.subr.mxu0 0.0
    %1565 = vmatpush1.msra.mxu0 0.0
    %1566 = vmatprep.subr.mxu0 0.0
    %1567 = vmatpush1.msra.mxu0 0.0
    %1568 = vmatprep.subr.mxu0 0.0
    %1569 = vmatpush1.msra.mxu0 0.0
    %1570 = vmatprep.subr.mxu0 0.0
    %1571 = vmatpush1.msra.mxu0 0.0
    %1572 = vmatprep.subr.mxu0 0.0
    %1573 = vmatpush1.msra.mxu0 0.0
    %1574 = vmatprep.subr.mxu0 0.0
    %1575 = vmatpush1.msra.mxu0 0.0
    %1576 = vmatprep.subr.mxu0 0.0
    %1577 = vmatpush1.msra.mxu0 0.0
    %1578 = vmatprep.subr.mxu0 0.0
    %1579 = vmatpush1.msra.mxu0 0.0
    %1580 = vmatprep.subr.mxu0 0.0
    %1581 = vmatpush1.msra.mxu0 0.0
    %1582 = vmatprep.subr.mxu0 0.0
    %1583 = vmatpush1.msra.mxu0 0.0
    %1584 = vmatprep.subr.mxu0 0.0
    %1585 = vmatpush1.msra.mxu0 0.0
    %1586 = vmatprep.subr.mxu0 0.0
    %1587 = vmatpush1.msra.mxu0 0.0
    %1588 = vmatprep.subr.mxu0 0.0
    %1589 = vmatpush1.msra.mxu0 0.0
    %1590 = vmatprep.subr.mxu0 0.0
    %1591 = vmatpush1.msra.mxu0 0.0
    %1592 = vmatprep.subr.mxu0 0.0
    %1593 = vmatpush1.msra.mxu0 0.0
    %1594 = vmatprep.mubr.f32.mxu0 0.0
    %1595 = vmatmul.mubr.f32.gmra.mrb[0].mxu0 %v1528
    %v1596 = vpop.f32.mrb[0].mxu0
    %v1597 = vadd.f32 %v1524, %v1596
    %v1598 = vpop.f32.mrb[0].mxu0
    %1599 = vdwg.mxu0
    %v1600 = vmax.f32 %v1597, 0.0
    %v1601 = vld [vmem:[%s55] sm:$0xff]
    %v1602 = vld [vmem:[%s55 + $0x8] sm:$0xff]
    %v1603 = vld [vmem:[%s55 + $0x10] sm:$0xff]
    %v1604 = vld [vmem:[%s55 + $0x18] sm:$0xff]
    %v1605 = vld [vmem:[%s55 + $0x20] sm:$0xff]
    %v1606 = vld [vmem:[%s55 + $0x28] sm:$0xff]
    %v1607 = vld [vmem:[%s55 + $0x30] sm:$0xff]
    %v1608 = vld [vmem:[%s55 + $0x38] sm:$0xff]
    %v1609 = vld [vmem:[%s55 + $0x40] sm:$0xff]
    %v1610 = vld [vmem:[%s55 + $0x48] sm:$0xff]
    %v1611 = vld [vmem:[%s55 + $0x50] sm:$0xff]
    %v1612 = vld [vmem:[%s55 + $0x58] sm:$0xff]
    %v1613 = vld [vmem:[%s55 + $0x60] sm:$0xf]
    %v1614 = vld [vmem:[%s57] sm:$0x1]
    %v1616 = vlaneseq
    %v1617 = vshrl.u32 %v1616, 7
    %v1618 = vsub.s32 0, %v1617
    %v1619 = vrot.slane %v1614, %v1618
    %v1622 = vsel %vm368, %v1600, 0
    %v1625 = vsel %vm384, %v1613, 0
    %1627 = vmatprep.subr.mxu0 0.0
    %1628 = vmatpush1.msra.mxu0 %v1601
    %1629 = vmatprep.subr.mxu0 0.0
    %1630 = vmatpush1.msra.mxu0 %v1602
    %1631 = vmatprep.subr.mxu0 0.0
    %1632 = vmatpush1.msra.mxu0 %v1603
    %1633 = vmatprep.subr.mxu0 0.0
    %1634 = vmatpush1.msra.mxu0 %v1604
    %1635 = vmatprep.subr.mxu0 0.0
    %1636 = vmatpush1.msra.mxu0 %v1605
    %1637 = vmatprep.subr.mxu0 0.0
    %1638 = vmatpush1.msra.mxu0 %v1606
    %1639 = vmatprep.subr.mxu0 0.0
    %1640 = vmatpush1.msra.mxu0 %v1607
    %1641 = vmatprep.subr.mxu0 0.0
    %1642 = vmatpush1.msra.mxu0 %v1608
    %1643 = vmatprep.subr.mxu0 0.0
    %1644 = vmatpush1.msra.mxu0 %v1609
    %1645 = vmatprep.subr.mxu0 0.0
    %1646 = vmatpush1.msra.mxu0 %v1610
    %1647 = vmatprep.subr.mxu0 0.0
    %1648 = vmatpush1.msra.mxu0 %v1611
    %1649 = vmatprep.subr.mxu0 0.0
    %1650 = vmatpush1.msra.mxu0 %v1612
    %1651 = vmatprep.subr.mxu0 0.0
    %1652 = vmatpush1.msra.mxu0 %v1625
    %1653 = vmatprep.subr.mxu0 0.0
    %1654 = vmatpush1.msra.mxu0 0.0
    %1655 = vmatprep.subr.mxu0 0.0
    %1656 = vmatpush1.msra.mxu0 0.0
    %1657 = vmatprep.subr.mxu0 0.0
    %1658 = vmatpush1.msra.mxu0 0.0
    %1659 = vmatprep.subr.mxu0 0.0
    %1660 = vmatpush1.msra.mxu0 0.0
    %1661 = vmatprep.subr.mxu0 0.0
    %1662 = vmatpush1.msra.mxu0 0.0
    %1663 = vmatprep.subr.mxu0 0.0
    %1664 = vmatpush1.msra.mxu0 0.0
    %1665 = vmatprep.subr.mxu0 0.0
    %1666 = vmatpush1.msra.mxu0 0.0
    %1667 = vmatprep.subr.mxu0 0.0
    %1668 = vmatpush1.msra.mxu0 0.0
    %1669 = vmatprep.subr.mxu0 0.0
    %1670 = vmatpush1.msra.mxu0 0.0
    %1671 = vmatprep.subr.mxu0 0.0
    %1672 = vmatpush1.msra.mxu0 0.0
    %1673 = vmatprep.subr.mxu0 0.0
    %1674 = vmatpush1.msra.mxu0 0.0
    %1675 = vmatprep.subr.mxu0 0.0
    %1676 = vmatpush1.msra.mxu0 0.0
    %1677 = vmatprep.subr.mxu0 0.0
    %1678 = vmatpush1.msra.mxu0 0.0
    %1679 = vmatprep.subr.mxu0 0.0
    %1680 = vmatpush1.msra.mxu0 0.0
    %1681 = vmatprep.subr.mxu0 0.0
    %1682 = vmatpush1.msra.mxu0 0.0
    %1683 = vmatprep.subr.mxu0 0.0
    %1684 = vmatpush1.msra.mxu0 0.0
    %1685 = vmatprep.subr.mxu0 0.0
    %1686 = vmatpush1.msra.mxu0 0.0
    %1687 = vmatprep.subr.mxu0 0.0
    %1688 = vmatpush1.msra.mxu0 0.0
    %1689 = vmatprep.subr.mxu0 0.0
    %1690 = vmatpush1.msra.mxu0 0.0
    %1691 = vmatprep.mubr.f32.mxu0 0.0
    %1692 = vmatmul.mubr.f32.gmra.mrb[0].mxu0 %v1622
    %v1693 = vpop.f32.mrb[0].mxu0
    %v1694 = vadd.f32 %v1619, %v1693
    %v1695 = vpop.f32.mrb[0].mxu0
    %1696 = vdwg.mxu0
    %v1697 = vmax.f32 %v1694, 0.0
    %v1698 = vld [vmem:[%s59] sm:$0xff]
    %v1699 = vld [vmem:[%s59 + $0x8] sm:$0xff]
    %v1700 = vld [vmem:[%s59 + $0x10] sm:$0xff]
    %v1701 = vld [vmem:[%s59 + $0x18] sm:$0xff]
    %v1702 = vld [vmem:[%s59 + $0x20] sm:$0xff]
    %v1703 = vld [vmem:[%s59 + $0x28] sm:$0xff]
    %v1704 = vld [vmem:[%s59 + $0x30] sm:$0x3]
    %v1705 = vld [vmem:[%s61] sm:$0x1]
    %v1707 = vlaneseq
    %v1708 = vshrl.u32 %v1707, 7
    %v1709 = vsub.s32 0, %v1708
    %v1710 = vrot.slane %v1705, %v1709
    %v1713 = vsel %vm497, %v1697, 0
    %v1716 = vsel %vm513, %v1704, 0
    %1718 = vmatprep.subr.mxu0 0.0
    %1719 = vmatpush1.msra.mxu0 %v1698
    %1720 = vmatprep.subr.mxu0 0.0
    %1721 = vmatpush1.msra.mxu0 %v1699
    %1722 = vmatprep.subr.mxu0 0.0
    %1723 = vmatpush1.msra.mxu0 %v1700
    %1724 = vmatprep.subr.mxu0 0.0
    %1725 = vmatpush1.msra.mxu0 %v1701
    %1726 = vmatprep.subr.mxu0 0.0
    %1727 = vmatpush1.msra.mxu0 %v1702
    %1728 = vmatprep.subr.mxu0 0.0
    %1729 = vmatpush1.msra.mxu0 %v1703
    %1730 = vmatprep.subr.mxu0 0.0
    %1731 = vmatpush1.msra.mxu0 %v1716
    %1732 = vmatprep.subr.mxu0 0.0
    %1733 = vmatpush1.msra.mxu0 0.0
    %1734 = vmatprep.subr.mxu0 0.0
    %1735 = vmatpush1.msra.mxu0 0.0
    %1736 = vmatprep.subr.mxu0 0.0
    %1737 = vmatpush1.msra.mxu0 0.0
    %1738 = vmatprep.subr.mxu0 0.0
    %1739 = vmatpush1.msra.mxu0 0.0
    %1740 = vmatprep.subr.mxu0 0.0
    %1741 = vmatpush1.msra.mxu0 0.0
    %1742 = vmatprep.subr.mxu0 0.0
    %1743 = vmatpush1.msra.mxu0 0.0
    %1744 = vmatprep.subr.mxu0 0.0
    %1745 = vmatpush1.msra.mxu0 0.0
    %1746 = vmatprep.subr.mxu0 0.0
    %1747 = vmatpush1.msra.mxu0 0.0
    %1748 = vmatprep.subr.mxu0 0.0
    %1749 = vmatpush1.msra.mxu0 0.0
    %1750 = vmatprep.subr.mxu0 0.0
    %1751 = vmatpush1.msra.mxu0 0.0
    %1752 = vmatprep.subr.mxu0 0.0
    %1753 = vmatpush1.msra.mxu0 0.0
    %1754 = vmatprep.subr.mxu0 0.0
    %1755 = vmatpush1.msra.mxu0 0.0
    %1756 = vmatprep.subr.mxu0 0.0
    %1757 = vmatpush1.msra.mxu0 0.0
    %1758 = vmatprep.subr.mxu0 0.0
    %1759 = vmatpush1.msra.mxu0 0.0
    %1760 = vmatprep.subr.mxu0 0.0
    %1761 = vmatpush1.msra.mxu0 0.0
    %1762 = vmatprep.subr.mxu0 0.0
    %1763 = vmatpush1.msra.mxu0 0.0
    %1764 = vmatprep.subr.mxu0 0.0
    %1765 = vmatpush1.msra.mxu0 0.0
    %1766 = vmatprep.subr.mxu0 0.0
    %1767 = vmatpush1.msra.mxu0 0.0
    %1768 = vmatprep.subr.mxu0 0.0
    %1769 = vmatpush1.msra.mxu0 0.0
    %1770 = vmatprep.subr.mxu0 0.0
    %1771 = vmatpush1.msra.mxu0 0.0
    %1772 = vmatprep.subr.mxu0 0.0
    %1773 = vmatpush1.msra.mxu0 0.0
    %1774 = vmatprep.subr.mxu0 0.0
    %1775 = vmatpush1.msra.mxu0 0.0
    %1776 = vmatprep.subr.mxu0 0.0
    %1777 = vmatpush1.msra.mxu0 0.0
    %1778 = vmatprep.subr.mxu0 0.0
    %1779 = vmatpush1.msra.mxu0 0.0
    %1780 = vmatprep.subr.mxu0 0.0
    %1781 = vmatpush1.msra.mxu0 0.0
    %1782 = vmatprep.mubr.f32.mxu0 0.0
    %1783 = vmatmul.mubr.f32.gmra.mrb[0].mxu0 %v1713
    %v1784 = vpop.f32.mrb[0].mxu0
    %v1785 = vadd.f32 %v1710, %v1784
    %v1786 = vpop.f32.mrb[0].mxu0
    %1787 = vdwg.mxu0
    %v1788 = vmax.f32 %v1785, 0.0
    %1789 = vrot.lane.b32.xlu0 %v224, 32
    %v1790 = vpop.permute.xlu0 %1789
    %1793 = vrot.lane.b32.xlu0 %v1492, 32
    %v1794 = vpop.permute.xlu0 %1793
    %1797 = vrot.lane.b32.xlu0 %v1180, 64
    %v1798 = vpop.permute.xlu0 %1797
    %v1800 = vsel %vm242, %v610, %v1790
    %v1801 = vsel %vm620, %v1800, %v1794
    %v1802 = vsel %vm1502, %v1801, %v1798
    %v1803 = vld [vmem:[%s63] sm:$0xff]
    %v1804 = vld [vmem:[%s63 + $0x8] sm:$0xff]
    %v1805 = vld [vmem:[%s63 + $0x10] sm:$0xff]
    %v1806 = vld [vmem:[%s63 + $0x18] sm:$0xff]
    %v1807 = vld [vmem:[%s63 + $0x20] sm:$0xff]
    %v1808 = vld [vmem:[%s63 + $0x28] sm:$0xff]
    %v1809 = vld [vmem:[%s63 + $0x30] sm:$0xff]
    %v1810 = vld [vmem:[%s63 + $0x38] sm:$0xff]
    %v1811 = vld [vmem:[%s63 + $0x40] sm:$0xff]
    %v1812 = vld [vmem:[%s63 + $0x48] sm:$0xff]
    %v1813 = vld [vmem:[%s63 + $0x50] sm:$0xff]
    %v1814 = vld [vmem:[%s63 + $0x58] sm:$0xff]
    %v1815 = vld [vmem:[%s63 + $0x60] sm:$0xff]
    %v1816 = vld [vmem:[%s63 + $0x68] sm:$0xff]
    %v1817 = vld [vmem:[%s63 + $0x70] sm:$0xff]
    %v1818 = vld [vmem:[%s63 + $0x78] sm:$0xff]
    %v1819 = vld [vmem:[%s63 + $0x80] sm:$0xff]
    %v1820 = vld [vmem:[%s63 + $0x88] sm:$0xff]
    %v1821 = vld [vmem:[%s63 + $0x90] sm:$0xff]
    %v1822 = vld [vmem:[%s63 + $0x98] sm:$0xff]
    %v1823 = vld [vmem:[%s65] sm:$0x1]
    %v1825 = vlaneseq
    %v1826 = vshrl.u32 %v1825, 7
    %v1827 = vsub.s32 0, %v1826
    %v1828 = vrot.slane %v1823, %v1827
    %v1830 = vsel %vm620, %v1798, 0
    %1832 = vmatprep.subr.mxu0 0.0
    %1833 = vmatpush1.msra.mxu0 %v1803
    %1834 = vmatprep.subr.mxu0 0.0
    %1835 = vmatpush1.msra.mxu0 %v1804
    %1836 = vmatprep.subr.mxu0 0.0
    %1837 = vmatpush1.msra.mxu0 %v1805
    %1838 = vmatprep.subr.mxu0 0.0
    %1839 = vmatpush1.msra.mxu0 %v1806
    %1840 = vmatprep.subr.mxu0 0.0
    %1841 = vmatpush1.msra.mxu0 %v1807
    %1842 = vmatprep.subr.mxu0 0.0
    %1843 = vmatpush1.msra.mxu0 %v1808
    %1844 = vmatprep.subr.mxu0 0.0
    %1845 = vmatpush1.msra.mxu0 %v1809
    %1846 = vmatprep.subr.mxu0 0.0
    %1847 = vmatpush1.msra.mxu0 %v1810
    %1848 = vmatprep.subr.mxu0 0.0
    %1849 = vmatpush1.msra.mxu0 %v1811
    %1850 = vmatprep.subr.mxu0 0.0
    %1851 = vmatpush1.msra.mxu0 %v1812
    %1852 = vmatprep.subr.mxu0 0.0
    %1853 = vmatpush1.msra.mxu0 %v1813
    %1854 = vmatprep.subr.mxu0 0.0
    %1855 = vmatpush1.msra.mxu0 %v1814
    %1856 = vmatprep.subr.mxu0 0.0
    %1857 = vmatpush1.msra.mxu0 %v1815
    %1858 = vmatprep.subr.mxu0 0.0
    %1859 = vmatpush1.msra.mxu0 %v1816
    %1860 = vmatprep.subr.mxu0 0.0
    %1861 = vmatpush1.msra.mxu0 %v1817
    %1862 = vmatprep.subr.mxu0 0.0
    %1863 = vmatpush1.msra.mxu0 %v1818
    %1864 = vmatprep.subr.mxu0 0.0
    %1865 = vmatpush1.msra.mxu0 %v1819
    %1866 = vmatprep.subr.mxu0 0.0
    %1867 = vmatpush1.msra.mxu0 %v1820
    %1868 = vmatprep.subr.mxu0 0.0
    %1869 = vmatpush1.msra.mxu0 %v1821
    %1870 = vmatprep.subr.mxu0 0.0
    %1871 = vmatpush1.msra.mxu0 %v1822
    %1872 = vmatprep.subr.mxu0 0.0
    %1873 = vmatpush1.msra.mxu0 0.0
    %1874 = vmatprep.subr.mxu0 0.0
    %1875 = vmatpush1.msra.mxu0 0.0
    %1876 = vmatprep.subr.mxu0 0.0
    %1877 = vmatpush1.msra.mxu0 0.0
    %1878 = vmatprep.subr.mxu0 0.0
    %1879 = vmatpush1.msra.mxu0 0.0
    %1880 = vmatprep.subr.mxu0 0.0
    %1881 = vmatpush1.msra.mxu0 0.0
    %1882 = vmatprep.subr.mxu0 0.0
    %1883 = vmatpush1.msra.mxu0 0.0
    %1884 = vmatprep.subr.mxu0 0.0
    %1885 = vmatpush1.msra.mxu0 0.0
    %1886 = vmatprep.subr.mxu0 0.0
    %1887 = vmatpush1.msra.mxu0 0.0
    %1888 = vmatprep.subr.mxu0 0.0
    %1889 = vmatpush1.msra.mxu0 0.0
    %1890 = vmatprep.subr.mxu0 0.0
    %1891 = vmatpush1.msra.mxu0 0.0
    %1892 = vmatprep.subr.mxu0 0.0
    %1893 = vmatpush1.msra.mxu0 0.0
    %1894 = vmatprep.subr.mxu0 0.0
    %1895 = vmatpush1.msra.mxu0 0.0
    %1896 = vmatprep.mubr.f32.mxu0 %v1830
    %1897 = vmatmul.mubr.f32.gmra.mrb[0].mxu0 %v1802
    %v1898 = vpop.f32.mrb[0].mxu0
    %v1899 = vadd.f32 %v1828, %v1898
    %v1900 = vpop.f32.mrb[0].mxu0
    %1901 = vdwg.mxu0
    %v1902 = vmax.f32 %v1899, 0.0
    %v1903 = vld [vmem:[%s67] sm:$0xff]
    %v1904 = vld [vmem:[%s67 + $0x8] sm:$0xff]
    %v1905 = vld [vmem:[%s67 + $0x10] sm:$0xff]
    %v1906 = vld [vmem:[%s67 + $0x18] sm:$0xff]
    %v1907 = vld [vmem:[%s67 + $0x20] sm:$0xff]
    %v1908 = vld [vmem:[%s67 + $0x28] sm:$0xff]
    %v1909 = vld [vmem:[%s67 + $0x30] sm:$0xff]
    %v1910 = vld [vmem:[%s67 + $0x38] sm:$0xff]
    %v1911 = vld [vmem:[%s67 + $0x40] sm:$0xff]
    %v1912 = vld [vmem:[%s67 + $0x48] sm:$0xff]
    %v1913 = vld [vmem:[%s67 + $0x50] sm:$0xff]
    %v1914 = vld [vmem:[%s67 + $0x58] sm:$0xff]
    %v1915 = vld [vmem:[%s67 + $0x60] sm:$0xf]
    %v1916 = vld [vmem:[%s69] sm:$0x1]
    %v1918 = vlaneseq
    %v1919 = vshrl.u32 %v1918, 7
    %v1920 = vsub.s32 0, %v1919
    %v1921 = vrot.slane %v1916, %v1920
    %v1924 = vsel %vm368, %v1902, 0
    %v1927 = vsel %vm384, %v1915, 0
    %1929 = vmatprep.subr.mxu0 0.0
    %1930 = vmatpush1.msra.mxu0 %v1903
    %1931 = vmatprep.subr.mxu0 0.0
    %1932 = vmatpush1.msra.mxu0 %v1904
    %1933 = vmatprep.subr.mxu0 0.0
    %1934 = vmatpush1.msra.mxu0 %v1905
    %1935 = vmatprep.subr.mxu0 0.0
    %1936 = vmatpush1.msra.mxu0 %v1906
    %1937 = vmatprep.subr.mxu0 0.0
    %1938 = vmatpush1.msra.mxu0 %v1907
    %1939 = vmatprep.subr.mxu0 0.0
    %1940 = vmatpush1.msra.mxu0 %v1908
    %1941 = vmatprep.subr.mxu0 0.0
    %1942 = vmatpush1.msra.mxu0 %v1909
    %1943 = vmatprep.subr.mxu0 0.0
    %1944 = vmatpush1.msra.mxu0 %v1910
    %1945 = vmatprep.subr.mxu0 0.0
    %1946 = vmatpush1.msra.mxu0 %v1911
    %1947 = vmatprep.subr.mxu0 0.0
    %1948 = vmatpush1.msra.mxu0 %v1912
    %1949 = vmatprep.subr.mxu0 0.0
    %1950 = vmatpush1.msra.mxu0 %v1913
    %1951 = vmatprep.subr.mxu0 0.0
    %1952 = vmatpush1.msra.mxu0 %v1914
    %1953 = vmatprep.subr.mxu0 0.0
    %1954 = vmatpush1.msra.mxu0 %v1927
    %1955 = vmatprep.subr.mxu0 0.0
    %1956 = vmatpush1.msra.mxu0 0.0
    %1957 = vmatprep.subr.mxu0 0.0
    %1958 = vmatpush1.msra.mxu0 0.0
    %1959 = vmatprep.subr.mxu0 0.0
    %1960 = vmatpush1.msra.mxu0 0.0
    %1961 = vmatprep.subr.mxu0 0.0
    %1962 = vmatpush1.msra.mxu0 0.0
    %1963 = vmatprep.subr.mxu0 0.0
    %1964 = vmatpush1.msra.mxu0 0.0
    %1965 = vmatprep.subr.mxu0 0.0
    %1966 = vmatpush1.msra.mxu0 0.0
    %1967 = vmatprep.subr.mxu0 0.0
    %1968 = vmatpush1.msra.mxu0 0.0
    %1969 = vmatprep.subr.mxu0 0.0
    %1970 = vmatpush1.msra.mxu0 0.0
    %1971 = vmatprep.subr.mxu0 0.0
    %1972 = vmatpush1.msra.mxu0 0.0
    %1973 = vmatprep.subr.mxu0 0.0
    %1974 = vmatpush1.msra.mxu0 0.0
    %1975 = vmatprep.subr.mxu0 0.0
    %1976 = vmatpush1.msra.mxu0 0.0
    %1977 = vmatprep.subr.mxu0 0.0
    %1978 = vmatpush1.msra.mxu0 0.0
    %1979 = vmatprep.subr.mxu0 0.0
    %1980 = vmatpush1.msra.mxu0 0.0
    %1981 = vmatprep.subr.mxu0 0.0
    %1982 = vmatpush1.msra.mxu0 0.0
    %1983 = vmatprep.subr.mxu0 0.0
    %1984 = vmatpush1.msra.mxu0 0.0
    %1985 = vmatprep.subr.mxu0 0.0
    %1986 = vmatpush1.msra.mxu0 0.0
    %1987 = vmatprep.subr.mxu0 0.0
    %1988 = vmatpush1.msra.mxu0 0.0
    %1989 = vmatprep.subr.mxu0 0.0
    %1990 = vmatpush1.msra.mxu0 0.0
    %1991 = vmatprep.subr.mxu0 0.0
    %1992 = vmatpush1.msra.mxu0 0.0
    %1993 = vmatprep.mubr.f32.mxu0 0.0
    %1994 = vmatmul.mubr.f32.gmra.mrb[0].mxu0 %v1924
    %v1995 = vpop.f32.mrb[0].mxu0
    %v1996 = vadd.f32 %v1921, %v1995
    %v1997 = vpop.f32.mrb[0].mxu0
    %1998 = vdwg.mxu0
    %v1999 = vmax.f32 %v1996, 0.0
    %v2000 = vld [vmem:[%s71] sm:$0xff]
    %v2001 = vld [vmem:[%s71 + $0x8] sm:$0xff]
    %v2002 = vld [vmem:[%s71 + $0x10] sm:$0xff]
    %v2003 = vld [vmem:[%s71 + $0x18] sm:$0xff]
    %v2004 = vld [vmem:[%s71 + $0x20] sm:$0xff]
    %v2005 = vld [vmem:[%s71 + $0x28] sm:$0xff]
    %v2006 = vld [vmem:[%s71 + $0x30] sm:$0xff]
    %v2007 = vld [vmem:[%s71 + $0x38] sm:$0xff]
    %v2008 = vld [vmem:[%s71 + $0x40] sm:$0xff]
    %v2009 = vld [vmem:[%s71 + $0x48] sm:$0xff]
    %v2010 = vld [vmem:[%s71 + $0x50] sm:$0xff]
    %v2011 = vld [vmem:[%s71 + $0x58] sm:$0xff]
    %v2012 = vld [vmem:[%s71 + $0x60] sm:$0x3]
    %v2013 = vld [vmem:[%s71 + $0x68] sm:$0x3]
    %v2014 = vld [vmem:[%s73] sm:$0x3]
    %v2016 = vlaneseq
    %v2017 = vshrl.u32 %v2016, 7
    %v2018 = vsub.s32 0, %v2017
    %v2019 = vrot.slane %v2014, %v2018
    %v2020 = vlaneseq
    %v2021 = vshrl.u32 %v2020, 7
    %v2022 = vsub.s32 1, %v2021
    %v2023 = vrot.slane %v2014, %v2022
    %v2027 = vsel %vm497, %v1999, 0
    %v2030 = vsel %vm513, %v2012, 0
    %v2033 = vsel %vm513, %v2013, 0
    %2035 = vmatprep.subr.mxu0 %v2001
    %2036 = vmatpush1.msra.mxu0 %v2000
    %2037 = vmatprep.subr.mxu0 %v2003
    %2038 = vmatpush1.msra.mxu0 %v2002
    %2039 = vmatprep.subr.mxu0 %v2005
    %2040 = vmatpush1.msra.mxu0 %v2004
    %2041 = vmatprep.subr.mxu0 %v2007
    %2042 = vmatpush1.msra.mxu0 %v2006
    %2043 = vmatprep.subr.mxu0 %v2009
    %2044 = vmatpush1.msra.mxu0 %v2008
    %2045 = vmatprep.subr.mxu0 %v2011
    %2046 = vmatpush1.msra.mxu0 %v2010
    %2047 = vmatprep.subr.mxu0 %v2033
    %2048 = vmatpush1.msra.mxu0 %v2030
    %2049 = vmatprep.subr.mxu0 0.0
    %2050 = vmatpush1.msra.mxu0 0.0
    %2051 = vmatprep.subr.mxu0 0.0
    %2052 = vmatpush1.msra.mxu0 0.0
    %2053 = vmatprep.subr.mxu0 0.0
    %2054 = vmatpush1.msra.mxu0 0.0
    %2055 = vmatprep.subr.mxu0 0.0
    %2056 = vmatpush1.msra.mxu0 0.0
    %2057 = vmatprep.subr.mxu0 0.0
    %2058 = vmatpush1.msra.mxu0 0.0
    %2059 = vmatprep.subr.mxu0 0.0
    %2060 = vmatpush1.msra.mxu0 0.0
    %2061 = vmatprep.subr.mxu0 0.0
    %2062 = vmatpush1.msra.mxu0 0.0
    %2063 = vmatprep.subr.mxu0 0.0
    %2064 = vmatpush1.msra.mxu0 0.0
    %2065 = vmatprep.subr.mxu0 0.0
    %2066 = vmatpush1.msra.mxu0 0.0
    %2067 = vmatprep.subr.mxu0 0.0
    %2068 = vmatpush1.msra.mxu0 0.0
    %2069 = vmatprep.subr.mxu0 0.0
    %2070 = vmatpush1.msra.mxu0 0.0
    %2071 = vmatprep.subr.mxu0 0.0
    %2072 = vmatpush1.msra.mxu0 0.0
    %2073 = vmatprep.subr.mxu0 0.0
    %2074 = vmatpush1.msra.mxu0 0.0
    %2075 = vmatprep.subr.mxu0 0.0
    %2076 = vmatpush1.msra.mxu0 0.0
    %2077 = vmatprep.subr.mxu0 0.0
    %2078 = vmatpush1.msra.mxu0 0.0
    %2079 = vmatprep.subr.mxu0 0.0
    %2080 = vmatpush1.msra.mxu0 0.0
    %2081 = vmatprep.subr.mxu0 0.0
    %2082 = vmatpush1.msra.mxu0 0.0
    %2083 = vmatprep.subr.mxu0 0.0
    %2084 = vmatpush1.msra.mxu0 0.0
    %2085 = vmatprep.subr.mxu0 0.0
    %2086 = vmatpush1.msra.mxu0 0.0
    %2087 = vmatprep.subr.mxu0 0.0
    %2088 = vmatpush1.msra.mxu0 0.0
    %2089 = vmatprep.subr.mxu0 0.0
    %2090 = vmatpush1.msra.mxu0 0.0
    %2091 = vmatprep.subr.mxu0 0.0
    %2092 = vmatpush1.msra.mxu0 0.0
    %2093 = vmatprep.subr.mxu0 0.0
    %2094 = vmatpush1.msra.mxu0 0.0
    %2095 = vmatprep.subr.mxu0 0.0
    %2096 = vmatpush1.msra.mxu0 0.0
    %2097 = vmatprep.subr.mxu0 0.0
    %2098 = vmatpush1.msra.mxu0 0.0
    %2099 = vmatprep.mubr.f32.mxu0 0.0
    %2100 = vmatmul.mubr.f32.gmra.mrb[0].mxu0 %v2027
    %v2101 = vpop.f32.mrb[0].mxu0
    %v2102 = vadd.f32 %v2019, %v2101
    %v2103 = vpop.f32.mrb[0].mxu0
    %v2104 = vadd.f32 %v2023, %v2103
    %2105 = vdwg.mxu0
    %v2106 = vmax.f32 %v2102, 0.0
    %v2107 = vmax.f32 %v2104, 0.0
    %v2109 = vsel %vm1526, %v1788, %v223
    %v2110 = vsel %vm620, %v2107, %v230
    %v2111 = vld [vmem:[%s75] sm:$0xff]
    %v2112 = vld [vmem:[%s75 + $0x8] sm:$0xff]
    %v2113 = vld [vmem:[%s75 + $0x10] sm:$0xff]
    %v2114 = vld [vmem:[%s75 + $0x18] sm:$0xff]
    %v2115 = vld [vmem:[%s75 + $0x20] sm:$0xff]
    %v2116 = vld [vmem:[%s75 + $0x28] sm:$0xff]
    %v2117 = vld [vmem:[%s75 + $0x30] sm:$0xff]
    %v2118 = vld [vmem:[%s75 + $0x38] sm:$0xff]
    %v2119 = vld [vmem:[%s75 + $0x40] sm:$0xff]
    %v2120 = vld [vmem:[%s75 + $0x48] sm:$0xff]
    %v2121 = vld [vmem:[%s75 + $0x50] sm:$0xff]
    %v2122 = vld [vmem:[%s75 + $0x58] sm:$0xff]
    %v2123 = vld [vmem:[%s75 + $0x60] sm:$0xff]
    %v2124 = vld [vmem:[%s75 + $0x68] sm:$0xff]
    %v2125 = vld [vmem:[%s75 + $0x70] sm:$0xff]
    %v2126 = vld [vmem:[%s75 + $0x78] sm:$0xff]
    %v2127 = vld [vmem:[%s75 + $0x80] sm:$0xff]
    %v2128 = vld [vmem:[%s75 + $0x88] sm:$0xff]
    %v2129 = vld [vmem:[%s75 + $0x90] sm:$0xff]
    %v2130 = vld [vmem:[%s75 + $0x98] sm:$0xff]
    %v2131 = vld [vmem:[%s75 + $0xa0] sm:$0xff]
    %v2132 = vld [vmem:[%s75 + $0xa8] sm:$0xff]
    %v2133 = vld [vmem:[%s75 + $0xb0] sm:$0xff]
    %v2134 = vld [vmem:[%s75 + $0xb8] sm:$0xff]
    %v2135 = vld [vmem:[%s75 + $0xc0] sm:$0xff]
    %v2136 = vld [vmem:[%s75 + $0xc8] sm:$0xff]
    %v2137 = vld [vmem:[%s75 + $0xd0] sm:$0xff]
    %v2138 = vld [vmem:[%s75 + $0xd8] sm:$0xff]
    %v2139 = vld [vmem:[%s75 + $0xe0] sm:$0xff]
    %v2140 = vld [vmem:[%s75 + $0xe8] sm:$0xff]
    %v2141 = vld [vmem:[%s75 + $0xf0] sm:$0xff]
    %v2142 = vld [vmem:[%s75 + $0xf8] sm:$0xff]
    %v2143 = vld [vmem:[%s75 + $0x100] sm:$0xff]
    %v2144 = vld [vmem:[%s75 + $0x108] sm:$0xff]
    %v2145 = vld [vmem:[%s75 + $0x110] sm:$0xff]
    %v2146 = vld [vmem:[%s75 + $0x118] sm:$0xff]
    %v2147 = vld [vmem:[%s75 + $0x120] sm:$0xff]
    %v2148 = vld [vmem:[%s75 + $0x128] sm:$0xff]
    %v2149 = vld [vmem:[%s75 + $0x130] sm:$0xff]
    %v2150 = vld [vmem:[%s75 + $0x138] sm:$0xff]
    %v2151 = vld [vmem:[%s75 + $0x140] sm:$0xff]
    %v2152 = vld [vmem:[%s75 + $0x148] sm:$0xff]
    %v2153 = vld [vmem:[%s75 + $0x150] sm:$0xff]
    %v2154 = vld [vmem:[%s75 + $0x158] sm:$0xff]
    %v2155 = vld [vmem:[%s75 + $0x160] sm:$0xff]
    %v2156 = vld [vmem:[%s75 + $0x168] sm:$0xff]
    %v2157 = vld [vmem:[%s75 + $0x170] sm:$0xff]
    %v2158 = vld [vmem:[%s75 + $0x178] sm:$0xff]
    %v2159 = vld [vmem:[%s77] sm:$0x1]
    %v2161 = vlaneseq
    %v2162 = vshrl.u32 %v2161, 7
    %v2163 = vsub.s32 0, %v2162
    %v2164 = vrot.slane %v2159, %v2163
    %2166 = vmatprep.subr.mxu0 0.0
    %2167 = vmatpush1.msra.mxu0 %v2111
    %2168 = vmatprep.subr.mxu0 0.0
    %2169 = vmatpush1.msra.mxu0 %v2112
    %2170 = vmatprep.subr.mxu0 0.0
    %2171 = vmatpush1.msra.mxu0 %v2113
    %2172 = vmatprep.subr.mxu0 0.0
    %2173 = vmatpush1.msra.mxu0 %v2114
    %2174 = vmatprep.subr.mxu0 0.0
    %2175 = vmatpush1.msra.mxu0 %v2115
    %2176 = vmatprep.subr.mxu0 0.0
    %2177 = vmatpush1.msra.mxu0 %v2116
    %2178 = vmatprep.subr.mxu0 0.0
    %2179 = vmatpush1.msra.mxu0 %v2117
    %2180 = vmatprep.subr.mxu0 0.0
    %2181 = vmatpush1.msra.mxu0 %v2118
    %2182 = vmatprep.subr.mxu0 0.0
    %2183 = vmatpush1.msra.mxu0 %v2119
    %2184 = vmatprep.subr.mxu0 0.0
    %2185 = vmatpush1.msra.mxu0 %v2120
    %2186 = vmatprep.subr.mxu0 0.0
    %2187 = vmatpush1.msra.mxu0 %v2121
    %2188 = vmatprep.subr.mxu0 0.0
    %2189 = vmatpush1.msra.mxu0 %v2122
    %2190 = vmatprep.subr.mxu0 0.0
    %2191 = vmatpush1.msra.mxu0 %v2123
    %2192 = vmatprep.subr.mxu0 0.0
    %2193 = vmatpush1.msra.mxu0 %v2124
    %2194 = vmatprep.subr.mxu0 0.0
    %2195 = vmatpush1.msra.mxu0 %v2125
    %2196 = vmatprep.subr.mxu0 0.0
    %2197 = vmatpush1.msra.mxu0 %v2126
    %2198 = vmatprep.subr.mxu0 0.0
    %2199 = vmatpush1.msra.mxu0 %v2127
    %2200 = vmatprep.subr.mxu0 0.0
    %2201 = vmatpush1.msra.mxu0 %v2128
    %2202 = vmatprep.subr.mxu0 0.0
    %2203 = vmatpush1.msra.mxu0 %v2129
    %2204 = vmatprep.subr.mxu0 0.0
    %2205 = vmatpush1.msra.mxu0 %v2130
    %2206 = vmatprep.subr.mxu0 0.0
    %2207 = vmatpush1.msra.mxu0 %v2131
    %2208 = vmatprep.subr.mxu0 0.0
    %2209 = vmatpush1.msra.mxu0 %v2132
    %2210 = vmatprep.subr.mxu0 0.0
    %2211 = vmatpush1.msra.mxu0 %v2133
    %2212 = vmatprep.subr.mxu0 0.0
    %2213 = vmatpush1.msra.mxu0 %v2134
    %2214 = vmatprep.subr.mxu0 0.0
    %2215 = vmatpush1.msra.mxu0 %v2135
    %2216 = vmatprep.subr.mxu0 0.0
    %2217 = vmatpush1.msra.mxu0 %v2136
    %2218 = vmatprep.subr.mxu0 0.0
    %2219 = vmatpush1.msra.mxu0 %v2137
    %2220 = vmatprep.subr.mxu0 0.0
    %2221 = vmatpush1.msra.mxu0 %v2138
    %2222 = vmatprep.subr.mxu0 0.0
    %2223 = vmatpush1.msra.mxu0 %v2139
    %2224 = vmatprep.subr.mxu0 0.0
    %2225 = vmatpush1.msra.mxu0 %v2140
    %2226 = vmatprep.subr.mxu0 0.0
    %2227 = vmatpush1.msra.mxu0 %v2141
    %2228 = vmatprep.subr.mxu0 0.0
    %2229 = vmatpush1.msra.mxu0 %v2142
    %2230 = vmatprep.mubr.f32.mxu0 %v2106
    %2231 = vmatmul.mubr.f32.gmra.mrb[0].mxu0 %v2109
    %v2232 = vpop.f32.mrb[0].mxu0
    %v2233 = vadd.f32 %v2164, %v2232
    %v2234 = vpop.f32.mrb[0].mxu0
    %2235 = vdwg.mxu0
    %2236 = vmatprep.subr.mxu0 0.0
    %2237 = vmatpush1.msra.mxu0 %v2143
    %2238 = vmatprep.subr.mxu0 0.0
    %2239 = vmatpush1.msra.mxu0 %v2144
    %2240 = vmatprep.subr.mxu0 0.0
    %2241 = vmatpush1.msra.mxu0 %v2145
    %2242 = vmatprep.subr.mxu0 0.0
    %2243 = vmatpush1.msra.mxu0 %v2146
    %2244 = vmatprep.subr.mxu0 0.0
    %2245 = vmatpush1.msra.mxu0 %v2147
    %2246 = vmatprep.subr.mxu0 0.0
    %2247 = vmatpush1.msra.mxu0 %v2148
    %2248 = vmatprep.subr.mxu0 0.0
    %2249 = vmatpush1.msra.mxu0 %v2149
    %2250 = vmatprep.subr.mxu0 0.0
    %2251 = vmatpush1.msra.mxu0 %v2150
    %2252 = vmatprep.subr.mxu0 0.0
    %2253 = vmatpush1.msra.mxu0 %v2151
    %2254 = vmatprep.subr.mxu0 0.0
    %2255 = vmatpush1.msra.mxu0 %v2152
    %2256 = vmatprep.subr.mxu0 0.0
    %2257 = vmatpush1.msra.mxu0 %v2153
    %2258 = vmatprep.subr.mxu0 0.0
    %2259 = vmatpush1.msra.mxu0 %v2154
    %2260 = vmatprep.subr.mxu0 0.0
    %2261 = vmatpush1.msra.mxu0 %v2155
    %2262 = vmatprep.subr.mxu0 0.0
    %2263 = vmatpush1.msra.mxu0 %v2156
    %2264 = vmatprep.subr.mxu0 0.0
    %2265 = vmatpush1.msra.mxu0 %v2157
    %2266 = vmatprep.subr.mxu0 0.0
    %2267 = vmatpush1.msra.mxu0 %v2158
    %2268 = vmatprep.subr.mxu0 0.0
    %2269 = vmatpush1.msra.mxu0 0.0
    %2270 = vmatprep.subr.mxu0 0.0
    %2271 = vmatpush1.msra.mxu0 0.0
    %2272 = vmatprep.subr.mxu0 0.0
    %2273 = vmatpush1.msra.mxu0 0.0
    %2274 = vmatprep.subr.mxu0 0.0
    %2275 = vmatpush1.msra.mxu0 0.0
    %2276 = vmatprep.subr.mxu0 0.0
    %2277 = vmatpush1.msra.mxu0 0.0
    %2278 = vmatprep.subr.mxu0 0.0
    %2279 = vmatpush1.msra.mxu0 0.0
    %2280 = vmatprep.subr.mxu0 0.0
    %2281 = vmatpush1.msra.mxu0 0.0
    %2282 = vmatprep.subr.mxu0 0.0
    %2283 = vmatpush1.msra.mxu0 0.0
    %2284 = vmatprep.subr.mxu0 0.0
    %2285 = vmatpush1.msra.mxu0 0.0
    %2286 = vmatprep.subr.mxu0 0.0
    %2287 = vmatpush1.msra.mxu0 0.0
    %2288 = vmatprep.subr.mxu0 0.0
    %2289 = vmatpush1.msra.mxu0 0.0
    %2290 = vmatprep.subr.mxu0 0.0
    %2291 = vmatpush1.msra.mxu0 0.0
    %2292 = vmatprep.subr.mxu0 0.0
    %2293 = vmatpush1.msra.mxu0 0.0
    %2294 = vmatprep.subr.mxu0 0.0
    %2295 = vmatpush1.msra.mxu0 0.0
    %2296 = vmatprep.subr.mxu0 0.0
    %2297 = vmatpush1.msra.mxu0 0.0
    %2298 = vmatprep.subr.mxu0 0.0
    %2299 = vmatpush1.msra.mxu0 0.0
    %2300 = vmatprep.mubr.f32.mxu0 0.0
    %2301 = vmatmul.mubr.f32.gmra.mrb[0].mxu0 %v2110
    %v2302 = vpop.f32.mrb[0].mxu0
    %v2303 = vadd.f32 %v2233, %v2302
    %v2304 = vpop.f32.mrb[0].mxu0
    %2305 = vdwg.mxu0
    %2306 = vst [vmem:[#allocation11] sm:$0xff] %v2303
    // Predicated region
    $region178: #{tpu_custom_call.1} parent=1 // pred_check
      _
    $region179: #{tpu_custom_call.1} parent=1 // pred_check_branch
      %2308 = sbr.rel (0) target = $region181
    $region180: #{tpu_custom_call.1} parent=1 // pred_region
      %s2310 = ssub.s32 128, 128
      %2311 = vsyncadd [#allocation4], %s2310
      %s2313 = sshll.u32 [#allocation11], 4
      %s2314 = int_to_ptr.vmem [resolvable:$true] %s2313
      %2316 = dma.vmem_to_hbm [thread:$0]  %s2314, 128, %s79, [#allocation4]
    $region181: #{tpu_custom_call.1} parent=1 // pred_fallthru
      _
    // Predicated region
    $region182: #{tpu_custom_call.1} parent=1 // pred_check
      _
    $region183: #{tpu_custom_call.1} parent=1 // pred_check_branch
      %2318 = sbr.rel (0) target = $region185
    $region184: #{tpu_custom_call.1} parent=1 // pred_region
      %2319 = dma.done [#allocation4], 128
    $region185: #{tpu_custom_call.1} parent=1 // pred_fallthru
      _
    %2320 = vsyncpa [#allocation3], 1
    %2321 = vsyncpa [#allocation6], 1
    %2322 = vsyncpa [#allocation9], 1
    %2323 = vsyncpa [#allocation4], 1

</llo_original>
